<compile_context>
chip_gen: v5e
topology: v5e:2x2
jax: 0.10.0
libtpu: 0.0.40
codegen_flags: <defaults>
</compile_context>

<pallas_src>
import jax
import jax.numpy as jnp
from jax import lax
from jax.experimental import pallas as pl
from jax.experimental.pallas import tpu as pltpu

EPS = 1e-5
LANES = 128
VMEM_LIMIT = 48 * 1024 * 1024  # explicit scoped-VMEM cap (fits v5e/v6e/v7x)

_COMPILER_PARAMS = pltpu.CompilerParams(
    dimension_semantics=("parallel",), vmem_limit_bytes=VMEM_LIMIT)


def _rup(c):
    """Round a channel count up to the next multiple of 128 (lane width)."""
    return ((c + LANES - 1) // LANES) * LANES


# ---------------------------------------------------------------------------
# Kernels — grid = (N,), one image per grid step, all grid axes "parallel".
# ---------------------------------------------------------------------------
def _stats1_kernel(x_ref, w1_ref, st_ref):
    """Partial BN1 statistics of y1 = conv1x1(x) for one image."""
    _, H, W, Ci = x_ref.shape
    y1 = jnp.dot(x_ref[...].reshape(H * W, Ci), w1_ref[...],
                 preferred_element_type=jnp.float32)
    st_ref[0:1, 0:1, :] = jnp.sum(y1, axis=0, keepdims=True)[None]
    st_ref[0:1, 1:2, :] = jnp.sum(y1 * y1, axis=0, keepdims=True)[None]


def _stage2_kernel(x_ref, w1_ref, s1_ref, t1_ref, w2_ref,
                   y2_ref, st_ref, sbuf_ref):
    """Recompute stage 1, run the 3x3 conv (padding=1), emit y2 + BN2 partials."""
    _, Hp2, W, C = sbuf_ref.shape
    H = Hp2 - 2
    Ci = x_ref.shape[-1]

    # ---- stage-1 recompute: a1 = relu(y1 * scale1 + shift1) ---------------
    y1 = jnp.dot(x_ref[...].reshape(H * W, Ci), w1_ref[...],
                 preferred_element_type=jnp.float32)
    a1 = jnp.maximum(y1 * s1_ref[...] + t1_ref[...], 0.0).reshape(H, W, C)

    # ---- three dx-shifted, lane/sublane-aligned bf16 tap buffers -----------
    # sbuf[dx][h, w, :] == a1_zeropad[h, w + dx, :]   (a1_zeropad has 1px border)
    zrow = jnp.zeros((3, 1, W, C), jnp.bfloat16)
    sbuf_ref[:, 0:1, :, :] = zrow                        # top halo row
    sbuf_ref[:, H + 1:H + 2, :, :] = zrow                # bottom halo row
    left = pltpu.roll(a1, shift=1, axis=1)               # -> a1[:, w-1, :]
    right = pltpu.roll(a1, shift=W - 1, axis=1)          # -> a1[:, w+1, :]
    sbuf_ref[0:1, 1:H + 1, :, :] = left.astype(jnp.bfloat16)[None]
    sbuf_ref[1:2, 1:H + 1, :, :] = a1.astype(jnp.bfloat16)[None]
    sbuf_ref[2:3, 1:H + 1, :, :] = right.astype(jnp.bfloat16)[None]
    zcol = jnp.zeros((1, H, 1, C), jnp.bfloat16)
    sbuf_ref[0:1, 1:H + 1, 0:1, :] = zcol                # wrapped col -> zero pad
    sbuf_ref[2:3, 1:H + 1, W - 1:W, :] = zcol            # wrapped col -> zero pad

    # ---- 9 lane-dense MXU matmuls; accumulator initialized with tap 0 ------
    def tap(dy, dx):
        return sbuf_ref[dx:dx + 1, dy:dy + H, :, :].reshape(H * W, C)

    acc = jnp.dot(tap(0, 0), w2_ref[0], preferred_element_type=jnp.float32)
    for t in range(1, 9):
        acc = acc + jnp.dot(tap(t // 3, t % 3), w2_ref[t],
                            preferred_element_type=jnp.float32)

    y2_ref[...] = acc.reshape(1, H, W, C)
    st_ref[0:1, 0:1, :] = jnp.sum(acc, axis=0, keepdims=True)[None]
    st_ref[0:1, 1:2, :] = jnp.sum(acc * acc, axis=0, keepdims=True)[None]


def _stats3_kernel(y2_ref, s2_ref, t2_ref, w3_ref, st_ref):
    """Partial BN3 statistics of y3 = conv1x1(relu(bn2(y2))) for one image."""
    _, H, W, C = y2_ref.shape
    a2 = jnp.maximum(y2_ref[...].reshape(H * W, C) * s2_ref[...] + t2_ref[...], 0.0)
    y3 = jnp.dot(a2.astype(jnp.bfloat16), w3_ref[...],
                 preferred_element_type=jnp.float32)
    st_ref[0:1, 0:1, :] = jnp.sum(y3, axis=0, keepdims=True)[None]
    st_ref[0:1, 1:2, :] = jnp.sum(y3 * y3, axis=0, keepdims=True)[None]


def _apply3_kernel(y2_ref, s2_ref, t2_ref, w3_ref, s3_ref, t3_ref, o_ref):
    """Apply bn2+relu, conv1x1 #2, bn3+relu; write the bf16 output image."""
    _, H, W, C = y2_ref.shape
    Co = o_ref.shape[-1]
    a2 = jnp.maximum(y2_ref[...].reshape(H * W, C) * s2_ref[...] + t2_ref[...], 0.0)
    y3 = jnp.dot(a2.astype(jnp.bfloat16), w3_ref[...],
                 preferred_element_type=jnp.float32)
    o_ref[...] = jnp.maximum(y3 * s3_ref[...] + t3_ref[...], 0.0
                             ).reshape(1, H, W, Co).astype(o_ref.dtype)


# ---------------------------------------------------------------------------
# Wrapper: layout / padding prep, 4 tiled pallas_calls, tiny BN fold in between
# ---------------------------------------------------------------------------
def _fold_bn(partial_stats, gamma, beta, m, cpad):
    """Reduce per-tile (sum, sumsq) partials; fold BN affine into (scale, shift)."""
    s = jnp.sum(partial_stats[:, 0, :], axis=0)
    ss = jnp.sum(partial_stats[:, 1, :], axis=0)
    mean = s / m
    var = jnp.maximum(ss / m - mean * mean, 0.0)   # biased var (PyTorch train BN)
    inv = lax.rsqrt(var + EPS)
    g = jnp.pad(gamma.astype(jnp.float32), (0, cpad - gamma.shape[0]))
    b = jnp.pad(beta.astype(jnp.float32), (0, cpad - beta.shape[0]))
    scale = g * inv                                 # padded lanes: g=0 -> scale=0
    shift = b - mean * scale                        # padded lanes: 0
    return scale.reshape(1, cpad), shift.reshape(1, cpad)


def bottleneck_forward(x_nchw, params):
    N, Cin, H, W = x_nchw.shape
    Cmid = params["w1"].shape[1]
    Cout = params["w3"].shape[1]
    M = N * H * W
    Cip, Cmp, Cop = _rup(Cin), _rup(Cmid), _rup(Cout)

    # NCHW -> NHWC, lane-pad channels, bf16 MXU operands.
    x = jnp.transpose(x_nchw, (0, 2, 3, 1)).astype(jnp.bfloat16)
    x = jnp.pad(x, ((0, 0), (0, 0), (0, 0), (0, Cip - Cin)))
    w1p = jnp.pad(params["w1"].astype(jnp.bfloat16),
                  ((0, Cip - Cin), (0, Cmp - Cmid)))
    w2p = jnp.pad(params["w2"].astype(jnp.bfloat16),
                  ((0, 0), (0, Cmp - Cmid), (0, Cmp - Cmid)))
    w3p = jnp.pad(params["w3"].astype(jnp.bfloat16),
                  ((0, Cmp - Cmid), (0, Cop - Cout)))

    img4 = lambda n: (n, 0, 0, 0)
    st3 = lambda n: (n, 0, 0)
    rep2 = lambda n: (0, 0)
    rep3 = lambda n: (0, 0, 0)
    vec_spec = lambda c: pl.BlockSpec((1, c), rep2)

    # ---- pass 1: BN1 statistics of y1 = conv1(x) ---------------------------
    stats1 = pl.pallas_call(
        _stats1_kernel,
        out_shape=jax.ShapeDtypeStruct((N, 2, Cmp), jnp.float32),
        grid=(N,),
        in_specs=[pl.BlockSpec((1, H, W, Cip), img4),
                  pl.BlockSpec((Cip, Cmp), rep2)],
        out_specs=pl.BlockSpec((1, 2, Cmp), st3),
        compiler_params=_COMPILER_PARAMS,
    )(x, w1p)
    s1, t1 = _fold_bn(stats1, params["g1"], params["b1"], M, Cmp)

    # ---- pass 2: y2 = conv3x3(relu(bn1(conv1(x)))) + BN2 statistics --------
    y2, stats2 = pl.pallas_call(
        _stage2_kernel,
        out_shape=(jax.ShapeDtypeStruct((N, H, W, Cmp), jnp.float32),
                   jax.ShapeDtypeStruct((N, 2, Cmp), jnp.float32)),
        grid=(N,),
        in_specs=[pl.BlockSpec((1, H, W, Cip), img4),
                  pl.BlockSpec((Cip, Cmp), rep2),
                  vec_spec(Cmp), vec_spec(Cmp),
                  pl.BlockSpec((9, Cmp, Cmp), rep3)],
        out_specs=(pl.BlockSpec((1, H, W, Cmp), img4),
                   pl.BlockSpec((1, 2, Cmp), st3)),
        scratch_shapes=[pltpu.VMEM((3, H + 2, W, Cmp), jnp.bfloat16)],
        compiler_params=_COMPILER_PARAMS,
    )(x, w1p, s1, t1, w2p)
    s2, t2 = _fold_bn(stats2, params["g2"], params["b2"], M, Cmp)

    # ---- pass 3: BN3 statistics of y3 = conv3(relu(bn2(y2))) ---------------
    stats3 = pl.pallas_call(
        _stats3_kernel,
        out_shape=jax.ShapeDtypeStruct((N, 2, Cop), jnp.float32),
        grid=(N,),
        in_specs=[pl.BlockSpec((1, H, W, Cmp), img4),
                  vec_spec(Cmp), vec_spec(Cmp),
                  pl.BlockSpec((Cmp, Cop), rep2)],
        out_specs=pl.BlockSpec((1, 2, Cop), st3),
        compiler_params=_COMPILER_PARAMS,
    )(y2, s2, t2, w3p)
    s3, t3 = _fold_bn(stats3, params["g3"], params["b3"], M, Cop)

    # ---- pass 4: apply bn2/relu, conv3, bn3/relu; bf16 lane-dense output ---
    out = pl.pallas_call(
        _apply3_kernel,
        out_shape=jax.ShapeDtypeStruct((N, H, W, Cop), jnp.bfloat16),
        grid=(N,),
        in_specs=[pl.BlockSpec((1, H, W, Cmp), img4),
                  vec_spec(Cmp), vec_spec(Cmp),
                  pl.BlockSpec((Cmp, Cop), rep2),
                  vec_spec(Cop), vec_spec(Cop)],
        out_specs=pl.BlockSpec((1, H, W, Cop), img4),
        compiler_params=_COMPILER_PARAMS,
    )(y2, s2, t2, w3p, s3, t3)

    out = out[..., :Cout].astype(jnp.float32)
    return jnp.transpose(out, (0, 3, 1, 2))              # NHWC -> NCHW


# ---------------------------------------------------------------------------
# Pure-JAX reference with the same bf16-matmul / f32-accumulate rounding points
# ---------------------------------------------------------------------------
def _ref_forward(x_nchw, p):
    Cmid = p["w1"].shape[1]

    def bn_relu(y, g, b):
        mean = y.mean(axis=(0, 1, 2), keepdims=True)
        var = ((y - mean) ** 2).mean(axis=(0, 1, 2), keepdims=True)
        return jnp.maximum((y - mean) * lax.rsqrt(var + EPS) * g + b, 0.0)

    x = jnp.transpose(x_nchw, (0, 2, 3, 1))
    y = jnp.einsum("nhwc,cd->nhwd", x.astype(jnp.bfloat16),
                   p["w1"].astype(jnp.bfloat16),
                   preferred_element_type=jnp.float32)
    y = bn_relu(y, p["g1"], p["b1"])
    y = lax.conv_general_dilated(
        y.astype(jnp.bfloat16),
        p["w2"].reshape(3, 3, Cmid, Cmid).astype(jnp.bfloat16),
        (1, 1), "SAME", dimension_numbers=("NHWC", "HWIO", "NHWC"),
        preferred_element_type=jnp.float32)
    y = bn_relu(y, p["g2"], p["b2"])
    y = jnp.einsum("nhwc,cd->nhwd", y.astype(jnp.bfloat16),
                   p["w3"].astype(jnp.bfloat16),
                   preferred_element_type=jnp.float32)
    y = bn_relu(y, p["g3"], p["b3"])
    return jnp.transpose(y, (0, 3, 1, 2))


if __name__ == "__main__":
    N, Cin, Cmid, Cout, H, W = 2, 4, 4, 8, 16, 16

    keys = jax.random.split(jax.random.PRNGKey(0), 10)
    params = {
        "w1": jax.random.normal(keys[0], (Cin, Cmid), jnp.float32) * 0.5,
        "w2": jax.random.normal(keys[1], (9, Cmid, Cmid), jnp.float32) * 0.2,
        "w3": jax.random.normal(keys[2], (Cmid, Cout), jnp.float32) * 0.5,
        "g1": 1.0 + 0.1 * jax.random.normal(keys[3], (Cmid,), jnp.float32),
        "b1": 0.1 * jax.random.normal(keys[4], (Cmid,), jnp.float32),
        "g2": 1.0 + 0.1 * jax.random.normal(keys[5], (Cmid,), jnp.float32),
        "b2": 0.1 * jax.random.normal(keys[6], (Cmid,), jnp.float32),
        "g3": 1.0 + 0.1 * jax.random.normal(keys[7], (Cout,), jnp.float32),
        "b3": 0.1 * jax.random.normal(keys[8], (Cout,), jnp.float32),
    }
    x = jax.random.normal(keys[9], (N, Cin, H, W), jnp.float32)

    fwd = jax.jit(bottleneck_forward)
    out = jax.block_until_ready(fwd(x, params))
    ref = jax.block_until_ready(_ref_forward(x, params))

    assert out.shape == (N, Cout, H, W), out.shape
    # bf16 matmul operands with identical rounding points in kernel & reference;
    # tolerance covers the folded BN scale/shift ordering, occasional 1-ulp bf16
    # re-rounding of intermediates, and the bf16 final writeback.
    assert jnp.allclose(out, ref, atol=2e-2, rtol=2e-2), \
        f"max abs err = {float(jnp.max(jnp.abs(out - ref)))}"

    print("KERNEL_OK")
</pallas_src>

<mosaic_0001>
module attributes {stable_mosaic.version = 11 : i64} {
  func.func @_stats1_kernel(%arg0: i32, %arg1: memref<1x16x16x128xbf16, #tpu.memory_space<vmem>>, %arg2: memref<128x128xbf16, #tpu.memory_space<vmem>>, %arg3: memref<1x2x128xf32, #tpu.memory_space<vmem>>) attributes {dimension_semantics = [#tpu.dimension_semantics<parallel>], iteration_bounds = array<i64: 2>, scalar_prefetch = 0 : i64, scratch_operands = 0 : i64, tpu.core_type = #tpu.core_type<tc>, window_params = [{transform_indices = @transform_0, window_bounds = array<i64: 1, 16, 16, 128>}, {pipeline_mode = #tpu.pipeline_mode<synchronous>, transform_indices = @transform_1, window_bounds = array<i64: 128, 128>}, {transform_indices = @transform_2, window_bounds = array<i64: 1, 2, 128>}]} {
    %c0 = arith.constant 0 : index
    %c0_0 = arith.constant 0 : index
    %c0_1 = arith.constant 0 : index
    %c0_2 = arith.constant 0 : index
    %0 = vector.load %arg1[%c0, %c0_0, %c0_1, %c0_2] : memref<1x16x16x128xbf16, #tpu.memory_space<vmem>>, vector<1x16x16x128xbf16>
    %1 = vector.shape_cast %0 : vector<1x16x16x128xbf16> to vector<256x128xbf16>
    %c0_3 = arith.constant 0 : index
    %c0_4 = arith.constant 0 : index
    %2 = vector.load %arg2[%c0_3, %c0_4] : memref<128x128xbf16, #tpu.memory_space<vmem>>, vector<128x128xbf16>
    %cst = arith.constant dense<0.000000e+00> : vector<256x128xf32>
    %3 = tpu.matmul %1, %2, %cst {dimension_numbers = #tpu.dot_dimension_numbers<[1], [0], [0], [1], [0, 0, 1, 1], [], []>} : vector<256x128xbf16>, vector<128x128xbf16>, vector<256x128xf32> -> vector<256x128xf32>
    %cst_5 = arith.constant dense<0.000000e+00> : vector<128xf32>
    %4 = vector.multi_reduction <add>, %3, %cst_5 [0] : vector<256x128xf32> to vector<128xf32>
    %5 = vector.shape_cast %4 : vector<128xf32> to vector<1x128xf32>
    %6 = vector.shape_cast %5 : vector<1x128xf32> to vector<1x1x128xf32>
    %c0_6 = arith.constant 0 : index
    %c0_7 = arith.constant 0 : index
    %c0_8 = arith.constant 0 : index
    %7 = vector.load %arg3[%c0_6, %c0_7, %c0_8] : memref<1x2x128xf32, #tpu.memory_space<vmem>>, vector<1x1x128xf32>
    tpu.vector_store %arg3[%c0_6, %c0_7, %c0_8], %6 {strides = array<i32>} : memref<1x2x128xf32, #tpu.memory_space<vmem>>, vector<1x1x128xf32>,
    %8 = arith.mulf %3, %3 : vector<256x128xf32>
    %cst_9 = arith.constant dense<0.000000e+00> : vector<128xf32>
    %9 = vector.multi_reduction <add>, %8, %cst_9 [0] : vector<256x128xf32> to vector<128xf32>
    %10 = vector.shape_cast %9 : vector<128xf32> to vector<1x128xf32>
    %11 = vector.shape_cast %10 : vector<1x128xf32> to vector<1x1x128xf32>
    %c0_10 = arith.constant 0 : index
    %c1 = arith.constant 1 : index
    %c0_11 = arith.constant 0 : index
    %12 = vector.load %arg3[%c0_10, %c1, %c0_11] : memref<1x2x128xf32, #tpu.memory_space<vmem>>, vector<1x1x128xf32>
    tpu.vector_store %arg3[%c0_10, %c1, %c0_11], %11 {strides = array<i32>} : memref<1x2x128xf32, #tpu.memory_space<vmem>>, vector<1x1x128xf32>,
    return
  }
  func.func @transform_0(%arg0: i32) -> (i32, i32, i32, i32) {
    %c0_i32 = arith.constant 0 : i32
    %c0_i32_0 = arith.constant 0 : i32
    %c0_i32_1 = arith.constant 0 : i32
    %c0_i32_2 = arith.constant 0 : i32
    return %arg0, %c0_i32, %c0_i32_0, %c0_i32_1 : i32, i32, i32, i32
  }
  func.func @transform_1(%arg0: i32) -> (i32, i32) {
    %c0_i32 = arith.constant 0 : i32
    %c0_i32_0 = arith.constant 0 : i32
    %c0_i32_1 = arith.constant 0 : i32
    return %c0_i32, %c0_i32_0 : i32, i32
  }
  func.func @transform_2(%arg0: i32) -> (i32, i32, i32) {
    %c0_i32 = arith.constant 0 : i32
    %c0_i32_0 = arith.constant 0 : i32
    %c0_i32_1 = arith.constant 0 : i32
    return %arg0, %c0_i32, %c0_i32_0 : i32, i32, i32
  }
}

module attributes {stable_mosaic.version = 11 : i64} {
  func.func @_stage2_kernel(%arg0: i32, %arg1: memref<1x16x16x128xbf16, #tpu.memory_space<vmem>>, %arg2: memref<128x128xbf16, #tpu.memory_space<vmem>>, %arg3: memref<1x128xf32, #tpu.memory_space<vmem>>, %arg4: memref<1x128xf32, #tpu.memory_space<vmem>>, %arg5: memref<9x128x128xbf16, #tpu.memory_space<vmem>>, %arg6: memref<1x16x16x128xf32, #tpu.memory_space<vmem>>, %arg7: memref<1x2x128xf32, #tpu.memory_space<vmem>>, %arg8: memref<3x18x16x128xbf16, #tpu.memory_space<vmem>>) attributes {dimension_semantics = [#tpu.dimension_semantics<parallel>], iteration_bounds = array<i64: 2>, scalar_prefetch = 0 : i64, scratch_operands = 1 : i64, tpu.core_type = #tpu.core_type<tc>, window_params = [{transform_indices = @transform_0, window_bounds = array<i64: 1, 16, 16, 128>}, {pipeline_mode = #tpu.pipeline_mode<synchronous>, transform_indices = @transform_1, window_bounds = array<i64: 128, 128>}, {pipeline_mode = #tpu.pipeline_mode<synchronous>, transform_indices = @transform_2, window_bounds = array<i64: 1, 128>}, {pipeline_mode = #tpu.pipeline_mode<synchronous>, transform_indices = @transform_3, window_bounds = array<i64: 1, 128>}, {pipeline_mode = #tpu.pipeline_mode<synchronous>, transform_indices = @transform_4, window_bounds = array<i64: 9, 128, 128>}, {transform_indices = @transform_5, window_bounds = array<i64: 1, 16, 16, 128>}, {transform_indices = @transform_6, window_bounds = array<i64: 1, 2, 128>}]} {
    %c0 = arith.constant 0 : index
    %c0_0 = arith.constant 0 : index
    %c0_1 = arith.constant 0 : index
    %c0_2 = arith.constant 0 : index
    %0 = vector.load %arg1[%c0, %c0_0, %c0_1, %c0_2] : memref<1x16x16x128xbf16, #tpu.memory_space<vmem>>, vector<1x16x16x128xbf16>
    %1 = vector.shape_cast %0 : vector<1x16x16x128xbf16> to vector<256x128xbf16>
    %c0_3 = arith.constant 0 : index
    %c0_4 = arith.constant 0 : index
    %2 = vector.load %arg2[%c0_3, %c0_4] : memref<128x128xbf16, #tpu.memory_space<vmem>>, vector<128x128xbf16>
    %cst = arith.constant dense<0.000000e+00> : vector<256x128xf32>
    %3 = tpu.matmul %1, %2, %cst {dimension_numbers = #tpu.dot_dimension_numbers<[1], [0], [0], [1], [0, 0, 1, 1], [], []>} : vector<256x128xbf16>, vector<128x128xbf16>, vector<256x128xf32> -> vector<256x128xf32>
    %c0_5 = arith.constant 0 : index
    %c0_6 = arith.constant 0 : index
    %4 = vector.load %arg3[%c0_5, %c0_6] : memref<1x128xf32, #tpu.memory_space<vmem>>, vector<1x128xf32>
    %5 = vector.broadcast %4 : vector<1x128xf32> to vector<256x128xf32>
    %6 = arith.mulf %3, %5 : vector<256x128xf32>
    %c0_7 = arith.constant 0 : index
    %c0_8 = arith.constant 0 : index
    %7 = vector.load %arg4[%c0_7, %c0_8] : memref<1x128xf32, #tpu.memory_space<vmem>>, vector<1x128xf32>
    %8 = vector.broadcast %7 : vector<1x128xf32> to vector<256x128xf32>
    %9 = arith.addf %6, %8 : vector<256x128xf32>
    %cst_9 = arith.constant 0.000000e+00 : f32
    %10 = vector.broadcast %cst_9 : f32 to vector<256x128xf32>
    %11 = arith.maximumf %9, %10 : vector<256x128xf32>
    %12 = vector.shape_cast %11 : vector<256x128xf32> to vector<16x16x128xf32>
    %cst_10 = arith.constant 0.000000e+00 : bf16
    %13 = vector.broadcast %cst_10 : bf16 to vector<3x1x16x128xbf16>
    %c0_11 = arith.constant 0 : index
    %c0_12 = arith.constant 0 : index
    %c0_13 = arith.constant 0 : index
    %c0_14 = arith.constant 0 : index
    %14 = vector.load %arg8[%c0_11, %c0_12, %c0_13, %c0_14] : memref<3x18x16x128xbf16, #tpu.memory_space<vmem>>, vector<3x1x16x128xbf16>
    tpu.vector_store %arg8[%c0_11, %c0_12, %c0_13, %c0_14], %13 {strides = array<i32>} : memref<3x18x16x128xbf16, #tpu.memory_space<vmem>>, vector<3x1x16x128xbf16>,
    %c0_15 = arith.constant 0 : index
    %c17 = arith.constant 17 : index
    %c0_16 = arith.constant 0 : index
    %c0_17 = arith.constant 0 : index
    %15 = vector.load %arg8[%c0_15, %c17, %c0_16, %c0_17] : memref<3x18x16x128xbf16, #tpu.memory_space<vmem>>, vector<3x1x16x128xbf16>
    tpu.vector_store %arg8[%c0_15, %c17, %c0_16, %c0_17], %13 {strides = array<i32>} : memref<3x18x16x128xbf16, #tpu.memory_space<vmem>>, vector<3x1x16x128xbf16>,
    %c1_i32 = arith.constant 1 : i32
    %16 = tpu.dynamic_rotate %12 by %c1_i32 dim 1 : vector<16x16x128xf32>, i32 -> vector<16x16x128xf32>
    %c15_i32 = arith.constant 15 : i32
    %17 = tpu.dynamic_rotate %12 by %c15_i32 dim 1 : vector<16x16x128xf32>, i32 -> vector<16x16x128xf32>
    %18 = arith.truncf %16 : vector<16x16x128xf32> to vector<16x16x128xbf16>
    %19 = vector.shape_cast %18 : vector<16x16x128xbf16> to vector<1x16x16x128xbf16>
    %c0_18 = arith.constant 0 : index
    %c1 = arith.constant 1 : index
    %c0_19 = arith.constant 0 : index
    %c0_20 = arith.constant 0 : index
    %20 = vector.load %arg8[%c0_18, %c1, %c0_19, %c0_20] : memref<3x18x16x128xbf16, #tpu.memory_space<vmem>>, vector<1x16x16x128xbf16>
    tpu.vector_store %arg8[%c0_18, %c1, %c0_19, %c0_20], %19 {strides = array<i32>} : memref<3x18x16x128xbf16, #tpu.memory_space<vmem>>, vector<1x16x16x128xbf16>,
    %21 = arith.truncf %12 : vector<16x16x128xf32> to vector<16x16x128xbf16>
    %22 = vector.shape_cast %21 : vector<16x16x128xbf16> to vector<1x16x16x128xbf16>
    %c1_21 = arith.constant 1 : index
    %c1_22 = arith.constant 1 : index
    %c0_23 = arith.constant 0 : index
    %c0_24 = arith.constant 0 : index
    %23 = vector.load %arg8[%c1_21, %c1_22, %c0_23, %c0_24] : memref<3x18x16x128xbf16, #tpu.memory_space<vmem>>, vector<1x16x16x128xbf16>
    tpu.vector_store %arg8[%c1_21, %c1_22, %c0_23, %c0_24], %22 {strides = array<i32>} : memref<3x18x16x128xbf16, #tpu.memory_space<vmem>>, vector<1x16x16x128xbf16>,
    %24 = arith.truncf %17 : vector<16x16x128xf32> to vector<16x16x128xbf16>
    %25 = vector.shape_cast %24 : vector<16x16x128xbf16> to vector<1x16x16x128xbf16>
    %c2 = arith.constant 2 : index
    %c1_25 = arith.constant 1 : index
    %c0_26 = arith.constant 0 : index
    %c0_27 = arith.constant 0 : index
    %26 = vector.load %arg8[%c2, %c1_25, %c0_26, %c0_27] : memref<3x18x16x128xbf16, #tpu.memory_space<vmem>>, vector<1x16x16x128xbf16>
    tpu.vector_store %arg8[%c2, %c1_25, %c0_26, %c0_27], %25 {strides = array<i32>} : memref<3x18x16x128xbf16, #tpu.memory_space<vmem>>, vector<1x16x16x128xbf16>,
    %cst_28 = arith.constant 0.000000e+00 : bf16
    %27 = vector.broadcast %cst_28 : bf16 to vector<1x16x1x128xbf16>
    %c0_29 = arith.constant 0 : index
    %c1_30 = arith.constant 1 : index
    %c0_31 = arith.constant 0 : index
    %c0_32 = arith.constant 0 : index
    %28 = vector.load %arg8[%c0_29, %c1_30, %c0_31, %c0_32] : memref<3x18x16x128xbf16, #tpu.memory_space<vmem>>, vector<1x16x1x128xbf16>
    tpu.vector_store %arg8[%c0_29, %c1_30, %c0_31, %c0_32], %27 {strides = array<i32>} : memref<3x18x16x128xbf16, #tpu.memory_space<vmem>>, vector<1x16x1x128xbf16>,
    %c2_33 = arith.constant 2 : index
    %c1_34 = arith.constant 1 : index
    %c15 = arith.constant 15 : index
    %c0_35 = arith.constant 0 : index
    %29 = vector.load %arg8[%c2_33, %c1_34, %c15, %c0_35] : memref<3x18x16x128xbf16, #tpu.memory_space<vmem>>, vector<1x16x1x128xbf16>
    tpu.vector_store %arg8[%c2_33, %c1_34, %c15, %c0_35], %27 {strides = array<i32>} : memref<3x18x16x128xbf16, #tpu.memory_space<vmem>>, vector<1x16x1x128xbf16>,
    %c0_36 = arith.constant 0 : index
    %c0_37 = arith.constant 0 : index
    %c0_38 = arith.constant 0 : index
    %c0_39 = arith.constant 0 : index
    %30 = vector.load %arg8[%c0_36, %c0_37, %c0_38, %c0_39] : memref<3x18x16x128xbf16, #tpu.memory_space<vmem>>, vector<1x16x16x128xbf16>
    %31 = vector.shape_cast %30 : vector<1x16x16x128xbf16> to vector<256x128xbf16>
    %c0_40 = arith.constant 0 : index
    %c0_41 = arith.constant 0 : index
    %c0_42 = arith.constant 0 : index
    %32 = vector.load %arg5[%c0_40, %c0_41, %c0_42] : memref<9x128x128xbf16, #tpu.memory_space<vmem>>, vector<1x128x128xbf16>
    %33 = vector.shape_cast %32 : vector<1x128x128xbf16> to vector<128x128xbf16>
    %cst_43 = arith.constant dense<0.000000e+00> : vector<256x128xf32>
    %34 = tpu.matmul %31, %33, %cst_43 {dimension_numbers = #tpu.dot_dimension_numbers<[1], [0], [0], [1], [0, 0, 1, 1], [], []>} : vector<256x128xbf16>, vector<128x128xbf16>, vector<256x128xf32> -> vector<256x128xf32>
    %c1_44 = arith.constant 1 : index
    %c0_45 = arith.constant 0 : index
    %c0_46 = arith.constant 0 : index
    %c0_47 = arith.constant 0 : index
    %35 = vector.load %arg8[%c1_44, %c0_45, %c0_46, %c0_47] : memref<3x18x16x128xbf16, #tpu.memory_space<vmem>>, vector<1x16x16x128xbf16>
    %36 = vector.shape_cast %35 : vector<1x16x16x128xbf16> to vector<256x128xbf16>
    %c1_48 = arith.constant 1 : index
    %c0_49 = arith.constant 0 : index
    %c0_50 = arith.constant 0 : index
    %37 = vector.load %arg5[%c1_48, %c0_49, %c0_50] : memref<9x128x128xbf16, #tpu.memory_space<vmem>>, vector<1x128x128xbf16>
    %38 = vector.shape_cast %37 : vector<1x128x128xbf16> to vector<128x128xbf16>
    %cst_51 = arith.constant dense<0.000000e+00> : vector<256x128xf32>
    %39 = tpu.matmul %36, %38, %cst_51 {dimension_numbers = #tpu.dot_dimension_numbers<[1], [0], [0], [1], [0, 0, 1, 1], [], []>} : vector<256x128xbf16>, vector<128x128xbf16>, vector<256x128xf32> -> vector<256x128xf32>
    %40 = arith.addf %34, %39 : vector<256x128xf32>
    %c2_52 = arith.constant 2 : index
    %c0_53 = arith.constant 0 : index
    %c0_54 = arith.constant 0 : index
    %c0_55 = arith.constant 0 : index
    %41 = vector.load %arg8[%c2_52, %c0_53, %c0_54, %c0_55] : memref<3x18x16x128xbf16, #tpu.memory_space<vmem>>, vector<1x16x16x128xbf16>
    %42 = vector.shape_cast %41 : vector<1x16x16x128xbf16> to vector<256x128xbf16>
    %c2_56 = arith.constant 2 : index
    %c0_57 = arith.constant 0 : index
    %c0_58 = arith.constant 0 : index
    %43 = vector.load %arg5[%c2_56, %c0_57, %c0_58] : memref<9x128x128xbf16, #tpu.memory_space<vmem>>, vector<1x128x128xbf16>
    %44 = vector.shape_cast %43 : vector<1x128x128xbf16> to vector<128x128xbf16>
    %cst_59 = arith.constant dense<0.000000e+00> : vector<256x128xf32>
    %45 = tpu.matmul %42, %44, %cst_59 {dimension_numbers = #tpu.dot_dimension_numbers<[1], [0], [0], [1], [0, 0, 1, 1], [], []>} : vector<256x128xbf16>, vector<128x128xbf16>, vector<256x128xf32> -> vector<256x128xf32>
    %46 = arith.addf %40, %45 : vector<256x128xf32>
    %c0_60 = arith.constant 0 : index
    %c1_61 = arith.constant 1 : index
    %c0_62 = arith.constant 0 : index
    %c0_63 = arith.constant 0 : index
    %47 = vector.load %arg8[%c0_60, %c1_61, %c0_62, %c0_63] : memref<3x18x16x128xbf16, #tpu.memory_space<vmem>>, vector<1x16x16x128xbf16>
    %48 = vector.shape_cast %47 : vector<1x16x16x128xbf16> to vector<256x128xbf16>
    %c3 = arith.constant 3 : index
    %c0_64 = arith.constant 0 : index
    %c0_65 = arith.constant 0 : index
    %49 = vector.load %arg5[%c3, %c0_64, %c0_65] : memref<9x128x128xbf16, #tpu.memory_space<vmem>>, vector<1x128x128xbf16>
    %50 = vector.shape_cast %49 : vector<1x128x128xbf16> to vector<128x128xbf16>
    %cst_66 = arith.constant dense<0.000000e+00> : vector<256x128xf32>
    %51 = tpu.matmul %48, %50, %cst_66 {dimension_numbers = #tpu.dot_dimension_numbers<[1], [0], [0], [1], [0, 0, 1, 1], [], []>} : vector<256x128xbf16>, vector<128x128xbf16>, vector<256x128xf32> -> vector<256x128xf32>
    %52 = arith.addf %46, %51 : vector<256x128xf32>
    %c1_67 = arith.constant 1 : index
    %c1_68 = arith.constant 1 : index
    %c0_69 = arith.constant 0 : index
    %c0_70 = arith.constant 0 : index
    %53 = vector.load %arg8[%c1_67, %c1_68, %c0_69, %c0_70] : memref<3x18x16x128xbf16, #tpu.memory_space<vmem>>, vector<1x16x16x128xbf16>
    %54 = vector.shape_cast %53 : vector<1x16x16x128xbf16> to vector<256x128xbf16>
    %c4 = arith.constant 4 : index
    %c0_71 = arith.constant 0 : index
    %c0_72 = arith.constant 0 : index
    %55 = vector.load %arg5[%c4, %c0_71, %c0_72] : memref<9x128x128xbf16, #tpu.memory_space<vmem>>, vector<1x128x128xbf16>
    %56 = vector.shape_cast %55 : vector<1x128x128xbf16> to vector<128x128xbf16>
    %cst_73 = arith.constant dense<0.000000e+00> : vector<256x128xf32>
    %57 = tpu.matmul %54, %56, %cst_73 {dimension_numbers = #tpu.dot_dimension_numbers<[1], [0], [0], [1], [0, 0, 1, 1], [], []>} : vector<256x128xbf16>, vector<128x128xbf16>, vector<256x128xf32> -> vector<256x128xf32>
    %58 = arith.addf %52, %57 : vector<256x128xf32>
    %c2_74 = arith.constant 2 : index
    %c1_75 = arith.constant 1 : index
    %c0_76 = arith.constant 0 : index
    %c0_77 = arith.constant 0 : index
    %59 = vector.load %arg8[%c2_74, %c1_75, %c0_76, %c0_77] : memref<3x18x16x128xbf16, #tpu.memory_space<vmem>>, vector<1x16x16x128xbf16>
    %60 = vector.shape_cast %59 : vector<1x16x16x128xbf16> to vector<256x128xbf16>
    %c5 = arith.constant 5 : index
    %c0_78 = arith.constant 0 : index
    %c0_79 = arith.constant 0 : index
    %61 = vector.load %arg5[%c5, %c0_78, %c0_79] : memref<9x128x128xbf16, #tpu.memory_space<vmem>>, vector<1x128x128xbf16>
    %62 = vector.shape_cast %61 : vector<1x128x128xbf16> to vector<128x128xbf16>
    %cst_80 = arith.constant dense<0.000000e+00> : vector<256x128xf32>
    %63 = tpu.matmul %60, %62, %cst_80 {dimension_numbers = #tpu.dot_dimension_numbers<[1], [0], [0], [1], [0, 0, 1, 1], [], []>} : vector<256x128xbf16>, vector<128x128xbf16>, vector<256x128xf32> -> vector<256x128xf32>
    %64 = arith.addf %58, %63 : vector<256x128xf32>
    %c0_81 = arith.constant 0 : index
    %c2_82 = arith.constant 2 : index
    %c0_83 = arith.constant 0 : index
    %c0_84 = arith.constant 0 : index
    %65 = vector.load %arg8[%c0_81, %c2_82, %c0_83, %c0_84] : memref<3x18x16x128xbf16, #tpu.memory_space<vmem>>, vector<1x16x16x128xbf16>
    %66 = vector.shape_cast %65 : vector<1x16x16x128xbf16> to vector<256x128xbf16>
    %c6 = arith.constant 6 : index
    %c0_85 = arith.constant 0 : index
    %c0_86 = arith.constant 0 : index
    %67 = vector.load %arg5[%c6, %c0_85, %c0_86] : memref<9x128x128xbf16, #tpu.memory_space<vmem>>, vector<1x128x128xbf16>
    %68 = vector.shape_cast %67 : vector<1x128x128xbf16> to vector<128x128xbf16>
    %cst_87 = arith.constant dense<0.000000e+00> : vector<256x128xf32>
    %69 = tpu.matmul %66, %68, %cst_87 {dimension_numbers = #tpu.dot_dimension_numbers<[1], [0], [0], [1], [0, 0, 1, 1], [], []>} : vector<256x128xbf16>, vector<128x128xbf16>, vector<256x128xf32> -> vector<256x128xf32>
    %70 = arith.addf %64, %69 : vector<256x128xf32>
    %c1_88 = arith.constant 1 : index
    %c2_89 = arith.constant 2 : index
    %c0_90 = arith.constant 0 : index
    %c0_91 = arith.constant 0 : index
    %71 = vector.load %arg8[%c1_88, %c2_89, %c0_90, %c0_91] : memref<3x18x16x128xbf16, #tpu.memory_space<vmem>>, vector<1x16x16x128xbf16>
    %72 = vector.shape_cast %71 : vector<1x16x16x128xbf16> to vector<256x128xbf16>
    %c7 = arith.constant 7 : index
    %c0_92 = arith.constant 0 : index
    %c0_93 = arith.constant 0 : index
    %73 = vector.load %arg5[%c7, %c0_92, %c0_93] : memref<9x128x128xbf16, #tpu.memory_space<vmem>>, vector<1x128x128xbf16>
    %74 = vector.shape_cast %73 : vector<1x128x128xbf16> to vector<128x128xbf16>
    %cst_94 = arith.constant dense<0.000000e+00> : vector<256x128xf32>
    %75 = tpu.matmul %72, %74, %cst_94 {dimension_numbers = #tpu.dot_dimension_numbers<[1], [0], [0], [1], [0, 0, 1, 1], [], []>} : vector<256x128xbf16>, vector<128x128xbf16>, vector<256x128xf32> -> vector<256x128xf32>
    %76 = arith.addf %70, %75 : vector<256x128xf32>
    %c2_95 = arith.constant 2 : index
    %c2_96 = arith.constant 2 : index
    %c0_97 = arith.constant 0 : index
    %c0_98 = arith.constant 0 : index
    %77 = vector.load %arg8[%c2_95, %c2_96, %c0_97, %c0_98] : memref<3x18x16x128xbf16, #tpu.memory_space<vmem>>, vector<1x16x16x128xbf16>
    %78 = vector.shape_cast %77 : vector<1x16x16x128xbf16> to vector<256x128xbf16>
    %c8 = arith.constant 8 : index
    %c0_99 = arith.constant 0 : index
    %c0_100 = arith.constant 0 : index
    %79 = vector.load %arg5[%c8, %c0_99, %c0_100] : memref<9x128x128xbf16, #tpu.memory_space<vmem>>, vector<1x128x128xbf16>
    %80 = vector.shape_cast %79 : vector<1x128x128xbf16> to vector<128x128xbf16>
    %cst_101 = arith.constant dense<0.000000e+00> : vector<256x128xf32>
    %81 = tpu.matmul %78, %80, %cst_101 {dimension_numbers = #tpu.dot_dimension_numbers<[1], [0], [0], [1], [0, 0, 1, 1], [], []>} : vector<256x128xbf16>, vector<128x128xbf16>, vector<256x128xf32> -> vector<256x128xf32>
    %82 = arith.addf %76, %81 : vector<256x128xf32>
    %83 = vector.shape_cast %82 : vector<256x128xf32> to vector<1x16x16x128xf32>
    %c0_102 = arith.constant 0 : index
    %c0_103 = arith.constant 0 : index
    %c0_104 = arith.constant 0 : index
    %c0_105 = arith.constant 0 : index
    %84 = vector.load %arg6[%c0_102, %c0_103, %c0_104, %c0_105] : memref<1x16x16x128xf32, #tpu.memory_space<vmem>>, vector<1x16x16x128xf32>
    tpu.vector_store %arg6[%c0_102, %c0_103, %c0_104, %c0_105], %83 {strides = array<i32>} : memref<1x16x16x128xf32, #tpu.memory_space<vmem>>, vector<1x16x16x128xf32>,
    %cst_106 = arith.constant dense<0.000000e+00> : vector<128xf32>
    %85 = vector.multi_reduction <add>, %82, %cst_106 [0] : vector<256x128xf32> to vector<128xf32>
    %86 = vector.shape_cast %85 : vector<128xf32> to vector<1x128xf32>
    %87 = vector.shape_cast %86 : vector<1x128xf32> to vector<1x1x128xf32>
    %c0_107 = arith.constant 0 : index
    %c0_108 = arith.constant 0 : index
    %c0_109 = arith.constant 0 : index
    %88 = vector.load %arg7[%c0_107, %c0_108, %c0_109] : memref<1x2x128xf32, #tpu.memory_space<vmem>>, vector<1x1x128xf32>
    tpu.vector_store %arg7[%c0_107, %c0_108, %c0_109], %87 {strides = array<i32>} : memref<1x2x128xf32, #tpu.memory_space<vmem>>, vector<1x1x128xf32>,
    %89 = arith.mulf %82, %82 : vector<256x128xf32>
    %cst_110 = arith.constant dense<0.000000e+00> : vector<128xf32>
    %90 = vector.multi_reduction <add>, %89, %cst_110 [0] : vector<256x128xf32> to vector<128xf32>
    %91 = vector.shape_cast %90 : vector<128xf32> to vector<1x128xf32>
    %92 = vector.shape_cast %91 : vector<1x128xf32> to vector<1x1x128xf32>
    %c0_111 = arith.constant 0 : index
    %c1_112 = arith.constant 1 : index
    %c0_113 = arith.constant 0 : index
    %93 = vector.load %arg7[%c0_111, %c1_112, %c0_113] : memref<1x2x128xf32, #tpu.memory_space<vmem>>, vector<1x1x128xf32>
    tpu.vector_store %arg7[%c0_111, %c1_112, %c0_113], %92 {strides = array<i32>} : memref<1x2x128xf32, #tpu.memory_space<vmem>>, vector<1x1x128xf32>,
    return
  }
  func.func @transform_0(%arg0: i32) -> (i32, i32, i32, i32) {
    %c0_i32 = arith.constant 0 : i32
    %c0_i32_0 = arith.constant 0 : i32
    %c0_i32_1 = arith.constant 0 : i32
    %c0_i32_2 = arith.constant 0 : i32
    return %arg0, %c0_i32, %c0_i32_0, %c0_i32_1 : i32, i32, i32, i32
  }
  func.func @transform_1(%arg0: i32) -> (i32, i32) {
    %c0_i32 = arith.constant 0 : i32
    %c0_i32_0 = arith.constant 0 : i32
    %c0_i32_1 = arith.constant 0 : i32
    return %c0_i32, %c0_i32_0 : i32, i32
  }
  func.func @transform_2(%arg0: i32) -> (i32, i32) {
    %c0_i32 = arith.constant 0 : i32
    %c0_i32_0 = arith.constant 0 : i32
    %c0_i32_1 = arith.constant 0 : i32
    return %c0_i32, %c0_i32_0 : i32, i32
  }
  func.func @transform_3(%arg0: i32) -> (i32, i32) {
    %c0_i32 = arith.constant 0 : i32
    %c0_i32_0 = arith.constant 0 : i32
    %c0_i32_1 = arith.constant 0 : i32
    return %c0_i32, %c0_i32_0 : i32, i32
  }
  func.func @transform_4(%arg0: i32) -> (i32, i32, i32) {
    %c0_i32 = arith.constant 0 : i32
    %c0_i32_0 = arith.constant 0 : i32
    %c0_i32_1 = arith.constant 0 : i32
    %c0_i32_2 = arith.constant 0 : i32
    return %c0_i32, %c0_i32_0, %c0_i32_1 : i32, i32, i32
  }
  func.func @transform_5(%arg0: i32) -> (i32, i32, i32, i32) {
    %c0_i32 = arith.constant 0 : i32
    %c0_i32_0 = arith.constant 0 : i32
    %c0_i32_1 = arith.constant 0 : i32
    %c0_i32_2 = arith.constant 0 : i32
    return %arg0, %c0_i32, %c0_i32_0, %c0_i32_1 : i32, i32, i32, i32
  }
  func.func @transform_6(%arg0: i32) -> (i32, i32, i32) {
    %c0_i32 = arith.constant 0 : i32
    %c0_i32_0 = arith.constant 0 : i32
    %c0_i32_1 = arith.constant 0 : i32
    return %arg0, %c0_i32, %c0_i32_0 : i32, i32, i32
  }
}

module attributes {stable_mosaic.version = 11 : i64} {
  func.func @_stats3_kernel(%arg0: i32, %arg1: memref<1x16x16x128xf32, #tpu.memory_space<vmem>>, %arg2: memref<1x128xf32, #tpu.memory_space<vmem>>, %arg3: memref<1x128xf32, #tpu.memory_space<vmem>>, %arg4: memref<128x128xbf16, #tpu.memory_space<vmem>>, %arg5: memref<1x2x128xf32, #tpu.memory_space<vmem>>) attributes {dimension_semantics = [#tpu.dimension_semantics<parallel>], iteration_bounds = array<i64: 2>, scalar_prefetch = 0 : i64, scratch_operands = 0 : i64, tpu.core_type = #tpu.core_type<tc>, window_params = [{transform_indices = @transform_0, window_bounds = array<i64: 1, 16, 16, 128>}, {pipeline_mode = #tpu.pipeline_mode<synchronous>, transform_indices = @transform_1, window_bounds = array<i64: 1, 128>}, {pipeline_mode = #tpu.pipeline_mode<synchronous>, transform_indices = @transform_2, window_bounds = array<i64: 1, 128>}, {pipeline_mode = #tpu.pipeline_mode<synchronous>, transform_indices = @transform_3, window_bounds = array<i64: 128, 128>}, {transform_indices = @transform_4, window_bounds = array<i64: 1, 2, 128>}]} {
    %c0 = arith.constant 0 : index
    %c0_0 = arith.constant 0 : index
    %c0_1 = arith.constant 0 : index
    %c0_2 = arith.constant 0 : index
    %0 = vector.load %arg1[%c0, %c0_0, %c0_1, %c0_2] : memref<1x16x16x128xf32, #tpu.memory_space<vmem>>, vector<1x16x16x128xf32>
    %1 = vector.shape_cast %0 : vector<1x16x16x128xf32> to vector<256x128xf32>
    %c0_3 = arith.constant 0 : index
    %c0_4 = arith.constant 0 : index
    %2 = vector.load %arg2[%c0_3, %c0_4] : memref<1x128xf32, #tpu.memory_space<vmem>>, vector<1x128xf32>
    %3 = vector.broadcast %2 : vector<1x128xf32> to vector<256x128xf32>
    %4 = arith.mulf %1, %3 : vector<256x128xf32>
    %c0_5 = arith.constant 0 : index
    %c0_6 = arith.constant 0 : index
    %5 = vector.load %arg3[%c0_5, %c0_6] : memref<1x128xf32, #tpu.memory_space<vmem>>, vector<1x128xf32>
    %6 = vector.broadcast %5 : vector<1x128xf32> to vector<256x128xf32>
    %7 = arith.addf %4, %6 : vector<256x128xf32>
    %cst = arith.constant 0.000000e+00 : f32
    %8 = vector.broadcast %cst : f32 to vector<256x128xf32>
    %9 = arith.maximumf %7, %8 : vector<256x128xf32>
    %10 = arith.truncf %9 : vector<256x128xf32> to vector<256x128xbf16>
    %c0_7 = arith.constant 0 : index
    %c0_8 = arith.constant 0 : index
    %11 = vector.load %arg4[%c0_7, %c0_8] : memref<128x128xbf16, #tpu.memory_space<vmem>>, vector<128x128xbf16>
    %cst_9 = arith.constant dense<0.000000e+00> : vector<256x128xf32>
    %12 = tpu.matmul %10, %11, %cst_9 {dimension_numbers = #tpu.dot_dimension_numbers<[1], [0], [0], [1], [0, 0, 1, 1], [], []>} : vector<256x128xbf16>, vector<128x128xbf16>, vector<256x128xf32> -> vector<256x128xf32>
    %cst_10 = arith.constant dense<0.000000e+00> : vector<128xf32>
    %13 = vector.multi_reduction <add>, %12, %cst_10 [0] : vector<256x128xf32> to vector<128xf32>
    %14 = vector.shape_cast %13 : vector<128xf32> to vector<1x128xf32>
    %15 = vector.shape_cast %14 : vector<1x128xf32> to vector<1x1x128xf32>
    %c0_11 = arith.constant 0 : index
    %c0_12 = arith.constant 0 : index
    %c0_13 = arith.constant 0 : index
    %16 = vector.load %arg5[%c0_11, %c0_12, %c0_13] : memref<1x2x128xf32, #tpu.memory_space<vmem>>, vector<1x1x128xf32>
    tpu.vector_store %arg5[%c0_11, %c0_12, %c0_13], %15 {strides = array<i32>} : memref<1x2x128xf32, #tpu.memory_space<vmem>>, vector<1x1x128xf32>,
    %17 = arith.mulf %12, %12 : vector<256x128xf32>
    %cst_14 = arith.constant dense<0.000000e+00> : vector<128xf32>
    %18 = vector.multi_reduction <add>, %17, %cst_14 [0] : vector<256x128xf32> to vector<128xf32>
    %19 = vector.shape_cast %18 : vector<128xf32> to vector<1x128xf32>
    %20 = vector.shape_cast %19 : vector<1x128xf32> to vector<1x1x128xf32>
    %c0_15 = arith.constant 0 : index
    %c1 = arith.constant 1 : index
    %c0_16 = arith.constant 0 : index
    %21 = vector.load %arg5[%c0_15, %c1, %c0_16] : memref<1x2x128xf32, #tpu.memory_space<vmem>>, vector<1x1x128xf32>
    tpu.vector_store %arg5[%c0_15, %c1, %c0_16], %20 {strides = array<i32>} : memref<1x2x128xf32, #tpu.memory_space<vmem>>, vector<1x1x128xf32>,
    return
  }
  func.func @transform_0(%arg0: i32) -> (i32, i32, i32, i32) {
    %c0_i32 = arith.constant 0 : i32
    %c0_i32_0 = arith.constant 0 : i32
    %c0_i32_1 = arith.constant 0 : i32
    %c0_i32_2 = arith.constant 0 : i32
    return %arg0, %c0_i32, %c0_i32_0, %c0_i32_1 : i32, i32, i32, i32
  }
  func.func @transform_1(%arg0: i32) -> (i32, i32) {
    %c0_i32 = arith.constant 0 : i32
    %c0_i32_0 = arith.constant 0 : i32
    %c0_i32_1 = arith.constant 0 : i32
    return %c0_i32, %c0_i32_0 : i32, i32
  }
  func.func @transform_2(%arg0: i32) -> (i32, i32) {
    %c0_i32 = arith.constant 0 : i32
    %c0_i32_0 = arith.constant 0 : i32
    %c0_i32_1 = arith.constant 0 : i32
    return %c0_i32, %c0_i32_0 : i32, i32
  }
  func.func @transform_3(%arg0: i32) -> (i32, i32) {
    %c0_i32 = arith.constant 0 : i32
    %c0_i32_0 = arith.constant 0 : i32
    %c0_i32_1 = arith.constant 0 : i32
    return %c0_i32, %c0_i32_0 : i32, i32
  }
  func.func @transform_4(%arg0: i32) -> (i32, i32, i32) {
    %c0_i32 = arith.constant 0 : i32
    %c0_i32_0 = arith.constant 0 : i32
    %c0_i32_1 = arith.constant 0 : i32
    return %arg0, %c0_i32, %c0_i32_0 : i32, i32, i32
  }
}

module attributes {stable_mosaic.version = 11 : i64} {
  func.func @_apply3_kernel(%arg0: i32, %arg1: memref<1x16x16x128xf32, #tpu.memory_space<vmem>>, %arg2: memref<1x128xf32, #tpu.memory_space<vmem>>, %arg3: memref<1x128xf32, #tpu.memory_space<vmem>>, %arg4: memref<128x128xbf16, #tpu.memory_space<vmem>>, %arg5: memref<1x128xf32, #tpu.memory_space<vmem>>, %arg6: memref<1x128xf32, #tpu.memory_space<vmem>>, %arg7: memref<1x16x16x128xbf16, #tpu.memory_space<vmem>>) attributes {dimension_semantics = [#tpu.dimension_semantics<parallel>], iteration_bounds = array<i64: 2>, scalar_prefetch = 0 : i64, scratch_operands = 0 : i64, tpu.core_type = #tpu.core_type<tc>, window_params = [{transform_indices = @transform_0, window_bounds = array<i64: 1, 16, 16, 128>}, {pipeline_mode = #tpu.pipeline_mode<synchronous>, transform_indices = @transform_1, window_bounds = array<i64: 1, 128>}, {pipeline_mode = #tpu.pipeline_mode<synchronous>, transform_indices = @transform_2, window_bounds = array<i64: 1, 128>}, {pipeline_mode = #tpu.pipeline_mode<synchronous>, transform_indices = @transform_3, window_bounds = array<i64: 128, 128>}, {pipeline_mode = #tpu.pipeline_mode<synchronous>, transform_indices = @transform_4, window_bounds = array<i64: 1, 128>}, {pipeline_mode = #tpu.pipeline_mode<synchronous>, transform_indices = @transform_5, window_bounds = array<i64: 1, 128>}, {transform_indices = @transform_6, window_bounds = array<i64: 1, 16, 16, 128>}]} {
    %c0 = arith.constant 0 : index
    %c0_0 = arith.constant 0 : index
    %c0_1 = arith.constant 0 : index
    %c0_2 = arith.constant 0 : index
    %0 = vector.load %arg1[%c0, %c0_0, %c0_1, %c0_2] : memref<1x16x16x128xf32, #tpu.memory_space<vmem>>, vector<1x16x16x128xf32>
    %1 = vector.shape_cast %0 : vector<1x16x16x128xf32> to vector<256x128xf32>
    %c0_3 = arith.constant 0 : index
    %c0_4 = arith.constant 0 : index
    %2 = vector.load %arg2[%c0_3, %c0_4] : memref<1x128xf32, #tpu.memory_space<vmem>>, vector<1x128xf32>
    %3 = vector.broadcast %2 : vector<1x128xf32> to vector<256x128xf32>
    %4 = arith.mulf %1, %3 : vector<256x128xf32>
    %c0_5 = arith.constant 0 : index
    %c0_6 = arith.constant 0 : index
    %5 = vector.load %arg3[%c0_5, %c0_6] : memref<1x128xf32, #tpu.memory_space<vmem>>, vector<1x128xf32>
    %6 = vector.broadcast %5 : vector<1x128xf32> to vector<256x128xf32>
    %7 = arith.addf %4, %6 : vector<256x128xf32>
    %cst = arith.constant 0.000000e+00 : f32
    %8 = vector.broadcast %cst : f32 to vector<256x128xf32>
    %9 = arith.maximumf %7, %8 : vector<256x128xf32>
    %10 = arith.truncf %9 : vector<256x128xf32> to vector<256x128xbf16>
    %c0_7 = arith.constant 0 : index
    %c0_8 = arith.constant 0 : index
    %11 = vector.load %arg4[%c0_7, %c0_8] : memref<128x128xbf16, #tpu.memory_space<vmem>>, vector<128x128xbf16>
    %cst_9 = arith.constant dense<0.000000e+00> : vector<256x128xf32>
    %12 = tpu.matmul %10, %11, %cst_9 {dimension_numbers = #tpu.dot_dimension_numbers<[1], [0], [0], [1], [0, 0, 1, 1], [], []>} : vector<256x128xbf16>, vector<128x128xbf16>, vector<256x128xf32> -> vector<256x128xf32>
    %c0_10 = arith.constant 0 : index
    %c0_11 = arith.constant 0 : index
    %13 = vector.load %arg5[%c0_10, %c0_11] : memref<1x128xf32, #tpu.memory_space<vmem>>, vector<1x128xf32>
    %14 = vector.broadcast %13 : vector<1x128xf32> to vector<256x128xf32>
    %15 = arith.mulf %12, %14 : vector<256x128xf32>
    %c0_12 = arith.constant 0 : index
    %c0_13 = arith.constant 0 : index
    %16 = vector.load %arg6[%c0_12, %c0_13] : memref<1x128xf32, #tpu.memory_space<vmem>>, vector<1x128xf32>
    %17 = vector.broadcast %16 : vector<1x128xf32> to vector<256x128xf32>
    %18 = arith.addf %15, %17 : vector<256x128xf32>
    %cst_14 = arith.constant 0.000000e+00 : f32
    %19 = vector.broadcast %cst_14 : f32 to vector<256x128xf32>
    %20 = arith.maximumf %18, %19 : vector<256x128xf32>
    %21 = vector.shape_cast %20 : vector<256x128xf32> to vector<1x16x16x128xf32>
    %22 = arith.truncf %21 : vector<1x16x16x128xf32> to vector<1x16x16x128xbf16>
    %c0_15 = arith.constant 0 : index
    %c0_16 = arith.constant 0 : index
    %c0_17 = arith.constant 0 : index
    %c0_18 = arith.constant 0 : index
    %23 = vector.load %arg7[%c0_15, %c0_16, %c0_17, %c0_18] : memref<1x16x16x128xbf16, #tpu.memory_space<vmem>>, vector<1x16x16x128xbf16>
    tpu.vector_store %arg7[%c0_15, %c0_16, %c0_17, %c0_18], %22 {strides = array<i32>} : memref<1x16x16x128xbf16, #tpu.memory_space<vmem>>, vector<1x16x16x128xbf16>,
    return
  }
  func.func @transform_0(%arg0: i32) -> (i32, i32, i32, i32) {
    %c0_i32 = arith.constant 0 : i32
    %c0_i32_0 = arith.constant 0 : i32
    %c0_i32_1 = arith.constant 0 : i32
    %c0_i32_2 = arith.constant 0 : i32
    return %arg0, %c0_i32, %c0_i32_0, %c0_i32_1 : i32, i32, i32, i32
  }
  func.func @transform_1(%arg0: i32) -> (i32, i32) {
    %c0_i32 = arith.constant 0 : i32
    %c0_i32_0 = arith.constant 0 : i32
    %c0_i32_1 = arith.constant 0 : i32
    return %c0_i32, %c0_i32_0 : i32, i32
  }
  func.func @transform_2(%arg0: i32) -> (i32, i32) {
    %c0_i32 = arith.constant 0 : i32
    %c0_i32_0 = arith.constant 0 : i32
    %c0_i32_1 = arith.constant 0 : i32
    return %c0_i32, %c0_i32_0 : i32, i32
  }
  func.func @transform_3(%arg0: i32) -> (i32, i32) {
    %c0_i32 = arith.constant 0 : i32
    %c0_i32_0 = arith.constant 0 : i32
    %c0_i32_1 = arith.constant 0 : i32
    return %c0_i32, %c0_i32_0 : i32, i32
  }
  func.func @transform_4(%arg0: i32) -> (i32, i32) {
    %c0_i32 = arith.constant 0 : i32
    %c0_i32_0 = arith.constant 0 : i32
    %c0_i32_1 = arith.constant 0 : i32
    return %c0_i32, %c0_i32_0 : i32, i32
  }
  func.func @transform_5(%arg0: i32) -> (i32, i32) {
    %c0_i32 = arith.constant 0 : i32
    %c0_i32_0 = arith.constant 0 : i32
    %c0_i32_1 = arith.constant 0 : i32
    return %c0_i32, %c0_i32_0 : i32, i32
  }
  func.func @transform_6(%arg0: i32) -> (i32, i32, i32, i32) {
    %c0_i32 = arith.constant 0 : i32
    %c0_i32_0 = arith.constant 0 : i32
    %c0_i32_1 = arith.constant 0 : i32
    %c0_i32_2 = arith.constant 0 : i32
    return %arg0, %c0_i32, %c0_i32_0, %c0_i32_1 : i32, i32, i32, i32
  }
}

</mosaic_0001>

<llo_original>
// kernel: bottleneck_forward.4
$region0: #{bottleneck_forward.4}
  #allocation0 [shape = 'u32[]', space=smem, size = 0x4, offset = 0x4, fixed_abs, tag = 'smem constant byte address 0x4 - core index']
  #allocation1 [shape = 'u32[72,128]{1,0:T(1,128)}', space=vmem, size = 0x9000, scoped, tag = 'internal scratch']
  %s0 = inlined_call_operand.vmem [shape: bf16[2,16,16,128], index: 0, kind: input, shape index: {}]
  %s1 = inlined_call_operand.vmem [shape: bf16[128,128], index: 1, kind: input, shape index: {}]
  %s2 = inlined_call_operand.vmem [shape: f32[2,2,128], index: 2, kind: output, shape index: {}]
  %s3 = sld [smem:[#allocation0]]
  $region41: #{bottleneck_forward.4} parent=0
    _
  %s5 = ssub.s32 1, %s3
  %s6 = scalar_select 0, %s5, %s3
  loop: start=0, step=1, limit=4
  $region2: #{bottleneck_forward.4} parent=0 // loop_pre_header
    _
  $region3: #{bottleneck_forward.4} parent=0 // loop_header
    %s8 = sphi 0, %s12
    %p9 = scmp.ge.s32.totalorder %s8, 4
    %s18 = sphi 0, %s20
    %s21 = sphi 0, %s18
    %s22 = sphi 0, %s21
    %s38 = sphi 0, %s22
    %s42 = sphi 0, %s42
    %s44 = sphi 0, %s42
    %s45 = sphi 0, %s44
    %s59 = sphi 0, %s45
    %s65 = sphi 0, %s67
    %s68 = sphi 0, %s65
    %s69 = sphi 0, %s68
    %s85 = sphi 0, %s69
  $region4: #{bottleneck_forward.4} parent=0 // loop_header_branch
    %11 = sbr.rel (%p9) target = $region8
  $region5: #{bottleneck_forward.4} parent=0 // loop_body
    %s13 = ssub.s32 %s8, 1
    %s14 = ssub.s32 %s8, 2
    %s15 = sadd.s32 %s8, 1
    %s16 = ssub.s32 %s8, %s15
    %p17 = scmp.eq.s32.totalorder %s16, 0
    %s19 = sadd.s32 %s18, 1
    %s20 = scalar_select %p17, %s18, %s19
    %p23 = pneg %p17
    %p24 = scmp.eq.s32.totalorder %s8, 1
    %p25 = por %p23, %p24
    %p26 = scmp.ne.s32.totalorder %s18, %s21
    %p27 = scmp.eq.s32.totalorder %s8, 0
    %p28 = por %p26, %p27
    %p29 = scmp.ne.s32.totalorder %s18, %s21
    %p30 = scmp.eq.s32.totalorder %s13, 1
    %p31 = por %p29, %p30
    %p32 = scmp.ne.s32.totalorder %s21, %s22
    %p33 = scmp.eq.s32.totalorder %s13, 0
    %p34 = por %p32, %p33
    %p35 = scmp.ne.s32.totalorder %s21, %s22
    %p36 = scmp.eq.s32.totalorder %s14, 1
    %p37 = por %p35, %p36
    %p39 = scmp.ne.s32.totalorder %s22, %s38
    %p40 = scmp.eq.s32.totalorder %s14, 0
    %p41 = por %p39, %p40
    %s43 = sadd.s32 %s42, 1
    %p46 = scmp.eq.s32.totalorder %s8, 1
    %p47 = scmp.ne.s32.totalorder %s42, %s44
    %p48 = scmp.eq.s32.totalorder %s8, 0
    %p49 = por %p47, %p48
    %p50 = scmp.ne.s32.totalorder %s42, %s44
    %p51 = scmp.eq.s32.totalorder %s13, 1
    %p52 = por %p50, %p51
    %p53 = scmp.ne.s32.totalorder %s44, %s45
    %p54 = scmp.eq.s32.totalorder %s13, 0
    %p55 = por %p53, %p54
    %p56 = scmp.ne.s32.totalorder %s44, %s45
    %p57 = scmp.eq.s32.totalorder %s14, 1
    %p58 = por %p56, %p57
    %p60 = scmp.ne.s32.totalorder %s45, %s59
    %p61 = scmp.eq.s32.totalorder %s14, 0
    %p62 = por %p60, %p61
    %s63 = ssub.s32 %s8, %s15
    %p64 = scmp.eq.s32.totalorder %s63, 0
    %s66 = sadd.s32 %s65, 1
    %s67 = scalar_select %p64, %s65, %s66
    %p70 = pneg %p64
    %p71 = scmp.eq.s32.totalorder %s8, 1
    %p72 = por %p70, %p71
    %p73 = scmp.ne.s32.totalorder %s65, %s68
    %p74 = scmp.eq.s32.totalorder %s8, 0
    %p75 = por %p73, %p74
    %p76 = scmp.ne.s32.totalorder %s65, %s68
    %p77 = scmp.eq.s32.totalorder %s13, 1
    %p78 = por %p76, %p77
    %p79 = scmp.ne.s32.totalorder %s68, %s69
    %p80 = scmp.eq.s32.totalorder %s13, 0
    %p81 = por %p79, %p80
    %p82 = scmp.ne.s32.totalorder %s68, %s69
    %p83 = scmp.eq.s32.totalorder %s14, 1
    %p84 = por %p82, %p83
    %p86 = scmp.ne.s32.totalorder %s69, %s85
    %p87 = scmp.eq.s32.totalorder %s14, 0
    %p88 = por %p86, %p87
    %p89 = scmp.le.s32.totalorder 1, %s8
    %p90 = scmp.lt.s32.totalorder %s8, 3
    %p91 = pnand %p89, %p90
    %p92 = pneg %p91
    // Predicated region
    $region9: #{bottleneck_forward.4} parent=5 // pred_check
      _
    $region10: #{bottleneck_forward.4} parent=5 // pred_check_branch
      %94 = sbr.rel (%p91) target = $region12
    $region11: #{bottleneck_forward.4} parent=5 // pred_region
      %s95 = ssub.s32 %s8, 1
      // Predicated region
      $region13: #{bottleneck_forward.4} parent=11 // pred_check
        %p96 = pneg %p55
      $region14: #{bottleneck_forward.4} parent=11 // pred_check_branch
        %98 = sbr.rel (%p96) target = $region16
      $region15: #{bottleneck_forward.4} parent=11 // pred_region
        _
      $region16: #{bottleneck_forward.4} parent=11 // pred_fallthru
        _
    $region12: #{bottleneck_forward.4} parent=5 // pred_fallthru
      _
    %p99 = scmp.lt.s32.totalorder %s8, 2
    // Predicated region
    $region17: #{bottleneck_forward.4} parent=5 // pred_check
      %p100 = pneg %p99
    $region18: #{bottleneck_forward.4} parent=5 // pred_check_branch
      %102 = sbr.rel (%p100) target = $region20
    $region19: #{bottleneck_forward.4} parent=5 // pred_region
      // Predicated region
      $region21: #{bottleneck_forward.4} parent=19 // pred_check
        %p103 = pneg %p28
      $region22: #{bottleneck_forward.4} parent=19 // pred_check_branch
        %105 = sbr.rel (%p103) target = $region24
      $region23: #{bottleneck_forward.4} parent=19 // pred_region
        %p106 = scmp.lt.s32.totalorder %s8, 1
        %s107 = scalar_select %p106, %s8, 1
        %s108 = smul.addr %s107, 32
        %s109 = smul.addr %s108, 4
        %s110 = scalar_lea.vmem %s0, %s109
      $region24: #{bottleneck_forward.4} parent=19 // pred_fallthru
        _
    $region20: #{bottleneck_forward.4} parent=5 // pred_fallthru
      _
    %p111 = scmp.le.s32.totalorder 1, %s8
    %p112 = scmp.lt.s32.totalorder %s8, 3
    %p113 = pnand %p111, %p112
    %p114 = pneg %p113
    // Predicated region
    $region25: #{bottleneck_forward.4} parent=5 // pred_check
      _
    $region26: #{bottleneck_forward.4} parent=5 // pred_check_branch
      %116 = sbr.rel (%p113) target = $region28
    $region27: #{bottleneck_forward.4} parent=5 // pred_region
      %s117 = ssub.s32 %s8, 1
      %p118 = scmp.lt.s32.totalorder %s13, 1
      %s119 = scalar_select %p118, %s13, 1
      %s120 = smul.addr %s119, 32
      %s121 = smul.addr %s120, 4
      %s122 = scalar_lea.vmem %s0, %s121
      %p123 = pneg %p34
      %p124 = pneg %p31
      %p125 = pneg %p55
      %p126 = pneg %p52
      %p127 = pneg %p81
      %p128 = pneg %p78
      %p129 = scmp.lt.s32.totalorder %s13, 1
      %s130 = scalar_select %p129, %s13, 1
      %s131 = smul.addr %s130, 2
      %s132 = scalar_lea.vmem %s2, %s131
      %p133 = scmp.lt.s32.totalorder %s13, 1
      %s134 = scalar_select %p133, %s13, 1
      %s135 = smul.addr %s134, 32
      %s136 = smul.addr %s135, 4
      %s137 = scalar_lea.vmem %s0, %s136
      %p138 = scmp.lt.s32.totalorder %s13, 1
      %s139 = scalar_select %p138, %s13, 1
      %s140 = smul.addr %s139, 2
      %s141 = scalar_lea.vmem %s2, %s140
      %v142 = vld [vmem:[%s137] sm:$0xf]
      %v143 = vld [vmem:[%s137 + $0x4] sm:$0xf]
      %v144 = vld [vmem:[%s137 + $0x8] sm:$0xf]
      %v145 = vld [vmem:[%s137 + $0xc] sm:$0xf]
      %v146 = vld [vmem:[%s137 + $0x10] sm:$0xf]
      %v147 = vld [vmem:[%s137 + $0x14] sm:$0xf]
      %v148 = vld [vmem:[%s137 + $0x18] sm:$0xf]
      %v149 = vld [vmem:[%s137 + $0x1c] sm:$0xf]
      %v150 = vld [vmem:[%s137 + $0x20] sm:$0xf]
      %v151 = vld [vmem:[%s137 + $0x24] sm:$0xf]
      %v152 = vld [vmem:[%s137 + $0x28] sm:$0xf]
      %v153 = vld [vmem:[%s137 + $0x2c] sm:$0xf]
      %v154 = vld [vmem:[%s137 + $0x30] sm:$0xf]
      %v155 = vld [vmem:[%s137 + $0x34] sm:$0xf]
      %v156 = vld [vmem:[%s137 + $0x38] sm:$0xf]
      %v157 = vld [vmem:[%s137 + $0x3c] sm:$0xf]
      %v158 = vld [vmem:[%s137 + $0x40] sm:$0xf]
      %v159 = vld [vmem:[%s137 + $0x44] sm:$0xf]
      %v160 = vld [vmem:[%s137 + $0x48] sm:$0xf]
      %v161 = vld [vmem:[%s137 + $0x4c] sm:$0xf]
      %v162 = vld [vmem:[%s137 + $0x50] sm:$0xf]
      %v163 = vld [vmem:[%s137 + $0x54] sm:$0xf]
      %v164 = vld [vmem:[%s137 + $0x58] sm:$0xf]
      %v165 = vld [vmem:[%s137 + $0x5c] sm:$0xf]
      %v166 = vld [vmem:[%s137 + $0x60] sm:$0xf]
      %v167 = vld [vmem:[%s137 + $0x64] sm:$0xf]
      %v168 = vld [vmem:[%s137 + $0x68] sm:$0xf]
      %v169 = vld [vmem:[%s137 + $0x6c] sm:$0xf]
      %v170 = vld [vmem:[%s137 + $0x70] sm:$0xf]
      %v171 = vld [vmem:[%s137 + $0x74] sm:$0xf]
      %v172 = vld [vmem:[%s137 + $0x78] sm:$0xf]
      %v173 = vld [vmem:[%s137 + $0x7c] sm:$0xf]
      %v174 = vld [vmem:[%s1] sm:$0xf]
      %v175 = vld [vmem:[%s1 + $0x4] sm:$0xf]
      %v176 = vld [vmem:[%s1 + $0x8] sm:$0xf]
      %v177 = vld [vmem:[%s1 + $0xc] sm:$0xf]
      %v178 = vld [vmem:[%s1 + $0x10] sm:$0xf]
      %v179 = vld [vmem:[%s1 + $0x14] sm:$0xf]
      %v180 = vld [vmem:[%s1 + $0x18] sm:$0xf]
      %v181 = vld [vmem:[%s1 + $0x1c] sm:$0xf]
      %v182 = vld [vmem:[%s1 + $0x20] sm:$0xf]
      %v183 = vld [vmem:[%s1 + $0x24] sm:$0xf]
      %v184 = vld [vmem:[%s1 + $0x28] sm:$0xf]
      %v185 = vld [vmem:[%s1 + $0x2c] sm:$0xf]
      %v186 = vld [vmem:[%s1 + $0x30] sm:$0xf]
      %v187 = vld [vmem:[%s1 + $0x34] sm:$0xf]
      %v188 = vld [vmem:[%s1 + $0x38] sm:$0xf]
      %v189 = vld [vmem:[%s1 + $0x3c] sm:$0xf]
      %v222 = vunpack.c.l.b16 %v142
      %v223 = vunpack.c.l.b16 %v143
      %v224 = vunpack.c.l.b16 %v144
      %v225 = vunpack.c.l.b16 %v145
      %v226 = vunpack.c.l.b16 %v146
      %v227 = vunpack.c.l.b16 %v147
      %v228 = vunpack.c.l.b16 %v148
      %v229 = vunpack.c.l.b16 %v149
      %v230 = vunpack.c.l.b16 %v150
      %v231 = vunpack.c.l.b16 %v151
      %v232 = vunpack.c.l.b16 %v152
      %v233 = vunpack.c.l.b16 %v153
      %v234 = vunpack.c.l.b16 %v154
      %v235 = vunpack.c.l.b16 %v155
      %v236 = vunpack.c.l.b16 %v156
      %v237 = vunpack.c.l.b16 %v157
      %v238 = vunpack.c.l.b16 %v158
      %v239 = vunpack.c.l.b16 %v159
      %v240 = vunpack.c.l.b16 %v160
      %v241 = vunpack.c.l.b16 %v161
      %v242 = vunpack.c.l.b16 %v162
      %v243 = vunpack.c.l.b16 %v163
      %v244 = vunpack.c.l.b16 %v164
      %v245 = vunpack.c.l.b16 %v165
      %v246 = vunpack.c.l.b16 %v166
      %v247 = vunpack.c.l.b16 %v167
      %v248 = vunpack.c.l.b16 %v168
      %v249 = vunpack.c.l.b16 %v169
      %v250 = vunpack.c.l.b16 %v170
      %v251 = vunpack.c.l.b16 %v171
      %v252 = vunpack.c.l.b16 %v172
      %v253 = vunpack.c.l.b16 %v173
      %v254 = vpack.c.b16 %v223, %v222
      %v255 = vpack.c.b16 %v225, %v224
      %v256 = vpack.c.b16 %v227, %v226
      %v257 = vpack.c.b16 %v229, %v228
      %v258 = vpack.c.b16 %v231, %v230
      %v259 = vpack.c.b16 %v233, %v232
      %v260 = vpack.c.b16 %v235, %v234
      %v261 = vpack.c.b16 %v237, %v236
      %v262 = vpack.c.b16 %v239, %v238
      %v263 = vpack.c.b16 %v241, %v240
      %v264 = vpack.c.b16 %v243, %v242
      %v265 = vpack.c.b16 %v245, %v244
      %v266 = vpack.c.b16 %v247, %v246
      %v267 = vpack.c.b16 %v249, %v248
      %v268 = vpack.c.b16 %v251, %v250
      %v269 = vpack.c.b16 %v253, %v252
      %v302 = vunpack.c.l.b16 %v174
      %v303 = vunpack.c.l.b16 %v175
      %v304 = vunpack.c.l.b16 %v176
      %v305 = vunpack.c.l.b16 %v177
      %v306 = vunpack.c.l.b16 %v178
      %v307 = vunpack.c.l.b16 %v179
      %v308 = vunpack.c.l.b16 %v180
      %v309 = vunpack.c.l.b16 %v181
      %v310 = vunpack.c.l.b16 %v182
      %v311 = vunpack.c.l.b16 %v183
      %v312 = vunpack.c.l.b16 %v184
      %v313 = vunpack.c.l.b16 %v185
      %v314 = vunpack.c.l.b16 %v186
      %v315 = vunpack.c.l.b16 %v187
      %v316 = vunpack.c.l.b16 %v188
      %v317 = vunpack.c.l.b16 %v189
      %v318 = vpack.c.b16 %v303, %v302
      %v319 = vpack.c.b16 %v305, %v304
      %v320 = vpack.c.b16 %v307, %v306
      %v321 = vpack.c.b16 %v309, %v308
      %v322 = vpack.c.b16 %v311, %v310
      %v323 = vpack.c.b16 %v313, %v312
      %v324 = vpack.c.b16 %v315, %v314
      %v325 = vpack.c.b16 %v317, %v316
      %334 = vmatpush.bf16.msra.mxu0 %v325
      %335 = vmatpush.bf16.msra.mxu0 %v324
      %336 = vmatpush.bf16.msra.mxu0 %v323
      %337 = vmatpush.bf16.msra.mxu0 %v322
      %338 = vmatpush.bf16.msra.mxu0 %v321
      %339 = vmatpush.bf16.msra.mxu0 %v320
      %340 = vmatpush.bf16.msra.mxu0 %v319
      %341 = vmatpush.bf16.msra.mxu0 %v318
      %342 = vmatmul.bf16.gmra.mxu0 %v254
      %v343 = vpop.f32.mrf.mxu0
      %v344 = vadd.f32 0.0, %v343
      %v345 = vpop.f32.mrf.mxu0
      %v346 = vadd.f32 0.0, %v345
      %347 = vmatmul.bf16.gmra.mxu0 %v255
      %v348 = vpop.f32.mrf.mxu0
      %v349 = vadd.f32 0.0, %v348
      %v350 = vpop.f32.mrf.mxu0
      %v351 = vadd.f32 0.0, %v350
      %352 = vmatmul.bf16.gmra.mxu0 %v256
      %v353 = vpop.f32.mrf.mxu0
      %v354 = vadd.f32 0.0, %v353
      %v355 = vpop.f32.mrf.mxu0
      %v356 = vadd.f32 0.0, %v355
      %357 = vmatmul.bf16.gmra.mxu0 %v257
      %v358 = vpop.f32.mrf.mxu0
      %v359 = vadd.f32 0.0, %v358
      %v360 = vpop.f32.mrf.mxu0
      %v361 = vadd.f32 0.0, %v360
      %362 = vmatmul.bf16.gmra.mxu0 %v258
      %v363 = vpop.f32.mrf.mxu0
      %v364 = vadd.f32 0.0, %v363
      %v365 = vpop.f32.mrf.mxu0
      %v366 = vadd.f32 0.0, %v365
      %367 = vmatmul.bf16.gmra.mxu0 %v259
      %v368 = vpop.f32.mrf.mxu0
      %v369 = vadd.f32 0.0, %v368
      %v370 = vpop.f32.mrf.mxu0
      %v371 = vadd.f32 0.0, %v370
      %372 = vmatmul.bf16.gmra.mxu0 %v260
      %v373 = vpop.f32.mrf.mxu0
      %v374 = vadd.f32 0.0, %v373
      %v375 = vpop.f32.mrf.mxu0
      %v376 = vadd.f32 0.0, %v375
      %377 = vmatmul.bf16.gmra.mxu0 %v261
      %v378 = vpop.f32.mrf.mxu0
      %v379 = vadd.f32 0.0, %v378
      %v380 = vpop.f32.mrf.mxu0
      %v381 = vadd.f32 0.0, %v380
      %382 = vmatmul.bf16.gmra.mxu0 %v262
      %v383 = vpop.f32.mrf.mxu0
      %v384 = vadd.f32 0.0, %v383
      %v385 = vpop.f32.mrf.mxu0
      %v386 = vadd.f32 0.0, %v385
      %387 = vmatmul.bf16.gmra.mxu0 %v263
      %v388 = vpop.f32.mrf.mxu0
      %v389 = vadd.f32 0.0, %v388
      %v390 = vpop.f32.mrf.mxu0
      %v391 = vadd.f32 0.0, %v390
      %392 = vmatmul.bf16.gmra.mxu0 %v264
      %v393 = vpop.f32.mrf.mxu0
      %v394 = vadd.f32 0.0, %v393
      %v395 = vpop.f32.mrf.mxu0
      %v396 = vadd.f32 0.0, %v395
      %397 = vmatmul.bf16.gmra.mxu0 %v265
      %v398 = vpop.f32.mrf.mxu0
      %v399 = vadd.f32 0.0, %v398
      %v400 = vpop.f32.mrf.mxu0
      %v401 = vadd.f32 0.0, %v400
      %402 = vmatmul.bf16.gmra.mxu0 %v266
      %v403 = vpop.f32.mrf.mxu0
      %v404 = vadd.f32 0.0, %v403
      %v405 = vpop.f32.mrf.mxu0
      %v406 = vadd.f32 0.0, %v405
      %407 = vmatmul.bf16.gmra.mxu0 %v267
      %v408 = vpop.f32.mrf.mxu0
      %v409 = vadd.f32 0.0, %v408
      %v410 = vpop.f32.mrf.mxu0
      %v411 = vadd.f32 0.0, %v410
      %412 = vmatmul.bf16.gmra.mxu0 %v268
      %v413 = vpop.f32.mrf.mxu0
      %v414 = vadd.f32 0.0, %v413
      %v415 = vpop.f32.mrf.mxu0
      %v416 = vadd.f32 0.0, %v415
      %417 = vmatmul.bf16.gmra.mxu0 %v269
      %v418 = vpop.f32.mrf.mxu0
      %v419 = vadd.f32 0.0, %v418
      %v420 = vpop.f32.mrf.mxu0
      %v421 = vadd.f32 0.0, %v420
      %422 = vdwg.mxu0
      %v423 = vadd.f32 %v344, %v346
      %v424 = vadd.f32 %v423, %v349
      %v425 = vadd.f32 %v424, %v351
      %v426 = vadd.f32 %v425, %v354
      %v427 = vadd.f32 %v426, %v356
      %v428 = vadd.f32 %v427, %v359
      %v429 = vadd.f32 %v428, %v361
      %v430 = vadd.f32 %v429, %v364
      %v431 = vadd.f32 %v430, %v366
      %v432 = vadd.f32 %v431, %v369
      %v433 = vadd.f32 %v432, %v371
      %v434 = vadd.f32 %v433, %v374
      %v435 = vadd.f32 %v434, %v376
      %v436 = vadd.f32 %v435, %v379
      %v437 = vadd.f32 %v436, %v381
      %v438 = vadd.f32 %v437, %v384
      %v439 = vadd.f32 %v438, %v386
      %v440 = vadd.f32 %v439, %v389
      %v441 = vadd.f32 %v440, %v391
      %v442 = vadd.f32 %v441, %v394
      %v443 = vadd.f32 %v442, %v396
      %v444 = vadd.f32 %v443, %v399
      %v445 = vadd.f32 %v444, %v401
      %v446 = vadd.f32 %v445, %v404
      %v447 = vadd.f32 %v446, %v406
      %v448 = vadd.f32 %v447, %v409
      %v449 = vadd.f32 %v448, %v411
      %v450 = vadd.f32 %v449, %v414
      %v451 = vadd.f32 %v450, %v416
      %v452 = vadd.f32 %v451, %v419
      %v453 = vadd.f32 %v452, %v421
      %v454 = vrot.slane %v453, 4
      %v455 = vadd.f32 %v453, %v454
      %v456 = vrot.slane %v455, 2
      %v457 = vadd.f32 %v455, %v456
      %v458 = vrot.slane %v457, 1
      %v459 = vadd.f32 %v457, %v458
      %460 = vst [vmem:[%s141] sm:$0x1] %v459
      %v461 = vmul.f32 %v344, %v344
      %v462 = vmul.f32 %v346, %v346
      %v463 = vmul.f32 %v349, %v349
      %v464 = vmul.f32 %v351, %v351
      %v465 = vmul.f32 %v354, %v354
      %v466 = vmul.f32 %v356, %v356
      %v467 = vmul.f32 %v359, %v359
      %v468 = vmul.f32 %v361, %v361
      %v469 = vmul.f32 %v364, %v364
      %v470 = vmul.f32 %v366, %v366
      %v471 = vmul.f32 %v369, %v369
      %v472 = vmul.f32 %v371, %v371
      %v473 = vmul.f32 %v374, %v374
      %v474 = vmul.f32 %v376, %v376
      %v475 = vmul.f32 %v379, %v379
      %v476 = vmul.f32 %v381, %v381
      %v477 = vmul.f32 %v384, %v384
      %v478 = vmul.f32 %v386, %v386
      %v479 = vmul.f32 %v389, %v389
      %v480 = vmul.f32 %v391, %v391
      %v481 = vmul.f32 %v394, %v394
      %v482 = vmul.f32 %v396, %v396
      %v483 = vmul.f32 %v399, %v399
      %v484 = vmul.f32 %v401, %v401
      %v485 = vmul.f32 %v404, %v404
      %v486 = vmul.f32 %v406, %v406
      %v487 = vmul.f32 %v409, %v409
      %v488 = vmul.f32 %v411, %v411
      %v489 = vmul.f32 %v414, %v414
      %v490 = vmul.f32 %v416, %v416
      %v491 = vmul.f32 %v419, %v419
      %v492 = vmul.f32 %v421, %v421
      %v493 = vadd.f32 %v461, %v462
      %v494 = vadd.f32 %v493, %v463
      %v495 = vadd.f32 %v494, %v464
      %v496 = vadd.f32 %v495, %v465
      %v497 = vadd.f32 %v496, %v466
      %v498 = vadd.f32 %v497, %v467
      %v499 = vadd.f32 %v498, %v468
      %v500 = vadd.f32 %v499, %v469
      %v501 = vadd.f32 %v500, %v470
      %v502 = vadd.f32 %v501, %v471
      %v503 = vadd.f32 %v502, %v472
      %v504 = vadd.f32 %v503, %v473
      %v505 = vadd.f32 %v504, %v474
      %v506 = vadd.f32 %v505, %v475
      %v507 = vadd.f32 %v506, %v476
      %v508 = vadd.f32 %v507, %v477
      %v509 = vadd.f32 %v508, %v478
      %v510 = vadd.f32 %v509, %v479
      %v511 = vadd.f32 %v510, %v480
      %v512 = vadd.f32 %v511, %v481
      %v513 = vadd.f32 %v512, %v482
      %v514 = vadd.f32 %v513, %v483
      %v515 = vadd.f32 %v514, %v484
      %v516 = vadd.f32 %v515, %v485
      %v517 = vadd.f32 %v516, %v486
      %v518 = vadd.f32 %v517, %v487
      %v519 = vadd.f32 %v518, %v488
      %v520 = vadd.f32 %v519, %v489
      %v521 = vadd.f32 %v520, %v490
      %v522 = vadd.f32 %v521, %v491
      %v523 = vadd.f32 %v522, %v492
      %v524 = vrot.slane %v523, 4
      %v525 = vadd.f32 %v523, %v524
      %v526 = vrot.slane %v525, 2
      %v527 = vadd.f32 %v525, %v526
      %v528 = vrot.slane %v527, 1
      %v529 = vadd.f32 %v527, %v528
      %530 = vst [vmem:[%s141 + $0x1] sm:$0x1] %v529
      %p531 = scmp.lt.s32.totalorder %s13, 1
      %s532 = scalar_select %p531, %s13, 1
      %s533 = smul.addr %s532, 2
      %s534 = scalar_lea.vmem %s2, %s533
      // Predicated region
      $region29: #{bottleneck_forward.4} parent=27 // pred_check
        %p535 = pneg %p78
      $region30: #{bottleneck_forward.4} parent=27 // pred_check_branch
        %537 = sbr.rel (%p535) target = $region32
      $region31: #{bottleneck_forward.4} parent=27 // pred_region
        _
      $region32: #{bottleneck_forward.4} parent=27 // pred_fallthru
        _
    $region28: #{bottleneck_forward.4} parent=5 // pred_fallthru
      _
    %p538 = scmp.le.s32.totalorder 2, %s8
    // Predicated region
    $region33: #{bottleneck_forward.4} parent=5 // pred_check
      %p539 = pneg %p538
    $region34: #{bottleneck_forward.4} parent=5 // pred_check_branch
      %541 = sbr.rel (%p539) target = $region36
    $region35: #{bottleneck_forward.4} parent=5 // pred_region
      %s542 = ssub.s32 %s8, 2
      // Predicated region
      $region37: #{bottleneck_forward.4} parent=35 // pred_check
        %p543 = pneg %p84
      $region38: #{bottleneck_forward.4} parent=35 // pred_check_branch
        %545 = sbr.rel (%p543) target = $region40
      $region39: #{bottleneck_forward.4} parent=35 // pred_region
        %p546 = scmp.lt.s32.totalorder %s14, 1
        %s547 = scalar_select %p546, %s14, 1
        %s548 = smul.addr %s547, 2
        %s549 = scalar_lea.vmem %s2, %s548
      $region40: #{bottleneck_forward.4} parent=35 // pred_fallthru
        _
    $region36: #{bottleneck_forward.4} parent=5 // pred_fallthru
      _
  $region6: #{bottleneck_forward.4} parent=0 // loop_footer
    %s12 = sadd.s32 1, %s8
  $region7: #{bottleneck_forward.4} parent=0 // loop_footer_branch
    %7 = sbr.rel target = $region3
  $region8: #{bottleneck_forward.4} parent=0 // loop_exit
    _

// kernel: bottleneck_forward.6
$region0: #{bottleneck_forward.6}
  #allocation0 [shape = 'u32[]', space=smem, size = 0x4, offset = 0x4, fixed_abs, tag = 'smem constant byte address 0x4 - core index']
  #allocation1 [shape = 'u32[72,128]{1,0:T(1,128)}', space=vmem, size = 0x9000, scoped, tag = 'internal scratch']
  %s0 = inlined_call_operand.vmem [shape: f32[2,16,16,128], index: 0, kind: input, shape index: {}]
  %s1 = inlined_call_operand.vmem [shape: f32[1,128], index: 1, kind: input, shape index: {}]
  %s2 = inlined_call_operand.vmem [shape: f32[1,128], index: 2, kind: input, shape index: {}]
  %s3 = inlined_call_operand.vmem [shape: bf16[128,128], index: 3, kind: input, shape index: {}]
  %s4 = inlined_call_operand.vmem [shape: f32[2,2,128], index: 4, kind: output, shape index: {}]
  %s5 = sld [smem:[#allocation0]]
  $region49: #{bottleneck_forward.6} parent=0
    _
  %s7 = ssub.s32 1, %s5
  %s8 = scalar_select 0, %s7, %s5
  loop: start=0, step=1, limit=4
  $region2: #{bottleneck_forward.6} parent=0 // loop_pre_header
    _
  $region3: #{bottleneck_forward.6} parent=0 // loop_header
    %s10 = sphi 0, %s14
    %p11 = scmp.ge.s32.totalorder %s10, 4
    %s20 = sphi 0, %s22
    %s23 = sphi 0, %s20
    %s24 = sphi 0, %s23
    %s40 = sphi 0, %s24
    %s44 = sphi 0, %s44
    %s46 = sphi 0, %s44
    %s47 = sphi 0, %s46
    %s61 = sphi 0, %s47
    %s65 = sphi 0, %s65
    %s67 = sphi 0, %s65
    %s68 = sphi 0, %s67
    %s82 = sphi 0, %s68
    %s86 = sphi 0, %s86
    %s88 = sphi 0, %s86
    %s89 = sphi 0, %s88
    %s103 = sphi 0, %s89
    %s109 = sphi 0, %s111
    %s112 = sphi 0, %s109
    %s113 = sphi 0, %s112
    %s129 = sphi 0, %s113
  $region4: #{bottleneck_forward.6} parent=0 // loop_header_branch
    %13 = sbr.rel (%p11) target = $region8
  $region5: #{bottleneck_forward.6} parent=0 // loop_body
    %s15 = ssub.s32 %s10, 1
    %s16 = ssub.s32 %s10, 2
    %s17 = sadd.s32 %s10, 1
    %s18 = ssub.s32 %s10, %s17
    %p19 = scmp.eq.s32.totalorder %s18, 0
    %s21 = sadd.s32 %s20, 1
    %s22 = scalar_select %p19, %s20, %s21
    %p25 = pneg %p19
    %p26 = scmp.eq.s32.totalorder %s10, 1
    %p27 = por %p25, %p26
    %p28 = scmp.ne.s32.totalorder %s20, %s23
    %p29 = scmp.eq.s32.totalorder %s10, 0
    %p30 = por %p28, %p29
    %p31 = scmp.ne.s32.totalorder %s20, %s23
    %p32 = scmp.eq.s32.totalorder %s15, 1
    %p33 = por %p31, %p32
    %p34 = scmp.ne.s32.totalorder %s23, %s24
    %p35 = scmp.eq.s32.totalorder %s15, 0
    %p36 = por %p34, %p35
    %p37 = scmp.ne.s32.totalorder %s23, %s24
    %p38 = scmp.eq.s32.totalorder %s16, 1
    %p39 = por %p37, %p38
    %p41 = scmp.ne.s32.totalorder %s24, %s40
    %p42 = scmp.eq.s32.totalorder %s16, 0
    %p43 = por %p41, %p42
    %s45 = sadd.s32 %s44, 1
    %p48 = scmp.eq.s32.totalorder %s10, 1
    %p49 = scmp.ne.s32.totalorder %s44, %s46
    %p50 = scmp.eq.s32.totalorder %s10, 0
    %p51 = por %p49, %p50
    %p52 = scmp.ne.s32.totalorder %s44, %s46
    %p53 = scmp.eq.s32.totalorder %s15, 1
    %p54 = por %p52, %p53
    %p55 = scmp.ne.s32.totalorder %s46, %s47
    %p56 = scmp.eq.s32.totalorder %s15, 0
    %p57 = por %p55, %p56
    %p58 = scmp.ne.s32.totalorder %s46, %s47
    %p59 = scmp.eq.s32.totalorder %s16, 1
    %p60 = por %p58, %p59
    %p62 = scmp.ne.s32.totalorder %s47, %s61
    %p63 = scmp.eq.s32.totalorder %s16, 0
    %p64 = por %p62, %p63
    %s66 = sadd.s32 %s65, 1
    %p69 = scmp.eq.s32.totalorder %s10, 1
    %p70 = scmp.ne.s32.totalorder %s65, %s67
    %p71 = scmp.eq.s32.totalorder %s10, 0
    %p72 = por %p70, %p71
    %p73 = scmp.ne.s32.totalorder %s65, %s67
    %p74 = scmp.eq.s32.totalorder %s15, 1
    %p75 = por %p73, %p74
    %p76 = scmp.ne.s32.totalorder %s67, %s68
    %p77 = scmp.eq.s32.totalorder %s15, 0
    %p78 = por %p76, %p77
    %p79 = scmp.ne.s32.totalorder %s67, %s68
    %p80 = scmp.eq.s32.totalorder %s16, 1
    %p81 = por %p79, %p80
    %p83 = scmp.ne.s32.totalorder %s68, %s82
    %p84 = scmp.eq.s32.totalorder %s16, 0
    %p85 = por %p83, %p84
    %s87 = sadd.s32 %s86, 1
    %p90 = scmp.eq.s32.totalorder %s10, 1
    %p91 = scmp.ne.s32.totalorder %s86, %s88
    %p92 = scmp.eq.s32.totalorder %s10, 0
    %p93 = por %p91, %p92
    %p94 = scmp.ne.s32.totalorder %s86, %s88
    %p95 = scmp.eq.s32.totalorder %s15, 1
    %p96 = por %p94, %p95
    %p97 = scmp.ne.s32.totalorder %s88, %s89
    %p98 = scmp.eq.s32.totalorder %s15, 0
    %p99 = por %p97, %p98
    %p100 = scmp.ne.s32.totalorder %s88, %s89
    %p101 = scmp.eq.s32.totalorder %s16, 1
    %p102 = por %p100, %p101
    %p104 = scmp.ne.s32.totalorder %s89, %s103
    %p105 = scmp.eq.s32.totalorder %s16, 0
    %p106 = por %p104, %p105
    %s107 = ssub.s32 %s10, %s17
    %p108 = scmp.eq.s32.totalorder %s107, 0
    %s110 = sadd.s32 %s109, 1
    %s111 = scalar_select %p108, %s109, %s110
    %p114 = pneg %p108
    %p115 = scmp.eq.s32.totalorder %s10, 1
    %p116 = por %p114, %p115
    %p117 = scmp.ne.s32.totalorder %s109, %s112
    %p118 = scmp.eq.s32.totalorder %s10, 0
    %p119 = por %p117, %p118
    %p120 = scmp.ne.s32.totalorder %s109, %s112
    %p121 = scmp.eq.s32.totalorder %s15, 1
    %p122 = por %p120, %p121
    %p123 = scmp.ne.s32.totalorder %s112, %s113
    %p124 = scmp.eq.s32.totalorder %s15, 0
    %p125 = por %p123, %p124
    %p126 = scmp.ne.s32.totalorder %s112, %s113
    %p127 = scmp.eq.s32.totalorder %s16, 1
    %p128 = por %p126, %p127
    %p130 = scmp.ne.s32.totalorder %s113, %s129
    %p131 = scmp.eq.s32.totalorder %s16, 0
    %p132 = por %p130, %p131
    %p133 = scmp.le.s32.totalorder 1, %s10
    %p134 = scmp.lt.s32.totalorder %s10, 3
    %p135 = pnand %p133, %p134
    %p136 = pneg %p135
    // Predicated region
    $region9: #{bottleneck_forward.6} parent=5 // pred_check
      _
    $region10: #{bottleneck_forward.6} parent=5 // pred_check_branch
      %138 = sbr.rel (%p135) target = $region12
    $region11: #{bottleneck_forward.6} parent=5 // pred_region
      %s139 = ssub.s32 %s10, 1
      // Predicated region
      $region13: #{bottleneck_forward.6} parent=11 // pred_check
        %p140 = pneg %p57
      $region14: #{bottleneck_forward.6} parent=11 // pred_check_branch
        %142 = sbr.rel (%p140) target = $region16
      $region15: #{bottleneck_forward.6} parent=11 // pred_region
        _
      $region16: #{bottleneck_forward.6} parent=11 // pred_fallthru
        _
      // Predicated region
      $region17: #{bottleneck_forward.6} parent=11 // pred_check
        %p143 = pneg %p78
      $region18: #{bottleneck_forward.6} parent=11 // pred_check_branch
        %145 = sbr.rel (%p143) target = $region20
      $region19: #{bottleneck_forward.6} parent=11 // pred_region
        _
      $region20: #{bottleneck_forward.6} parent=11 // pred_fallthru
        _
      // Predicated region
      $region21: #{bottleneck_forward.6} parent=11 // pred_check
        %p146 = pneg %p99
      $region22: #{bottleneck_forward.6} parent=11 // pred_check_branch
        %148 = sbr.rel (%p146) target = $region24
      $region23: #{bottleneck_forward.6} parent=11 // pred_region
        _
      $region24: #{bottleneck_forward.6} parent=11 // pred_fallthru
        _
    $region12: #{bottleneck_forward.6} parent=5 // pred_fallthru
      _
    %p149 = scmp.lt.s32.totalorder %s10, 2
    // Predicated region
    $region25: #{bottleneck_forward.6} parent=5 // pred_check
      %p150 = pneg %p149
    $region26: #{bottleneck_forward.6} parent=5 // pred_check_branch
      %152 = sbr.rel (%p150) target = $region28
    $region27: #{bottleneck_forward.6} parent=5 // pred_region
      // Predicated region
      $region29: #{bottleneck_forward.6} parent=27 // pred_check
        %p153 = pneg %p30
      $region30: #{bottleneck_forward.6} parent=27 // pred_check_branch
        %155 = sbr.rel (%p153) target = $region32
      $region31: #{bottleneck_forward.6} parent=27 // pred_region
        %p156 = scmp.lt.s32.totalorder %s10, 1
        %s157 = scalar_select %p156, %s10, 1
        %s158 = smul.addr %s157, 32
        %s159 = smul.addr %s158, 8
        %s160 = scalar_lea.vmem %s0, %s159
      $region32: #{bottleneck_forward.6} parent=27 // pred_fallthru
        _
    $region28: #{bottleneck_forward.6} parent=5 // pred_fallthru
      _
    %p161 = scmp.le.s32.totalorder 1, %s10
    %p162 = scmp.lt.s32.totalorder %s10, 3
    %p163 = pnand %p161, %p162
    %p164 = pneg %p163
    // Predicated region
    $region33: #{bottleneck_forward.6} parent=5 // pred_check
      _
    $region34: #{bottleneck_forward.6} parent=5 // pred_check_branch
      %166 = sbr.rel (%p163) target = $region36
    $region35: #{bottleneck_forward.6} parent=5 // pred_region
      %s167 = ssub.s32 %s10, 1
      %p168 = scmp.lt.s32.totalorder %s15, 1
      %s169 = scalar_select %p168, %s15, 1
      %s170 = smul.addr %s169, 32
      %s171 = smul.addr %s170, 8
      %s172 = scalar_lea.vmem %s0, %s171
      %p173 = pneg %p36
      %p174 = pneg %p33
      %p175 = pneg %p57
      %p176 = pneg %p54
      %p177 = pneg %p78
      %p178 = pneg %p75
      %p179 = pneg %p99
      %p180 = pneg %p96
      %p181 = pneg %p125
      %p182 = pneg %p122
      %p183 = scmp.lt.s32.totalorder %s15, 1
      %s184 = scalar_select %p183, %s15, 1
      %s185 = smul.addr %s184, 2
      %s186 = scalar_lea.vmem %s4, %s185
      %p187 = scmp.lt.s32.totalorder %s15, 1
      %s188 = scalar_select %p187, %s15, 1
      %s189 = smul.addr %s188, 32
      %s190 = smul.addr %s189, 8
      %s191 = scalar_lea.vmem %s0, %s190
      %p192 = scmp.lt.s32.totalorder %s15, 1
      %s193 = scalar_select %p192, %s15, 1
      %s194 = smul.addr %s193, 2
      %s195 = scalar_lea.vmem %s4, %s194
      %v196 = vld [vmem:[%s191] sm:$0xff]
      %v197 = vld [vmem:[%s191 + $0x8] sm:$0xff]
      %v198 = vld [vmem:[%s191 + $0x10] sm:$0xff]
      %v199 = vld [vmem:[%s191 + $0x18] sm:$0xff]
      %v200 = vld [vmem:[%s191 + $0x20] sm:$0xff]
      %v201 = vld [vmem:[%s191 + $0x28] sm:$0xff]
      %v202 = vld [vmem:[%s191 + $0x30] sm:$0xff]
      %v203 = vld [vmem:[%s191 + $0x38] sm:$0xff]
      %v204 = vld [vmem:[%s191 + $0x40] sm:$0xff]
      %v205 = vld [vmem:[%s191 + $0x48] sm:$0xff]
      %v206 = vld [vmem:[%s191 + $0x50] sm:$0xff]
      %v207 = vld [vmem:[%s191 + $0x58] sm:$0xff]
      %v208 = vld [vmem:[%s191 + $0x60] sm:$0xff]
      %v209 = vld [vmem:[%s191 + $0x68] sm:$0xff]
      %v210 = vld [vmem:[%s191 + $0x70] sm:$0xff]
      %v211 = vld [vmem:[%s191 + $0x78] sm:$0xff]
      %v212 = vld [vmem:[%s191 + $0x80] sm:$0xff]
      %v213 = vld [vmem:[%s191 + $0x88] sm:$0xff]
      %v214 = vld [vmem:[%s191 + $0x90] sm:$0xff]
      %v215 = vld [vmem:[%s191 + $0x98] sm:$0xff]
      %v216 = vld [vmem:[%s191 + $0xa0] sm:$0xff]
      %v217 = vld [vmem:[%s191 + $0xa8] sm:$0xff]
      %v218 = vld [vmem:[%s191 + $0xb0] sm:$0xff]
      %v219 = vld [vmem:[%s191 + $0xb8] sm:$0xff]
      %v220 = vld [vmem:[%s191 + $0xc0] sm:$0xff]
      %v221 = vld [vmem:[%s191 + $0xc8] sm:$0xff]
      %v222 = vld [vmem:[%s191 + $0xd0] sm:$0xff]
      %v223 = vld [vmem:[%s191 + $0xd8] sm:$0xff]
      %v224 = vld [vmem:[%s191 + $0xe0] sm:$0xff]
      %v225 = vld [vmem:[%s191 + $0xe8] sm:$0xff]
      %v226 = vld [vmem:[%s191 + $0xf0] sm:$0xff]
      %v227 = vld [vmem:[%s191 + $0xf8] sm:$0xff]
      %v228 = vld [vmem:[%s1] sm:$0x1]
      %v230 = vperm.slane %v228, 0
      %v232 = vmul.f32 %v196, %v230
      %v233 = vmul.f32 %v197, %v230
      %v234 = vmul.f32 %v198, %v230
      %v235 = vmul.f32 %v199, %v230
      %v236 = vmul.f32 %v200, %v230
      %v237 = vmul.f32 %v201, %v230
      %v238 = vmul.f32 %v202, %v230
      %v239 = vmul.f32 %v203, %v230
      %v240 = vmul.f32 %v204, %v230
      %v241 = vmul.f32 %v205, %v230
      %v242 = vmul.f32 %v206, %v230
      %v243 = vmul.f32 %v207, %v230
      %v244 = vmul.f32 %v208, %v230
      %v245 = vmul.f32 %v209, %v230
      %v246 = vmul.f32 %v210, %v230
      %v247 = vmul.f32 %v211, %v230
      %v248 = vmul.f32 %v212, %v230
      %v249 = vmul.f32 %v213, %v230
      %v250 = vmul.f32 %v214, %v230
      %v251 = vmul.f32 %v215, %v230
      %v252 = vmul.f32 %v216, %v230
      %v253 = vmul.f32 %v217, %v230
      %v254 = vmul.f32 %v218, %v230
      %v255 = vmul.f32 %v219, %v230
      %v256 = vmul.f32 %v220, %v230
      %v257 = vmul.f32 %v221, %v230
      %v258 = vmul.f32 %v222, %v230
      %v259 = vmul.f32 %v223, %v230
      %v260 = vmul.f32 %v224, %v230
      %v261 = vmul.f32 %v225, %v230
      %v262 = vmul.f32 %v226, %v230
      %v263 = vmul.f32 %v227, %v230
      %v264 = vld [vmem:[%s2] sm:$0x1]
      %v266 = vperm.slane %v264, 0
      %v268 = vadd.f32 %v232, %v266
      %v269 = vadd.f32 %v233, %v266
      %v270 = vadd.f32 %v234, %v266
      %v271 = vadd.f32 %v235, %v266
      %v272 = vadd.f32 %v236, %v266
      %v273 = vadd.f32 %v237, %v266
      %v274 = vadd.f32 %v238, %v266
      %v275 = vadd.f32 %v239, %v266
      %v276 = vadd.f32 %v240, %v266
      %v277 = vadd.f32 %v241, %v266
      %v278 = vadd.f32 %v242, %v266
      %v279 = vadd.f32 %v243, %v266
      %v280 = vadd.f32 %v244, %v266
      %v281 = vadd.f32 %v245, %v266
      %v282 = vadd.f32 %v246, %v266
      %v283 = vadd.f32 %v247, %v266
      %v284 = vadd.f32 %v248, %v266
      %v285 = vadd.f32 %v249, %v266
      %v286 = vadd.f32 %v250, %v266
      %v287 = vadd.f32 %v251, %v266
      %v288 = vadd.f32 %v252, %v266
      %v289 = vadd.f32 %v253, %v266
      %v290 = vadd.f32 %v254, %v266
      %v291 = vadd.f32 %v255, %v266
      %v292 = vadd.f32 %v256, %v266
      %v293 = vadd.f32 %v257, %v266
      %v294 = vadd.f32 %v258, %v266
      %v295 = vadd.f32 %v259, %v266
      %v296 = vadd.f32 %v260, %v266
      %v297 = vadd.f32 %v261, %v266
      %v298 = vadd.f32 %v262, %v266
      %v299 = vadd.f32 %v263, %v266
      %v300 = vmax.f32 %v268, 0.0
      %v301 = vmax.f32 %v269, 0.0
      %v302 = vmax.f32 %v270, 0.0
      %v303 = vmax.f32 %v271, 0.0
      %v304 = vmax.f32 %v272, 0.0
      %v305 = vmax.f32 %v273, 0.0
      %v306 = vmax.f32 %v274, 0.0
      %v307 = vmax.f32 %v275, 0.0
      %v308 = vmax.f32 %v276, 0.0
      %v309 = vmax.f32 %v277, 0.0
      %v310 = vmax.f32 %v278, 0.0
      %v311 = vmax.f32 %v279, 0.0
      %v312 = vmax.f32 %v280, 0.0
      %v313 = vmax.f32 %v281, 0.0
      %v314 = vmax.f32 %v282, 0.0
      %v315 = vmax.f32 %v283, 0.0
      %v316 = vmax.f32 %v284, 0.0
      %v317 = vmax.f32 %v285, 0.0
      %v318 = vmax.f32 %v286, 0.0
      %v319 = vmax.f32 %v287, 0.0
      %v320 = vmax.f32 %v288, 0.0
      %v321 = vmax.f32 %v289, 0.0
      %v322 = vmax.f32 %v290, 0.0
      %v323 = vmax.f32 %v291, 0.0
      %v324 = vmax.f32 %v292, 0.0
      %v325 = vmax.f32 %v293, 0.0
      %v326 = vmax.f32 %v294, 0.0
      %v327 = vmax.f32 %v295, 0.0
      %v328 = vmax.f32 %v296, 0.0
      %v329 = vmax.f32 %v297, 0.0
      %v330 = vmax.f32 %v298, 0.0
      %v331 = vmax.f32 %v299, 0.0
      %v332 = vpack.c.bf16 %v301, %v300
      %v333 = vpack.c.bf16 %v303, %v302
      %v334 = vpack.c.bf16 %v305, %v304
      %v335 = vpack.c.bf16 %v307, %v306
      %v336 = vpack.c.bf16 %v309, %v308
      %v337 = vpack.c.bf16 %v311, %v310
      %v338 = vpack.c.bf16 %v313, %v312
      %v339 = vpack.c.bf16 %v315, %v314
      %v340 = vpack.c.bf16 %v317, %v316
      %v341 = vpack.c.bf16 %v319, %v318
      %v342 = vpack.c.bf16 %v321, %v320
      %v343 = vpack.c.bf16 %v323, %v322
      %v344 = vpack.c.bf16 %v325, %v324
      %v345 = vpack.c.bf16 %v327, %v326
      %v346 = vpack.c.bf16 %v329, %v328
      %v347 = vpack.c.bf16 %v331, %v330
      %v348 = vld [vmem:[%s3] sm:$0xf]
      %v349 = vld [vmem:[%s3 + $0x4] sm:$0xf]
      %v350 = vld [vmem:[%s3 + $0x8] sm:$0xf]
      %v351 = vld [vmem:[%s3 + $0xc] sm:$0xf]
      %v352 = vld [vmem:[%s3 + $0x10] sm:$0xf]
      %v353 = vld [vmem:[%s3 + $0x14] sm:$0xf]
      %v354 = vld [vmem:[%s3 + $0x18] sm:$0xf]
      %v355 = vld [vmem:[%s3 + $0x1c] sm:$0xf]
      %v356 = vld [vmem:[%s3 + $0x20] sm:$0xf]
      %v357 = vld [vmem:[%s3 + $0x24] sm:$0xf]
      %v358 = vld [vmem:[%s3 + $0x28] sm:$0xf]
      %v359 = vld [vmem:[%s3 + $0x2c] sm:$0xf]
      %v360 = vld [vmem:[%s3 + $0x30] sm:$0xf]
      %v361 = vld [vmem:[%s3 + $0x34] sm:$0xf]
      %v362 = vld [vmem:[%s3 + $0x38] sm:$0xf]
      %v363 = vld [vmem:[%s3 + $0x3c] sm:$0xf]
      %v380 = vunpack.c.l.b16 %v348
      %v381 = vunpack.c.l.b16 %v349
      %v382 = vunpack.c.l.b16 %v350
      %v383 = vunpack.c.l.b16 %v351
      %v384 = vunpack.c.l.b16 %v352
      %v385 = vunpack.c.l.b16 %v353
      %v386 = vunpack.c.l.b16 %v354
      %v387 = vunpack.c.l.b16 %v355
      %v388 = vunpack.c.l.b16 %v356
      %v389 = vunpack.c.l.b16 %v357
      %v390 = vunpack.c.l.b16 %v358
      %v391 = vunpack.c.l.b16 %v359
      %v392 = vunpack.c.l.b16 %v360
      %v393 = vunpack.c.l.b16 %v361
      %v394 = vunpack.c.l.b16 %v362
      %v395 = vunpack.c.l.b16 %v363
      %v396 = vpack.c.b16 %v381, %v380
      %v397 = vpack.c.b16 %v383, %v382
      %v398 = vpack.c.b16 %v385, %v384
      %v399 = vpack.c.b16 %v387, %v386
      %v400 = vpack.c.b16 %v389, %v388
      %v401 = vpack.c.b16 %v391, %v390
      %v402 = vpack.c.b16 %v393, %v392
      %v403 = vpack.c.b16 %v395, %v394
      %412 = vmatpush.bf16.msra.mxu0 %v403
      %413 = vmatpush.bf16.msra.mxu0 %v402
      %414 = vmatpush.bf16.msra.mxu0 %v401
      %415 = vmatpush.bf16.msra.mxu0 %v400
      %416 = vmatpush.bf16.msra.mxu0 %v399
      %417 = vmatpush.bf16.msra.mxu0 %v398
      %418 = vmatpush.bf16.msra.mxu0 %v397
      %419 = vmatpush.bf16.msra.mxu0 %v396
      %420 = vmatmul.bf16.gmra.mxu0 %v332
      %v421 = vpop.f32.mrf.mxu0
      %v422 = vadd.f32 0.0, %v421
      %v423 = vpop.f32.mrf.mxu0
      %v424 = vadd.f32 0.0, %v423
      %425 = vmatmul.bf16.gmra.mxu0 %v333
      %v426 = vpop.f32.mrf.mxu0
      %v427 = vadd.f32 0.0, %v426
      %v428 = vpop.f32.mrf.mxu0
      %v429 = vadd.f32 0.0, %v428
      %430 = vmatmul.bf16.gmra.mxu0 %v334
      %v431 = vpop.f32.mrf.mxu0
      %v432 = vadd.f32 0.0, %v431
      %v433 = vpop.f32.mrf.mxu0
      %v434 = vadd.f32 0.0, %v433
      %435 = vmatmul.bf16.gmra.mxu0 %v335
      %v436 = vpop.f32.mrf.mxu0
      %v437 = vadd.f32 0.0, %v436
      %v438 = vpop.f32.mrf.mxu0
      %v439 = vadd.f32 0.0, %v438
      %440 = vmatmul.bf16.gmra.mxu0 %v336
      %v441 = vpop.f32.mrf.mxu0
      %v442 = vadd.f32 0.0, %v441
      %v443 = vpop.f32.mrf.mxu0
      %v444 = vadd.f32 0.0, %v443
      %445 = vmatmul.bf16.gmra.mxu0 %v337
      %v446 = vpop.f32.mrf.mxu0
      %v447 = vadd.f32 0.0, %v446
      %v448 = vpop.f32.mrf.mxu0
      %v449 = vadd.f32 0.0, %v448
      %450 = vmatmul.bf16.gmra.mxu0 %v338
      %v451 = vpop.f32.mrf.mxu0
      %v452 = vadd.f32 0.0, %v451
      %v453 = vpop.f32.mrf.mxu0
      %v454 = vadd.f32 0.0, %v453
      %455 = vmatmul.bf16.gmra.mxu0 %v339
      %v456 = vpop.f32.mrf.mxu0
      %v457 = vadd.f32 0.0, %v456
      %v458 = vpop.f32.mrf.mxu0
      %v459 = vadd.f32 0.0, %v458
      %460 = vmatmul.bf16.gmra.mxu0 %v340
      %v461 = vpop.f32.mrf.mxu0
      %v462 = vadd.f32 0.0, %v461
      %v463 = vpop.f32.mrf.mxu0
      %v464 = vadd.f32 0.0, %v463
      %465 = vmatmul.bf16.gmra.mxu0 %v341
      %v466 = vpop.f32.mrf.mxu0
      %v467 = vadd.f32 0.0, %v466
      %v468 = vpop.f32.mrf.mxu0
      %v469 = vadd.f32 0.0, %v468
      %470 = vmatmul.bf16.gmra.mxu0 %v342
      %v471 = vpop.f32.mrf.mxu0
      %v472 = vadd.f32 0.0, %v471
      %v473 = vpop.f32.mrf.mxu0
      %v474 = vadd.f32 0.0, %v473
      %475 = vmatmul.bf16.gmra.mxu0 %v343
      %v476 = vpop.f32.mrf.mxu0
      %v477 = vadd.f32 0.0, %v476
      %v478 = vpop.f32.mrf.mxu0
      %v479 = vadd.f32 0.0, %v478
      %480 = vmatmul.bf16.gmra.mxu0 %v344
      %v481 = vpop.f32.mrf.mxu0
      %v482 = vadd.f32 0.0, %v481
      %v483 = vpop.f32.mrf.mxu0
      %v484 = vadd.f32 0.0, %v483
      %485 = vmatmul.bf16.gmra.mxu0 %v345
      %v486 = vpop.f32.mrf.mxu0
      %v487 = vadd.f32 0.0, %v486
      %v488 = vpop.f32.mrf.mxu0
      %v489 = vadd.f32 0.0, %v488
      %490 = vmatmul.bf16.gmra.mxu0 %v346
      %v491 = vpop.f32.mrf.mxu0
      %v492 = vadd.f32 0.0, %v491
      %v493 = vpop.f32.mrf.mxu0
      %v494 = vadd.f32 0.0, %v493
      %495 = vmatmul.bf16.gmra.mxu0 %v347
      %v496 = vpop.f32.mrf.mxu0
      %v497 = vadd.f32 0.0, %v496
      %v498 = vpop.f32.mrf.mxu0
      %v499 = vadd.f32 0.0, %v498
      %500 = vdwg.mxu0
      %v501 = vadd.f32 %v422, %v424
      %v502 = vadd.f32 %v501, %v427
      %v503 = vadd.f32 %v502, %v429
      %v504 = vadd.f32 %v503, %v432
      %v505 = vadd.f32 %v504, %v434
      %v506 = vadd.f32 %v505, %v437
      %v507 = vadd.f32 %v506, %v439
      %v508 = vadd.f32 %v507, %v442
      %v509 = vadd.f32 %v508, %v444
      %v510 = vadd.f32 %v509, %v447
      %v511 = vadd.f32 %v510, %v449
      %v512 = vadd.f32 %v511, %v452
      %v513 = vadd.f32 %v512, %v454
      %v514 = vadd.f32 %v513, %v457
      %v515 = vadd.f32 %v514, %v459
      %v516 = vadd.f32 %v515, %v462
      %v517 = vadd.f32 %v516, %v464
      %v518 = vadd.f32 %v517, %v467
      %v519 = vadd.f32 %v518, %v469
      %v520 = vadd.f32 %v519, %v472
      %v521 = vadd.f32 %v520, %v474
      %v522 = vadd.f32 %v521, %v477
      %v523 = vadd.f32 %v522, %v479
      %v524 = vadd.f32 %v523, %v482
      %v525 = vadd.f32 %v524, %v484
      %v526 = vadd.f32 %v525, %v487
      %v527 = vadd.f32 %v526, %v489
      %v528 = vadd.f32 %v527, %v492
      %v529 = vadd.f32 %v528, %v494
      %v530 = vadd.f32 %v529, %v497
      %v531 = vadd.f32 %v530, %v499
      %v532 = vrot.slane %v531, 4
      %v533 = vadd.f32 %v531, %v532
      %v534 = vrot.slane %v533, 2
      %v535 = vadd.f32 %v533, %v534
      %v536 = vrot.slane %v535, 1
      %v537 = vadd.f32 %v535, %v536
      %538 = vst [vmem:[%s195] sm:$0x1] %v537
      %v539 = vmul.f32 %v422, %v422
      %v540 = vmul.f32 %v424, %v424
      %v541 = vmul.f32 %v427, %v427
      %v542 = vmul.f32 %v429, %v429
      %v543 = vmul.f32 %v432, %v432
      %v544 = vmul.f32 %v434, %v434
      %v545 = vmul.f32 %v437, %v437
      %v546 = vmul.f32 %v439, %v439
      %v547 = vmul.f32 %v442, %v442
      %v548 = vmul.f32 %v444, %v444
      %v549 = vmul.f32 %v447, %v447
      %v550 = vmul.f32 %v449, %v449
      %v551 = vmul.f32 %v452, %v452
      %v552 = vmul.f32 %v454, %v454
      %v553 = vmul.f32 %v457, %v457
      %v554 = vmul.f32 %v459, %v459
      %v555 = vmul.f32 %v462, %v462
      %v556 = vmul.f32 %v464, %v464
      %v557 = vmul.f32 %v467, %v467
      %v558 = vmul.f32 %v469, %v469
      %v559 = vmul.f32 %v472, %v472
      %v560 = vmul.f32 %v474, %v474
      %v561 = vmul.f32 %v477, %v477
      %v562 = vmul.f32 %v479, %v479
      %v563 = vmul.f32 %v482, %v482
      %v564 = vmul.f32 %v484, %v484
      %v565 = vmul.f32 %v487, %v487
      %v566 = vmul.f32 %v489, %v489
      %v567 = vmul.f32 %v492, %v492
      %v568 = vmul.f32 %v494, %v494
      %v569 = vmul.f32 %v497, %v497
      %v570 = vmul.f32 %v499, %v499
      %v571 = vadd.f32 %v539, %v540
      %v572 = vadd.f32 %v571, %v541
      %v573 = vadd.f32 %v572, %v542
      %v574 = vadd.f32 %v573, %v543
      %v575 = vadd.f32 %v574, %v544
      %v576 = vadd.f32 %v575, %v545
      %v577 = vadd.f32 %v576, %v546
      %v578 = vadd.f32 %v577, %v547
      %v579 = vadd.f32 %v578, %v548
      %v580 = vadd.f32 %v579, %v549
      %v581 = vadd.f32 %v580, %v550
      %v582 = vadd.f32 %v581, %v551
      %v583 = vadd.f32 %v582, %v552
      %v584 = vadd.f32 %v583, %v553
      %v585 = vadd.f32 %v584, %v554
      %v586 = vadd.f32 %v585, %v555
      %v587 = vadd.f32 %v586, %v556
      %v588 = vadd.f32 %v587, %v557
      %v589 = vadd.f32 %v588, %v558
      %v590 = vadd.f32 %v589, %v559
      %v591 = vadd.f32 %v590, %v560
      %v592 = vadd.f32 %v591, %v561
      %v593 = vadd.f32 %v592, %v562
      %v594 = vadd.f32 %v593, %v563
      %v595 = vadd.f32 %v594, %v564
      %v596 = vadd.f32 %v595, %v565
      %v597 = vadd.f32 %v596, %v566
      %v598 = vadd.f32 %v597, %v567
      %v599 = vadd.f32 %v598, %v568
      %v600 = vadd.f32 %v599, %v569
      %v601 = vadd.f32 %v600, %v570
      %v602 = vrot.slane %v601, 4
      %v603 = vadd.f32 %v601, %v602
      %v604 = vrot.slane %v603, 2
      %v605 = vadd.f32 %v603, %v604
      %v606 = vrot.slane %v605, 1
      %v607 = vadd.f32 %v605, %v606
      %608 = vst [vmem:[%s195 + $0x1] sm:$0x1] %v607
      %p609 = scmp.lt.s32.totalorder %s15, 1
      %s610 = scalar_select %p609, %s15, 1
      %s611 = smul.addr %s610, 2
      %s612 = scalar_lea.vmem %s4, %s611
      // Predicated region
      $region37: #{bottleneck_forward.6} parent=35 // pred_check
        %p613 = pneg %p122
      $region38: #{bottleneck_forward.6} parent=35 // pred_check_branch
        %615 = sbr.rel (%p613) target = $region40
      $region39: #{bottleneck_forward.6} parent=35 // pred_region
        _
      $region40: #{bottleneck_forward.6} parent=35 // pred_fallthru
        _
    $region36: #{bottleneck_forward.6} parent=5 // pred_fallthru
      _
    %p616 = scmp.le.s32.totalorder 2, %s10
    // Predicated region
    $region41: #{bottleneck_forward.6} parent=5 // pred_check
      %p617 = pneg %p616
    $region42: #{bottleneck_forward.6} parent=5 // pred_check_branch
      %619 = sbr.rel (%p617) target = $region44
    $region43: #{bottleneck_forward.6} parent=5 // pred_region
      %s620 = ssub.s32 %s10, 2
      // Predicated region
      $region45: #{bottleneck_forward.6} parent=43 // pred_check
        %p621 = pneg %p128
      $region46: #{bottleneck_forward.6} parent=43 // pred_check_branch
        %623 = sbr.rel (%p621) target = $region48
      $region47: #{bottleneck_forward.6} parent=43 // pred_region
        %p624 = scmp.lt.s32.totalorder %s16, 1
        %s625 = scalar_select %p624, %s16, 1
        %s626 = smul.addr %s625, 2
        %s627 = scalar_lea.vmem %s4, %s626
      $region48: #{bottleneck_forward.6} parent=43 // pred_fallthru
        _
    $region44: #{bottleneck_forward.6} parent=5 // pred_fallthru
      _
  $region6: #{bottleneck_forward.6} parent=0 // loop_footer
    %s14 = sadd.s32 1, %s10
  $region7: #{bottleneck_forward.6} parent=0 // loop_footer_branch
    %9 = sbr.rel target = $region3
  $region8: #{bottleneck_forward.6} parent=0 // loop_exit
    _

// kernel: bottleneck_forward.7
$region0: #{bottleneck_forward.7}
  #allocation0 [shape = 'u32[]', space=smem, size = 0x4, offset = 0x4, fixed_abs, tag = 'smem constant byte address 0x4 - core index']
  #allocation1 [shape = 'u32[72,128]{1,0:T(1,128)}', space=vmem, size = 0x9000, scoped, tag = 'internal scratch']
  %s0 = inlined_call_operand.vmem [shape: f32[2,16,16,128], index: 0, kind: input, shape index: {}]
  %s1 = inlined_call_operand.vmem [shape: f32[1,128], index: 1, kind: input, shape index: {}]
  %s2 = inlined_call_operand.vmem [shape: f32[1,128], index: 2, kind: input, shape index: {}]
  %s3 = inlined_call_operand.vmem [shape: bf16[128,128], index: 3, kind: input, shape index: {}]
  %s4 = inlined_call_operand.vmem [shape: f32[1,128], index: 4, kind: input, shape index: {}]
  %s5 = inlined_call_operand.vmem [shape: f32[1,128], index: 5, kind: input, shape index: {}]
  %s6 = inlined_call_operand.vmem [shape: bf16[2,16,16,128], index: 6, kind: output, shape index: {}]
  %s7 = sld [smem:[#allocation0]]
  $region57: #{bottleneck_forward.7} parent=0
    _
  %s9 = ssub.s32 1, %s7
  %s10 = scalar_select 0, %s9, %s7
  loop: start=0, step=1, limit=4
  $region2: #{bottleneck_forward.7} parent=0 // loop_pre_header
    _
  $region3: #{bottleneck_forward.7} parent=0 // loop_header
    %s12 = sphi 0, %s16
    %p13 = scmp.ge.s32.totalorder %s12, 4
    %s22 = sphi 0, %s24
    %s25 = sphi 0, %s22
    %s26 = sphi 0, %s25
    %s42 = sphi 0, %s26
    %s46 = sphi 0, %s46
    %s48 = sphi 0, %s46
    %s49 = sphi 0, %s48
    %s63 = sphi 0, %s49
    %s67 = sphi 0, %s67
    %s69 = sphi 0, %s67
    %s70 = sphi 0, %s69
    %s84 = sphi 0, %s70
    %s88 = sphi 0, %s88
    %s90 = sphi 0, %s88
    %s91 = sphi 0, %s90
    %s105 = sphi 0, %s91
    %s109 = sphi 0, %s109
    %s111 = sphi 0, %s109
    %s112 = sphi 0, %s111
    %s126 = sphi 0, %s112
    %s130 = sphi 0, %s130
    %s132 = sphi 0, %s130
    %s133 = sphi 0, %s132
    %s147 = sphi 0, %s133
    %s153 = sphi 0, %s155
    %s156 = sphi 0, %s153
    %s157 = sphi 0, %s156
    %s173 = sphi 0, %s157
  $region4: #{bottleneck_forward.7} parent=0 // loop_header_branch
    %15 = sbr.rel (%p13) target = $region8
  $region5: #{bottleneck_forward.7} parent=0 // loop_body
    %s17 = ssub.s32 %s12, 1
    %s18 = ssub.s32 %s12, 2
    %s19 = sadd.s32 %s12, 1
    %s20 = ssub.s32 %s12, %s19
    %p21 = scmp.eq.s32.totalorder %s20, 0
    %s23 = sadd.s32 %s22, 1
    %s24 = scalar_select %p21, %s22, %s23
    %p27 = pneg %p21
    %p28 = scmp.eq.s32.totalorder %s12, 1
    %p29 = por %p27, %p28
    %p30 = scmp.ne.s32.totalorder %s22, %s25
    %p31 = scmp.eq.s32.totalorder %s12, 0
    %p32 = por %p30, %p31
    %p33 = scmp.ne.s32.totalorder %s22, %s25
    %p34 = scmp.eq.s32.totalorder %s17, 1
    %p35 = por %p33, %p34
    %p36 = scmp.ne.s32.totalorder %s25, %s26
    %p37 = scmp.eq.s32.totalorder %s17, 0
    %p38 = por %p36, %p37
    %p39 = scmp.ne.s32.totalorder %s25, %s26
    %p40 = scmp.eq.s32.totalorder %s18, 1
    %p41 = por %p39, %p40
    %p43 = scmp.ne.s32.totalorder %s26, %s42
    %p44 = scmp.eq.s32.totalorder %s18, 0
    %p45 = por %p43, %p44
    %s47 = sadd.s32 %s46, 1
    %p50 = scmp.eq.s32.totalorder %s12, 1
    %p51 = scmp.ne.s32.totalorder %s46, %s48
    %p52 = scmp.eq.s32.totalorder %s12, 0
    %p53 = por %p51, %p52
    %p54 = scmp.ne.s32.totalorder %s46, %s48
    %p55 = scmp.eq.s32.totalorder %s17, 1
    %p56 = por %p54, %p55
    %p57 = scmp.ne.s32.totalorder %s48, %s49
    %p58 = scmp.eq.s32.totalorder %s17, 0
    %p59 = por %p57, %p58
    %p60 = scmp.ne.s32.totalorder %s48, %s49
    %p61 = scmp.eq.s32.totalorder %s18, 1
    %p62 = por %p60, %p61
    %p64 = scmp.ne.s32.totalorder %s49, %s63
    %p65 = scmp.eq.s32.totalorder %s18, 0
    %p66 = por %p64, %p65
    %s68 = sadd.s32 %s67, 1
    %p71 = scmp.eq.s32.totalorder %s12, 1
    %p72 = scmp.ne.s32.totalorder %s67, %s69
    %p73 = scmp.eq.s32.totalorder %s12, 0
    %p74 = por %p72, %p73
    %p75 = scmp.ne.s32.totalorder %s67, %s69
    %p76 = scmp.eq.s32.totalorder %s17, 1
    %p77 = por %p75, %p76
    %p78 = scmp.ne.s32.totalorder %s69, %s70
    %p79 = scmp.eq.s32.totalorder %s17, 0
    %p80 = por %p78, %p79
    %p81 = scmp.ne.s32.totalorder %s69, %s70
    %p82 = scmp.eq.s32.totalorder %s18, 1
    %p83 = por %p81, %p82
    %p85 = scmp.ne.s32.totalorder %s70, %s84
    %p86 = scmp.eq.s32.totalorder %s18, 0
    %p87 = por %p85, %p86
    %s89 = sadd.s32 %s88, 1
    %p92 = scmp.eq.s32.totalorder %s12, 1
    %p93 = scmp.ne.s32.totalorder %s88, %s90
    %p94 = scmp.eq.s32.totalorder %s12, 0
    %p95 = por %p93, %p94
    %p96 = scmp.ne.s32.totalorder %s88, %s90
    %p97 = scmp.eq.s32.totalorder %s17, 1
    %p98 = por %p96, %p97
    %p99 = scmp.ne.s32.totalorder %s90, %s91
    %p100 = scmp.eq.s32.totalorder %s17, 0
    %p101 = por %p99, %p100
    %p102 = scmp.ne.s32.totalorder %s90, %s91
    %p103 = scmp.eq.s32.totalorder %s18, 1
    %p104 = por %p102, %p103
    %p106 = scmp.ne.s32.totalorder %s91, %s105
    %p107 = scmp.eq.s32.totalorder %s18, 0
    %p108 = por %p106, %p107
    %s110 = sadd.s32 %s109, 1
    %p113 = scmp.eq.s32.totalorder %s12, 1
    %p114 = scmp.ne.s32.totalorder %s109, %s111
    %p115 = scmp.eq.s32.totalorder %s12, 0
    %p116 = por %p114, %p115
    %p117 = scmp.ne.s32.totalorder %s109, %s111
    %p118 = scmp.eq.s32.totalorder %s17, 1
    %p119 = por %p117, %p118
    %p120 = scmp.ne.s32.totalorder %s111, %s112
    %p121 = scmp.eq.s32.totalorder %s17, 0
    %p122 = por %p120, %p121
    %p123 = scmp.ne.s32.totalorder %s111, %s112
    %p124 = scmp.eq.s32.totalorder %s18, 1
    %p125 = por %p123, %p124
    %p127 = scmp.ne.s32.totalorder %s112, %s126
    %p128 = scmp.eq.s32.totalorder %s18, 0
    %p129 = por %p127, %p128
    %s131 = sadd.s32 %s130, 1
    %p134 = scmp.eq.s32.totalorder %s12, 1
    %p135 = scmp.ne.s32.totalorder %s130, %s132
    %p136 = scmp.eq.s32.totalorder %s12, 0
    %p137 = por %p135, %p136
    %p138 = scmp.ne.s32.totalorder %s130, %s132
    %p139 = scmp.eq.s32.totalorder %s17, 1
    %p140 = por %p138, %p139
    %p141 = scmp.ne.s32.totalorder %s132, %s133
    %p142 = scmp.eq.s32.totalorder %s17, 0
    %p143 = por %p141, %p142
    %p144 = scmp.ne.s32.totalorder %s132, %s133
    %p145 = scmp.eq.s32.totalorder %s18, 1
    %p146 = por %p144, %p145
    %p148 = scmp.ne.s32.totalorder %s133, %s147
    %p149 = scmp.eq.s32.totalorder %s18, 0
    %p150 = por %p148, %p149
    %s151 = ssub.s32 %s12, %s19
    %p152 = scmp.eq.s32.totalorder %s151, 0
    %s154 = sadd.s32 %s153, 1
    %s155 = scalar_select %p152, %s153, %s154
    %p158 = pneg %p152
    %p159 = scmp.eq.s32.totalorder %s12, 1
    %p160 = por %p158, %p159
    %p161 = scmp.ne.s32.totalorder %s153, %s156
    %p162 = scmp.eq.s32.totalorder %s12, 0
    %p163 = por %p161, %p162
    %p164 = scmp.ne.s32.totalorder %s153, %s156
    %p165 = scmp.eq.s32.totalorder %s17, 1
    %p166 = por %p164, %p165
    %p167 = scmp.ne.s32.totalorder %s156, %s157
    %p168 = scmp.eq.s32.totalorder %s17, 0
    %p169 = por %p167, %p168
    %p170 = scmp.ne.s32.totalorder %s156, %s157
    %p171 = scmp.eq.s32.totalorder %s18, 1
    %p172 = por %p170, %p171
    %p174 = scmp.ne.s32.totalorder %s157, %s173
    %p175 = scmp.eq.s32.totalorder %s18, 0
    %p176 = por %p174, %p175
    %p177 = scmp.le.s32.totalorder 1, %s12
    %p178 = scmp.lt.s32.totalorder %s12, 3
    %p179 = pnand %p177, %p178
    %p180 = pneg %p179
    // Predicated region
    $region9: #{bottleneck_forward.7} parent=5 // pred_check
      _
    $region10: #{bottleneck_forward.7} parent=5 // pred_check_branch
      %182 = sbr.rel (%p179) target = $region12
    $region11: #{bottleneck_forward.7} parent=5 // pred_region
      %s183 = ssub.s32 %s12, 1
      // Predicated region
      $region13: #{bottleneck_forward.7} parent=11 // pred_check
        %p184 = pneg %p59
      $region14: #{bottleneck_forward.7} parent=11 // pred_check_branch
        %186 = sbr.rel (%p184) target = $region16
      $region15: #{bottleneck_forward.7} parent=11 // pred_region
        _
      $region16: #{bottleneck_forward.7} parent=11 // pred_fallthru
        _
      // Predicated region
      $region17: #{bottleneck_forward.7} parent=11 // pred_check
        %p187 = pneg %p80
      $region18: #{bottleneck_forward.7} parent=11 // pred_check_branch
        %189 = sbr.rel (%p187) target = $region20
      $region19: #{bottleneck_forward.7} parent=11 // pred_region
        _
      $region20: #{bottleneck_forward.7} parent=11 // pred_fallthru
        _
      // Predicated region
      $region21: #{bottleneck_forward.7} parent=11 // pred_check
        %p190 = pneg %p101
      $region22: #{bottleneck_forward.7} parent=11 // pred_check_branch
        %192 = sbr.rel (%p190) target = $region24
      $region23: #{bottleneck_forward.7} parent=11 // pred_region
        _
      $region24: #{bottleneck_forward.7} parent=11 // pred_fallthru
        _
      // Predicated region
      $region25: #{bottleneck_forward.7} parent=11 // pred_check
        %p193 = pneg %p122
      $region26: #{bottleneck_forward.7} parent=11 // pred_check_branch
        %195 = sbr.rel (%p193) target = $region28
      $region27: #{bottleneck_forward.7} parent=11 // pred_region
        _
      $region28: #{bottleneck_forward.7} parent=11 // pred_fallthru
        _
      // Predicated region
      $region29: #{bottleneck_forward.7} parent=11 // pred_check
        %p196 = pneg %p143
      $region30: #{bottleneck_forward.7} parent=11 // pred_check_branch
        %198 = sbr.rel (%p196) target = $region32
      $region31: #{bottleneck_forward.7} parent=11 // pred_region
        _
      $region32: #{bottleneck_forward.7} parent=11 // pred_fallthru
        _
    $region12: #{bottleneck_forward.7} parent=5 // pred_fallthru
      _
    %p199 = scmp.lt.s32.totalorder %s12, 2
    // Predicated region
    $region33: #{bottleneck_forward.7} parent=5 // pred_check
      %p200 = pneg %p199
    $region34: #{bottleneck_forward.7} parent=5 // pred_check_branch
      %202 = sbr.rel (%p200) target = $region36
    $region35: #{bottleneck_forward.7} parent=5 // pred_region
      // Predicated region
      $region37: #{bottleneck_forward.7} parent=35 // pred_check
        %p203 = pneg %p32
      $region38: #{bottleneck_forward.7} parent=35 // pred_check_branch
        %205 = sbr.rel (%p203) target = $region40
      $region39: #{bottleneck_forward.7} parent=35 // pred_region
        %p206 = scmp.lt.s32.totalorder %s12, 1
        %s207 = scalar_select %p206, %s12, 1
        %s208 = smul.addr %s207, 32
        %s209 = smul.addr %s208, 8
        %s210 = scalar_lea.vmem %s0, %s209
      $region40: #{bottleneck_forward.7} parent=35 // pred_fallthru
        _
    $region36: #{bottleneck_forward.7} parent=5 // pred_fallthru
      _
    %p211 = scmp.le.s32.totalorder 1, %s12
    %p212 = scmp.lt.s32.totalorder %s12, 3
    %p213 = pnand %p211, %p212
    %p214 = pneg %p213
    // Predicated region
    $region41: #{bottleneck_forward.7} parent=5 // pred_check
      _
    $region42: #{bottleneck_forward.7} parent=5 // pred_check_branch
      %216 = sbr.rel (%p213) target = $region44
    $region43: #{bottleneck_forward.7} parent=5 // pred_region
      %s217 = ssub.s32 %s12, 1
      %p218 = scmp.lt.s32.totalorder %s17, 1
      %s219 = scalar_select %p218, %s17, 1
      %s220 = smul.addr %s219, 32
      %s221 = smul.addr %s220, 8
      %s222 = scalar_lea.vmem %s0, %s221
      %p223 = pneg %p38
      %p224 = pneg %p35
      %p225 = pneg %p59
      %p226 = pneg %p56
      %p227 = pneg %p80
      %p228 = pneg %p77
      %p229 = pneg %p101
      %p230 = pneg %p98
      %p231 = pneg %p122
      %p232 = pneg %p119
      %p233 = pneg %p143
      %p234 = pneg %p140
      %p235 = pneg %p169
      %p236 = pneg %p166
      %p237 = scmp.lt.s32.totalorder %s17, 1
      %s238 = scalar_select %p237, %s17, 1
      %s239 = smul.addr %s238, 32
      %s240 = smul.addr %s239, 4
      %s241 = scalar_lea.vmem %s6, %s240
      %p242 = scmp.lt.s32.totalorder %s17, 1
      %s243 = scalar_select %p242, %s17, 1
      %s244 = smul.addr %s243, 32
      %s245 = smul.addr %s244, 8
      %s246 = scalar_lea.vmem %s0, %s245
      %p247 = scmp.lt.s32.totalorder %s17, 1
      %s248 = scalar_select %p247, %s17, 1
      %s249 = smul.addr %s248, 32
      %s250 = smul.addr %s249, 4
      %s251 = scalar_lea.vmem %s6, %s250
      %v252 = vld [vmem:[%s246] sm:$0xff]
      %v253 = vld [vmem:[%s246 + $0x8] sm:$0xff]
      %v254 = vld [vmem:[%s246 + $0x10] sm:$0xff]
      %v255 = vld [vmem:[%s246 + $0x18] sm:$0xff]
      %v256 = vld [vmem:[%s246 + $0x20] sm:$0xff]
      %v257 = vld [vmem:[%s246 + $0x28] sm:$0xff]
      %v258 = vld [vmem:[%s246 + $0x30] sm:$0xff]
      %v259 = vld [vmem:[%s246 + $0x38] sm:$0xff]
      %v260 = vld [vmem:[%s246 + $0x40] sm:$0xff]
      %v261 = vld [vmem:[%s246 + $0x48] sm:$0xff]
      %v262 = vld [vmem:[%s246 + $0x50] sm:$0xff]
      %v263 = vld [vmem:[%s246 + $0x58] sm:$0xff]
      %v264 = vld [vmem:[%s246 + $0x60] sm:$0xff]
      %v265 = vld [vmem:[%s246 + $0x68] sm:$0xff]
      %v266 = vld [vmem:[%s246 + $0x70] sm:$0xff]
      %v267 = vld [vmem:[%s246 + $0x78] sm:$0xff]
      %v268 = vld [vmem:[%s246 + $0x80] sm:$0xff]
      %v269 = vld [vmem:[%s246 + $0x88] sm:$0xff]
      %v270 = vld [vmem:[%s246 + $0x90] sm:$0xff]
      %v271 = vld [vmem:[%s246 + $0x98] sm:$0xff]
      %v272 = vld [vmem:[%s246 + $0xa0] sm:$0xff]
      %v273 = vld [vmem:[%s246 + $0xa8] sm:$0xff]
      %v274 = vld [vmem:[%s246 + $0xb0] sm:$0xff]
      %v275 = vld [vmem:[%s246 + $0xb8] sm:$0xff]
      %v276 = vld [vmem:[%s246 + $0xc0] sm:$0xff]
      %v277 = vld [vmem:[%s246 + $0xc8] sm:$0xff]
      %v278 = vld [vmem:[%s246 + $0xd0] sm:$0xff]
      %v279 = vld [vmem:[%s246 + $0xd8] sm:$0xff]
      %v280 = vld [vmem:[%s246 + $0xe0] sm:$0xff]
      %v281 = vld [vmem:[%s246 + $0xe8] sm:$0xff]
      %v282 = vld [vmem:[%s246 + $0xf0] sm:$0xff]
      %v283 = vld [vmem:[%s246 + $0xf8] sm:$0xff]
      %v284 = vld [vmem:[%s1] sm:$0x1]
      %v286 = vperm.slane %v284, 0
      %v288 = vmul.f32 %v252, %v286
      %v289 = vmul.f32 %v253, %v286
      %v290 = vmul.f32 %v254, %v286
      %v291 = vmul.f32 %v255, %v286
      %v292 = vmul.f32 %v256, %v286
      %v293 = vmul.f32 %v257, %v286
      %v294 = vmul.f32 %v258, %v286
      %v295 = vmul.f32 %v259, %v286
      %v296 = vmul.f32 %v260, %v286
      %v297 = vmul.f32 %v261, %v286
      %v298 = vmul.f32 %v262, %v286
      %v299 = vmul.f32 %v263, %v286
      %v300 = vmul.f32 %v264, %v286
      %v301 = vmul.f32 %v265, %v286
      %v302 = vmul.f32 %v266, %v286
      %v303 = vmul.f32 %v267, %v286
      %v304 = vmul.f32 %v268, %v286
      %v305 = vmul.f32 %v269, %v286
      %v306 = vmul.f32 %v270, %v286
      %v307 = vmul.f32 %v271, %v286
      %v308 = vmul.f32 %v272, %v286
      %v309 = vmul.f32 %v273, %v286
      %v310 = vmul.f32 %v274, %v286
      %v311 = vmul.f32 %v275, %v286
      %v312 = vmul.f32 %v276, %v286
      %v313 = vmul.f32 %v277, %v286
      %v314 = vmul.f32 %v278, %v286
      %v315 = vmul.f32 %v279, %v286
      %v316 = vmul.f32 %v280, %v286
      %v317 = vmul.f32 %v281, %v286
      %v318 = vmul.f32 %v282, %v286
      %v319 = vmul.f32 %v283, %v286
      %v320 = vld [vmem:[%s2] sm:$0x1]
      %v322 = vperm.slane %v320, 0
      %v324 = vadd.f32 %v288, %v322
      %v325 = vadd.f32 %v289, %v322
      %v326 = vadd.f32 %v290, %v322
      %v327 = vadd.f32 %v291, %v322
      %v328 = vadd.f32 %v292, %v322
      %v329 = vadd.f32 %v293, %v322
      %v330 = vadd.f32 %v294, %v322
      %v331 = vadd.f32 %v295, %v322
      %v332 = vadd.f32 %v296, %v322
      %v333 = vadd.f32 %v297, %v322
      %v334 = vadd.f32 %v298, %v322
      %v335 = vadd.f32 %v299, %v322
      %v336 = vadd.f32 %v300, %v322
      %v337 = vadd.f32 %v301, %v322
      %v338 = vadd.f32 %v302, %v322
      %v339 = vadd.f32 %v303, %v322
      %v340 = vadd.f32 %v304, %v322
      %v341 = vadd.f32 %v305, %v322
      %v342 = vadd.f32 %v306, %v322
      %v343 = vadd.f32 %v307, %v322
      %v344 = vadd.f32 %v308, %v322
      %v345 = vadd.f32 %v309, %v322
      %v346 = vadd.f32 %v310, %v322
      %v347 = vadd.f32 %v311, %v322
      %v348 = vadd.f32 %v312, %v322
      %v349 = vadd.f32 %v313, %v322
      %v350 = vadd.f32 %v314, %v322
      %v351 = vadd.f32 %v315, %v322
      %v352 = vadd.f32 %v316, %v322
      %v353 = vadd.f32 %v317, %v322
      %v354 = vadd.f32 %v318, %v322
      %v355 = vadd.f32 %v319, %v322
      %v356 = vmax.f32 %v324, 0.0
      %v357 = vmax.f32 %v325, 0.0
      %v358 = vmax.f32 %v326, 0.0
      %v359 = vmax.f32 %v327, 0.0
      %v360 = vmax.f32 %v328, 0.0
      %v361 = vmax.f32 %v329, 0.0
      %v362 = vmax.f32 %v330, 0.0
      %v363 = vmax.f32 %v331, 0.0
      %v364 = vmax.f32 %v332, 0.0
      %v365 = vmax.f32 %v333, 0.0
      %v366 = vmax.f32 %v334, 0.0
      %v367 = vmax.f32 %v335, 0.0
      %v368 = vmax.f32 %v336, 0.0
      %v369 = vmax.f32 %v337, 0.0
      %v370 = vmax.f32 %v338, 0.0
      %v371 = vmax.f32 %v339, 0.0
      %v372 = vmax.f32 %v340, 0.0
      %v373 = vmax.f32 %v341, 0.0
      %v374 = vmax.f32 %v342, 0.0
      %v375 = vmax.f32 %v343, 0.0
      %v376 = vmax.f32 %v344, 0.0
      %v377 = vmax.f32 %v345, 0.0
      %v378 = vmax.f32 %v346, 0.0
      %v379 = vmax.f32 %v347, 0.0
      %v380 = vmax.f32 %v348, 0.0
      %v381 = vmax.f32 %v349, 0.0
      %v382 = vmax.f32 %v350, 0.0
      %v383 = vmax.f32 %v351, 0.0
      %v384 = vmax.f32 %v352, 0.0
      %v385 = vmax.f32 %v353, 0.0
      %v386 = vmax.f32 %v354, 0.0
      %v387 = vmax.f32 %v355, 0.0
      %v388 = vpack.c.bf16 %v357, %v356
      %v389 = vpack.c.bf16 %v359, %v358
      %v390 = vpack.c.bf16 %v361, %v360
      %v391 = vpack.c.bf16 %v363, %v362
      %v392 = vpack.c.bf16 %v365, %v364
      %v393 = vpack.c.bf16 %v367, %v366
      %v394 = vpack.c.bf16 %v369, %v368
      %v395 = vpack.c.bf16 %v371, %v370
      %v396 = vpack.c.bf16 %v373, %v372
      %v397 = vpack.c.bf16 %v375, %v374
      %v398 = vpack.c.bf16 %v377, %v376
      %v399 = vpack.c.bf16 %v379, %v378
      %v400 = vpack.c.bf16 %v381, %v380
      %v401 = vpack.c.bf16 %v383, %v382
      %v402 = vpack.c.bf16 %v385, %v384
      %v403 = vpack.c.bf16 %v387, %v386
      %v404 = vld [vmem:[%s3] sm:$0xf]
      %v405 = vld [vmem:[%s3 + $0x4] sm:$0xf]
      %v406 = vld [vmem:[%s3 + $0x8] sm:$0xf]
      %v407 = vld [vmem:[%s3 + $0xc] sm:$0xf]
      %v408 = vld [vmem:[%s3 + $0x10] sm:$0xf]
      %v409 = vld [vmem:[%s3 + $0x14] sm:$0xf]
      %v410 = vld [vmem:[%s3 + $0x18] sm:$0xf]
      %v411 = vld [vmem:[%s3 + $0x1c] sm:$0xf]
      %v412 = vld [vmem:[%s3 + $0x20] sm:$0xf]
      %v413 = vld [vmem:[%s3 + $0x24] sm:$0xf]
      %v414 = vld [vmem:[%s3 + $0x28] sm:$0xf]
      %v415 = vld [vmem:[%s3 + $0x2c] sm:$0xf]
      %v416 = vld [vmem:[%s3 + $0x30] sm:$0xf]
      %v417 = vld [vmem:[%s3 + $0x34] sm:$0xf]
      %v418 = vld [vmem:[%s3 + $0x38] sm:$0xf]
      %v419 = vld [vmem:[%s3 + $0x3c] sm:$0xf]
      %v436 = vunpack.c.l.b16 %v404
      %v437 = vunpack.c.l.b16 %v405
      %v438 = vunpack.c.l.b16 %v406
      %v439 = vunpack.c.l.b16 %v407
      %v440 = vunpack.c.l.b16 %v408
      %v441 = vunpack.c.l.b16 %v409
      %v442 = vunpack.c.l.b16 %v410
      %v443 = vunpack.c.l.b16 %v411
      %v444 = vunpack.c.l.b16 %v412
      %v445 = vunpack.c.l.b16 %v413
      %v446 = vunpack.c.l.b16 %v414
      %v447 = vunpack.c.l.b16 %v415
      %v448 = vunpack.c.l.b16 %v416
      %v449 = vunpack.c.l.b16 %v417
      %v450 = vunpack.c.l.b16 %v418
      %v451 = vunpack.c.l.b16 %v419
      %v452 = vpack.c.b16 %v437, %v436
      %v453 = vpack.c.b16 %v439, %v438
      %v454 = vpack.c.b16 %v441, %v440
      %v455 = vpack.c.b16 %v443, %v442
      %v456 = vpack.c.b16 %v445, %v444
      %v457 = vpack.c.b16 %v447, %v446
      %v458 = vpack.c.b16 %v449, %v448
      %v459 = vpack.c.b16 %v451, %v450
      %468 = vmatpush.bf16.msra.mxu0 %v459
      %469 = vmatpush.bf16.msra.mxu0 %v458
      %470 = vmatpush.bf16.msra.mxu0 %v457
      %471 = vmatpush.bf16.msra.mxu0 %v456
      %472 = vmatpush.bf16.msra.mxu0 %v455
      %473 = vmatpush.bf16.msra.mxu0 %v454
      %474 = vmatpush.bf16.msra.mxu0 %v453
      %475 = vmatpush.bf16.msra.mxu0 %v452
      %476 = vmatmul.bf16.gmra.mxu0 %v388
      %v477 = vpop.f32.mrf.mxu0
      %v478 = vadd.f32 0.0, %v477
      %v479 = vpop.f32.mrf.mxu0
      %v480 = vadd.f32 0.0, %v479
      %481 = vmatmul.bf16.gmra.mxu0 %v389
      %v482 = vpop.f32.mrf.mxu0
      %v483 = vadd.f32 0.0, %v482
      %v484 = vpop.f32.mrf.mxu0
      %v485 = vadd.f32 0.0, %v484
      %486 = vmatmul.bf16.gmra.mxu0 %v390
      %v487 = vpop.f32.mrf.mxu0
      %v488 = vadd.f32 0.0, %v487
      %v489 = vpop.f32.mrf.mxu0
      %v490 = vadd.f32 0.0, %v489
      %491 = vmatmul.bf16.gmra.mxu0 %v391
      %v492 = vpop.f32.mrf.mxu0
      %v493 = vadd.f32 0.0, %v492
      %v494 = vpop.f32.mrf.mxu0
      %v495 = vadd.f32 0.0, %v494
      %496 = vmatmul.bf16.gmra.mxu0 %v392
      %v497 = vpop.f32.mrf.mxu0
      %v498 = vadd.f32 0.0, %v497
      %v499 = vpop.f32.mrf.mxu0
      %v500 = vadd.f32 0.0, %v499
      %501 = vmatmul.bf16.gmra.mxu0 %v393
      %v502 = vpop.f32.mrf.mxu0
      %v503 = vadd.f32 0.0, %v502
      %v504 = vpop.f32.mrf.mxu0
      %v505 = vadd.f32 0.0, %v504
      %506 = vmatmul.bf16.gmra.mxu0 %v394
      %v507 = vpop.f32.mrf.mxu0
      %v508 = vadd.f32 0.0, %v507
      %v509 = vpop.f32.mrf.mxu0
      %v510 = vadd.f32 0.0, %v509
      %511 = vmatmul.bf16.gmra.mxu0 %v395
      %v512 = vpop.f32.mrf.mxu0
      %v513 = vadd.f32 0.0, %v512
      %v514 = vpop.f32.mrf.mxu0
      %v515 = vadd.f32 0.0, %v514
      %516 = vmatmul.bf16.gmra.mxu0 %v396
      %v517 = vpop.f32.mrf.mxu0
      %v518 = vadd.f32 0.0, %v517
      %v519 = vpop.f32.mrf.mxu0
      %v520 = vadd.f32 0.0, %v519
      %521 = vmatmul.bf16.gmra.mxu0 %v397
      %v522 = vpop.f32.mrf.mxu0
      %v523 = vadd.f32 0.0, %v522
      %v524 = vpop.f32.mrf.mxu0
      %v525 = vadd.f32 0.0, %v524
      %526 = vmatmul.bf16.gmra.mxu0 %v398
      %v527 = vpop.f32.mrf.mxu0
      %v528 = vadd.f32 0.0, %v527
      %v529 = vpop.f32.mrf.mxu0
      %v530 = vadd.f32 0.0, %v529
      %531 = vmatmul.bf16.gmra.mxu0 %v399
      %v532 = vpop.f32.mrf.mxu0
      %v533 = vadd.f32 0.0, %v532
      %v534 = vpop.f32.mrf.mxu0
      %v535 = vadd.f32 0.0, %v534
      %536 = vmatmul.bf16.gmra.mxu0 %v400
      %v537 = vpop.f32.mrf.mxu0
      %v538 = vadd.f32 0.0, %v537
      %v539 = vpop.f32.mrf.mxu0
      %v540 = vadd.f32 0.0, %v539
      %541 = vmatmul.bf16.gmra.mxu0 %v401
      %v542 = vpop.f32.mrf.mxu0
      %v543 = vadd.f32 0.0, %v542
      %v544 = vpop.f32.mrf.mxu0
      %v545 = vadd.f32 0.0, %v544
      %546 = vmatmul.bf16.gmra.mxu0 %v402
      %v547 = vpop.f32.mrf.mxu0
      %v548 = vadd.f32 0.0, %v547
      %v549 = vpop.f32.mrf.mxu0
      %v550 = vadd.f32 0.0, %v549
      %551 = vmatmul.bf16.gmra.mxu0 %v403
      %v552 = vpop.f32.mrf.mxu0
      %v553 = vadd.f32 0.0, %v552
      %v554 = vpop.f32.mrf.mxu0
      %v555 = vadd.f32 0.0, %v554
      %556 = vdwg.mxu0
      %v557 = vld [vmem:[%s4] sm:$0x1]
      %v559 = vperm.slane %v557, 0
      %v561 = vmul.f32 %v478, %v559
      %v562 = vmul.f32 %v480, %v559
      %v563 = vmul.f32 %v483, %v559
      %v564 = vmul.f32 %v485, %v559
      %v565 = vmul.f32 %v488, %v559
      %v566 = vmul.f32 %v490, %v559
      %v567 = vmul.f32 %v493, %v559
      %v568 = vmul.f32 %v495, %v559
      %v569 = vmul.f32 %v498, %v559
      %v570 = vmul.f32 %v500, %v559
      %v571 = vmul.f32 %v503, %v559
      %v572 = vmul.f32 %v505, %v559
      %v573 = vmul.f32 %v508, %v559
      %v574 = vmul.f32 %v510, %v559
      %v575 = vmul.f32 %v513, %v559
      %v576 = vmul.f32 %v515, %v559
      %v577 = vmul.f32 %v518, %v559
      %v578 = vmul.f32 %v520, %v559
      %v579 = vmul.f32 %v523, %v559
      %v580 = vmul.f32 %v525, %v559
      %v581 = vmul.f32 %v528, %v559
      %v582 = vmul.f32 %v530, %v559
      %v583 = vmul.f32 %v533, %v559
      %v584 = vmul.f32 %v535, %v559
      %v585 = vmul.f32 %v538, %v559
      %v586 = vmul.f32 %v540, %v559
      %v587 = vmul.f32 %v543, %v559
      %v588 = vmul.f32 %v545, %v559
      %v589 = vmul.f32 %v548, %v559
      %v590 = vmul.f32 %v550, %v559
      %v591 = vmul.f32 %v553, %v559
      %v592 = vmul.f32 %v555, %v559
      %v593 = vld [vmem:[%s5] sm:$0x1]
      %v595 = vperm.slane %v593, 0
      %v597 = vadd.f32 %v561, %v595
      %v598 = vadd.f32 %v562, %v595
      %v599 = vadd.f32 %v563, %v595
      %v600 = vadd.f32 %v564, %v595
      %v601 = vadd.f32 %v565, %v595
      %v602 = vadd.f32 %v566, %v595
      %v603 = vadd.f32 %v567, %v595
      %v604 = vadd.f32 %v568, %v595
      %v605 = vadd.f32 %v569, %v595
      %v606 = vadd.f32 %v570, %v595
      %v607 = vadd.f32 %v571, %v595
      %v608 = vadd.f32 %v572, %v595
      %v609 = vadd.f32 %v573, %v595
      %v610 = vadd.f32 %v574, %v595
      %v611 = vadd.f32 %v575, %v595
      %v612 = vadd.f32 %v576, %v595
      %v613 = vadd.f32 %v577, %v595
      %v614 = vadd.f32 %v578, %v595
      %v615 = vadd.f32 %v579, %v595
      %v616 = vadd.f32 %v580, %v595
      %v617 = vadd.f32 %v581, %v595
      %v618 = vadd.f32 %v582, %v595
      %v619 = vadd.f32 %v583, %v595
      %v620 = vadd.f32 %v584, %v595
      %v621 = vadd.f32 %v585, %v595
      %v622 = vadd.f32 %v586, %v595
      %v623 = vadd.f32 %v587, %v595
      %v624 = vadd.f32 %v588, %v595
      %v625 = vadd.f32 %v589, %v595
      %v626 = vadd.f32 %v590, %v595
      %v627 = vadd.f32 %v591, %v595
      %v628 = vadd.f32 %v592, %v595
      %v629 = vmax.f32 %v597, 0.0
      %v630 = vmax.f32 %v598, 0.0
      %v631 = vmax.f32 %v599, 0.0
      %v632 = vmax.f32 %v600, 0.0
      %v633 = vmax.f32 %v601, 0.0
      %v634 = vmax.f32 %v602, 0.0
      %v635 = vmax.f32 %v603, 0.0
      %v636 = vmax.f32 %v604, 0.0
      %v637 = vmax.f32 %v605, 0.0
      %v638 = vmax.f32 %v606, 0.0
      %v639 = vmax.f32 %v607, 0.0
      %v640 = vmax.f32 %v608, 0.0
      %v641 = vmax.f32 %v609, 0.0
      %v642 = vmax.f32 %v610, 0.0
      %v643 = vmax.f32 %v611, 0.0
      %v644 = vmax.f32 %v612, 0.0
      %v645 = vmax.f32 %v613, 0.0
      %v646 = vmax.f32 %v614, 0.0
      %v647 = vmax.f32 %v615, 0.0
      %v648 = vmax.f32 %v616, 0.0
      %v649 = vmax.f32 %v617, 0.0
      %v650 = vmax.f32 %v618, 0.0
      %v651 = vmax.f32 %v619, 0.0
      %v652 = vmax.f32 %v620, 0.0
      %v653 = vmax.f32 %v621, 0.0
      %v654 = vmax.f32 %v622, 0.0
      %v655 = vmax.f32 %v623, 0.0
      %v656 = vmax.f32 %v624, 0.0
      %v657 = vmax.f32 %v625, 0.0
      %v658 = vmax.f32 %v626, 0.0
      %v659 = vmax.f32 %v627, 0.0
      %v660 = vmax.f32 %v628, 0.0
      %v661 = vpack.c.bf16 %v629, %v629
      %v662 = vpack.c.bf16 %v630, %v630
      %v663 = vpack.c.bf16 %v631, %v631
      %v664 = vpack.c.bf16 %v632, %v632
      %v665 = vpack.c.bf16 %v633, %v633
      %v666 = vpack.c.bf16 %v634, %v634
      %v667 = vpack.c.bf16 %v635, %v635
      %v668 = vpack.c.bf16 %v636, %v636
      %v669 = vpack.c.bf16 %v637, %v637
      %v670 = vpack.c.bf16 %v638, %v638
      %v671 = vpack.c.bf16 %v639, %v639
      %v672 = vpack.c.bf16 %v640, %v640
      %v673 = vpack.c.bf16 %v641, %v641
      %v674 = vpack.c.bf16 %v642, %v642
      %v675 = vpack.c.bf16 %v643, %v643
      %v676 = vpack.c.bf16 %v644, %v644
      %v677 = vpack.c.bf16 %v645, %v645
      %v678 = vpack.c.bf16 %v646, %v646
      %v679 = vpack.c.bf16 %v647, %v647
      %v680 = vpack.c.bf16 %v648, %v648
      %v681 = vpack.c.bf16 %v649, %v649
      %v682 = vpack.c.bf16 %v650, %v650
      %v683 = vpack.c.bf16 %v651, %v651
      %v684 = vpack.c.bf16 %v652, %v652
      %v685 = vpack.c.bf16 %v653, %v653
      %v686 = vpack.c.bf16 %v654, %v654
      %v687 = vpack.c.bf16 %v655, %v655
      %v688 = vpack.c.bf16 %v656, %v656
      %v689 = vpack.c.bf16 %v657, %v657
      %v690 = vpack.c.bf16 %v658, %v658
      %v691 = vpack.c.bf16 %v659, %v659
      %v692 = vpack.c.bf16 %v660, %v660
      %693 = vst [vmem:[%s251] sm:$0xf] %v661
      %694 = vst [vmem:[%s251 + $0x4] sm:$0xf] %v662
      %695 = vst [vmem:[%s251 + $0x8] sm:$0xf] %v663
      %696 = vst [vmem:[%s251 + $0xc] sm:$0xf] %v664
      %697 = vst [vmem:[%s251 + $0x10] sm:$0xf] %v665
      %698 = vst [vmem:[%s251 + $0x14] sm:$0xf] %v666
      %699 = vst [vmem:[%s251 + $0x18] sm:$0xf] %v667
      %700 = vst [vmem:[%s251 + $0x1c] sm:$0xf] %v668
      %701 = vst [vmem:[%s251 + $0x20] sm:$0xf] %v669
      %702 = vst [vmem:[%s251 + $0x24] sm:$0xf] %v670
      %703 = vst [vmem:[%s251 + $0x28] sm:$0xf] %v671
      %704 = vst [vmem:[%s251 + $0x2c] sm:$0xf] %v672
      %705 = vst [vmem:[%s251 + $0x30] sm:$0xf] %v673
      %706 = vst [vmem:[%s251 + $0x34] sm:$0xf] %v674
      %707 = vst [vmem:[%s251 + $0x38] sm:$0xf] %v675
      %708 = vst [vmem:[%s251 + $0x3c] sm:$0xf] %v676
      %709 = vst [vmem:[%s251 + $0x40] sm:$0xf] %v677
      %710 = vst [vmem:[%s251 + $0x44] sm:$0xf] %v678
      %711 = vst [vmem:[%s251 + $0x48] sm:$0xf] %v679
      %712 = vst [vmem:[%s251 + $0x4c] sm:$0xf] %v680
      %713 = vst [vmem:[%s251 + $0x50] sm:$0xf] %v681
      %714 = vst [vmem:[%s251 + $0x54] sm:$0xf] %v682
      %715 = vst [vmem:[%s251 + $0x58] sm:$0xf] %v683
      %716 = vst [vmem:[%s251 + $0x5c] sm:$0xf] %v684
      %717 = vst [vmem:[%s251 + $0x60] sm:$0xf] %v685
      %718 = vst [vmem:[%s251 + $0x64] sm:$0xf] %v686
      %719 = vst [vmem:[%s251 + $0x68] sm:$0xf] %v687
      %720 = vst [vmem:[%s251 + $0x6c] sm:$0xf] %v688
      %721 = vst [vmem:[%s251 + $0x70] sm:$0xf] %v689
      %722 = vst [vmem:[%s251 + $0x74] sm:$0xf] %v690
      %723 = vst [vmem:[%s251 + $0x78] sm:$0xf] %v691
      %724 = vst [vmem:[%s251 + $0x7c] sm:$0xf] %v692
      %p725 = scmp.lt.s32.totalorder %s17, 1
      %s726 = scalar_select %p725, %s17, 1
      %s727 = smul.addr %s726, 32
      %s728 = smul.addr %s727, 4
      %s729 = scalar_lea.vmem %s6, %s728
      // Predicated region
      $region45: #{bottleneck_forward.7} parent=43 // pred_check
        %p730 = pneg %p166
      $region46: #{bottleneck_forward.7} parent=43 // pred_check_branch
        %732 = sbr.rel (%p730) target = $region48
      $region47: #{bottleneck_forward.7} parent=43 // pred_region
        _
      $region48: #{bottleneck_forward.7} parent=43 // pred_fallthru
        _
    $region44: #{bottleneck_forward.7} parent=5 // pred_fallthru
      _
    %p733 = scmp.le.s32.totalorder 2, %s12
    // Predicated region
    $region49: #{bottleneck_forward.7} parent=5 // pred_check
      %p734 = pneg %p733
    $region50: #{bottleneck_forward.7} parent=5 // pred_check_branch
      %736 = sbr.rel (%p734) target = $region52
    $region51: #{bottleneck_forward.7} parent=5 // pred_region
      %s737 = ssub.s32 %s12, 2
      // Predicated region
      $region53: #{bottleneck_forward.7} parent=51 // pred_check
        %p738 = pneg %p172
      $region54: #{bottleneck_forward.7} parent=51 // pred_check_branch
        %740 = sbr.rel (%p738) target = $region56
      $region55: #{bottleneck_forward.7} parent=51 // pred_region
        %p741 = scmp.lt.s32.totalorder %s18, 1
        %s742 = scalar_select %p741, %s18, 1
        %s743 = smul.addr %s742, 32
        %s744 = smul.addr %s743, 4
        %s745 = scalar_lea.vmem %s6, %s744
      $region56: #{bottleneck_forward.7} parent=51 // pred_fallthru
        _
    $region52: #{bottleneck_forward.7} parent=5 // pred_fallthru
      _
  $region6: #{bottleneck_forward.7} parent=0 // loop_footer
    %s16 = sadd.s32 1, %s12
  $region7: #{bottleneck_forward.7} parent=0 // loop_footer_branch
    %11 = sbr.rel target = $region3
  $region8: #{bottleneck_forward.7} parent=0 // loop_exit
    _

// kernel: bottleneck_forward.5
$region0: #{bottleneck_forward.5}
  #allocation0 [shape = 'u32[]', space=smem, size = 0x4, offset = 0x4, fixed_abs, tag = 'smem constant byte address 0x4 - core index']
  #allocation1 [shape = 'u32[72,128]{1,0:T(1,128)}', space=vmem, size = 0x9000, scoped, tag = 'internal scratch']
  #allocation2 [shape = 'bf16[3,18,16,128]{3,2,1,0:T(8,128)(2,1)}', space=vmem, size = 0x36000, scoped, tag = 'scratch operand']
  %s0 = inlined_call_operand.vmem [shape: bf16[2,16,16,128], index: 0, kind: input, shape index: {}]
  %s1 = inlined_call_operand.vmem [shape: bf16[128,128], index: 1, kind: input, shape index: {}]
  %s2 = inlined_call_operand.vmem [shape: f32[1,128], index: 2, kind: input, shape index: {}]
  %s3 = inlined_call_operand.vmem [shape: f32[1,128], index: 3, kind: input, shape index: {}]
  %s4 = inlined_call_operand.vmem [shape: bf16[9,128,128], index: 4, kind: input, shape index: {}]
  %s5 = inlined_call_operand.vmem [shape: f32[2,16,16,128], index: 5, kind: output, shape index: {0}]
  %s6 = inlined_call_operand.vmem [shape: f32[2,2,128], index: 6, kind: output, shape index: {1}]
  %7 = xla_tuple %s5, %s6
  %s8 = sld [smem:[#allocation0]]
  $region61: #{bottleneck_forward.5} parent=0
    _
  %s10 = ssub.s32 1, %s8
  %s11 = scalar_select 0, %s10, %s8
  loop: start=0, step=1, limit=4
  $region2: #{bottleneck_forward.5} parent=0 // loop_pre_header
    _
  $region3: #{bottleneck_forward.5} parent=0 // loop_header
    %s13 = sphi 0, %s17
    %p14 = scmp.ge.s32.totalorder %s13, 4
    %s23 = sphi 0, %s25
    %s26 = sphi 0, %s23
    %s27 = sphi 0, %s26
    %s43 = sphi 0, %s27
    %s47 = sphi 0, %s47
    %s49 = sphi 0, %s47
    %s50 = sphi 0, %s49
    %s64 = sphi 0, %s50
    %s68 = sphi 0, %s68
    %s70 = sphi 0, %s68
    %s71 = sphi 0, %s70
    %s85 = sphi 0, %s71
    %s89 = sphi 0, %s89
    %s91 = sphi 0, %s89
    %s92 = sphi 0, %s91
    %s106 = sphi 0, %s92
    %s110 = sphi 0, %s110
    %s112 = sphi 0, %s110
    %s113 = sphi 0, %s112
    %s127 = sphi 0, %s113
    %s133 = sphi 0, %s135
    %s136 = sphi 0, %s133
    %s137 = sphi 0, %s136
    %s153 = sphi 0, %s137
    %s159 = sphi 0, %s161
    %s162 = sphi 0, %s159
    %s163 = sphi 0, %s162
    %s179 = sphi 0, %s163
  $region4: #{bottleneck_forward.5} parent=0 // loop_header_branch
    %16 = sbr.rel (%p14) target = $region8
  $region5: #{bottleneck_forward.5} parent=0 // loop_body
    %s18 = ssub.s32 %s13, 1
    %s19 = ssub.s32 %s13, 2
    %s20 = sadd.s32 %s13, 1
    %s21 = ssub.s32 %s13, %s20
    %p22 = scmp.eq.s32.totalorder %s21, 0
    %s24 = sadd.s32 %s23, 1
    %s25 = scalar_select %p22, %s23, %s24
    %p28 = pneg %p22
    %p29 = scmp.eq.s32.totalorder %s13, 1
    %p30 = por %p28, %p29
    %p31 = scmp.ne.s32.totalorder %s23, %s26
    %p32 = scmp.eq.s32.totalorder %s13, 0
    %p33 = por %p31, %p32
    %p34 = scmp.ne.s32.totalorder %s23, %s26
    %p35 = scmp.eq.s32.totalorder %s18, 1
    %p36 = por %p34, %p35
    %p37 = scmp.ne.s32.totalorder %s26, %s27
    %p38 = scmp.eq.s32.totalorder %s18, 0
    %p39 = por %p37, %p38
    %p40 = scmp.ne.s32.totalorder %s26, %s27
    %p41 = scmp.eq.s32.totalorder %s19, 1
    %p42 = por %p40, %p41
    %p44 = scmp.ne.s32.totalorder %s27, %s43
    %p45 = scmp.eq.s32.totalorder %s19, 0
    %p46 = por %p44, %p45
    %s48 = sadd.s32 %s47, 1
    %p51 = scmp.eq.s32.totalorder %s13, 1
    %p52 = scmp.ne.s32.totalorder %s47, %s49
    %p53 = scmp.eq.s32.totalorder %s13, 0
    %p54 = por %p52, %p53
    %p55 = scmp.ne.s32.totalorder %s47, %s49
    %p56 = scmp.eq.s32.totalorder %s18, 1
    %p57 = por %p55, %p56
    %p58 = scmp.ne.s32.totalorder %s49, %s50
    %p59 = scmp.eq.s32.totalorder %s18, 0
    %p60 = por %p58, %p59
    %p61 = scmp.ne.s32.totalorder %s49, %s50
    %p62 = scmp.eq.s32.totalorder %s19, 1
    %p63 = por %p61, %p62
    %p65 = scmp.ne.s32.totalorder %s50, %s64
    %p66 = scmp.eq.s32.totalorder %s19, 0
    %p67 = por %p65, %p66
    %s69 = sadd.s32 %s68, 1
    %p72 = scmp.eq.s32.totalorder %s13, 1
    %p73 = scmp.ne.s32.totalorder %s68, %s70
    %p74 = scmp.eq.s32.totalorder %s13, 0
    %p75 = por %p73, %p74
    %p76 = scmp.ne.s32.totalorder %s68, %s70
    %p77 = scmp.eq.s32.totalorder %s18, 1
    %p78 = por %p76, %p77
    %p79 = scmp.ne.s32.totalorder %s70, %s71
    %p80 = scmp.eq.s32.totalorder %s18, 0
    %p81 = por %p79, %p80
    %p82 = scmp.ne.s32.totalorder %s70, %s71
    %p83 = scmp.eq.s32.totalorder %s19, 1
    %p84 = por %p82, %p83
    %p86 = scmp.ne.s32.totalorder %s71, %s85
    %p87 = scmp.eq.s32.totalorder %s19, 0
    %p88 = por %p86, %p87
    %s90 = sadd.s32 %s89, 1
    %p93 = scmp.eq.s32.totalorder %s13, 1
    %p94 = scmp.ne.s32.totalorder %s89, %s91
    %p95 = scmp.eq.s32.totalorder %s13, 0
    %p96 = por %p94, %p95
    %p97 = scmp.ne.s32.totalorder %s89, %s91
    %p98 = scmp.eq.s32.totalorder %s18, 1
    %p99 = por %p97, %p98
    %p100 = scmp.ne.s32.totalorder %s91, %s92
    %p101 = scmp.eq.s32.totalorder %s18, 0
    %p102 = por %p100, %p101
    %p103 = scmp.ne.s32.totalorder %s91, %s92
    %p104 = scmp.eq.s32.totalorder %s19, 1
    %p105 = por %p103, %p104
    %p107 = scmp.ne.s32.totalorder %s92, %s106
    %p108 = scmp.eq.s32.totalorder %s19, 0
    %p109 = por %p107, %p108
    %s111 = sadd.s32 %s110, 1
    %p114 = scmp.eq.s32.totalorder %s13, 1
    %p115 = scmp.ne.s32.totalorder %s110, %s112
    %p116 = scmp.eq.s32.totalorder %s13, 0
    %p117 = por %p115, %p116
    %p118 = scmp.ne.s32.totalorder %s110, %s112
    %p119 = scmp.eq.s32.totalorder %s18, 1
    %p120 = por %p118, %p119
    %p121 = scmp.ne.s32.totalorder %s112, %s113
    %p122 = scmp.eq.s32.totalorder %s18, 0
    %p123 = por %p121, %p122
    %p124 = scmp.ne.s32.totalorder %s112, %s113
    %p125 = scmp.eq.s32.totalorder %s19, 1
    %p126 = por %p124, %p125
    %p128 = scmp.ne.s32.totalorder %s113, %s127
    %p129 = scmp.eq.s32.totalorder %s19, 0
    %p130 = por %p128, %p129
    %s131 = ssub.s32 %s13, %s20
    %p132 = scmp.eq.s32.totalorder %s131, 0
    %s134 = sadd.s32 %s133, 1
    %s135 = scalar_select %p132, %s133, %s134
    %p138 = pneg %p132
    %p139 = scmp.eq.s32.totalorder %s13, 1
    %p140 = por %p138, %p139
    %p141 = scmp.ne.s32.totalorder %s133, %s136
    %p142 = scmp.eq.s32.totalorder %s13, 0
    %p143 = por %p141, %p142
    %p144 = scmp.ne.s32.totalorder %s133, %s136
    %p145 = scmp.eq.s32.totalorder %s18, 1
    %p146 = por %p144, %p145
    %p147 = scmp.ne.s32.totalorder %s136, %s137
    %p148 = scmp.eq.s32.totalorder %s18, 0
    %p149 = por %p147, %p148
    %p150 = scmp.ne.s32.totalorder %s136, %s137
    %p151 = scmp.eq.s32.totalorder %s19, 1
    %p152 = por %p150, %p151
    %p154 = scmp.ne.s32.totalorder %s137, %s153
    %p155 = scmp.eq.s32.totalorder %s19, 0
    %p156 = por %p154, %p155
    %s157 = ssub.s32 %s13, %s20
    %p158 = scmp.eq.s32.totalorder %s157, 0
    %s160 = sadd.s32 %s159, 1
    %s161 = scalar_select %p158, %s159, %s160
    %p164 = pneg %p158
    %p165 = scmp.eq.s32.totalorder %s13, 1
    %p166 = por %p164, %p165
    %p167 = scmp.ne.s32.totalorder %s159, %s162
    %p168 = scmp.eq.s32.totalorder %s13, 0
    %p169 = por %p167, %p168
    %p170 = scmp.ne.s32.totalorder %s159, %s162
    %p171 = scmp.eq.s32.totalorder %s18, 1
    %p172 = por %p170, %p171
    %p173 = scmp.ne.s32.totalorder %s162, %s163
    %p174 = scmp.eq.s32.totalorder %s18, 0
    %p175 = por %p173, %p174
    %p176 = scmp.ne.s32.totalorder %s162, %s163
    %p177 = scmp.eq.s32.totalorder %s19, 1
    %p178 = por %p176, %p177
    %p180 = scmp.ne.s32.totalorder %s163, %s179
    %p181 = scmp.eq.s32.totalorder %s19, 0
    %p182 = por %p180, %p181
    %p183 = scmp.le.s32.totalorder 1, %s13
    %p184 = scmp.lt.s32.totalorder %s13, 3
    %p185 = pnand %p183, %p184
    %p186 = pneg %p185
    // Predicated region
    $region9: #{bottleneck_forward.5} parent=5 // pred_check
      _
    $region10: #{bottleneck_forward.5} parent=5 // pred_check_branch
      %188 = sbr.rel (%p185) target = $region12
    $region11: #{bottleneck_forward.5} parent=5 // pred_region
      %s189 = ssub.s32 %s13, 1
      // Predicated region
      $region13: #{bottleneck_forward.5} parent=11 // pred_check
        %p190 = pneg %p60
      $region14: #{bottleneck_forward.5} parent=11 // pred_check_branch
        %192 = sbr.rel (%p190) target = $region16
      $region15: #{bottleneck_forward.5} parent=11 // pred_region
        _
      $region16: #{bottleneck_forward.5} parent=11 // pred_fallthru
        _
      // Predicated region
      $region17: #{bottleneck_forward.5} parent=11 // pred_check
        %p193 = pneg %p81
      $region18: #{bottleneck_forward.5} parent=11 // pred_check_branch
        %195 = sbr.rel (%p193) target = $region20
      $region19: #{bottleneck_forward.5} parent=11 // pred_region
        _
      $region20: #{bottleneck_forward.5} parent=11 // pred_fallthru
        _
      // Predicated region
      $region21: #{bottleneck_forward.5} parent=11 // pred_check
        %p196 = pneg %p102
      $region22: #{bottleneck_forward.5} parent=11 // pred_check_branch
        %198 = sbr.rel (%p196) target = $region24
      $region23: #{bottleneck_forward.5} parent=11 // pred_region
        _
      $region24: #{bottleneck_forward.5} parent=11 // pred_fallthru
        _
      // Predicated region
      $region25: #{bottleneck_forward.5} parent=11 // pred_check
        %p199 = pneg %p123
      $region26: #{bottleneck_forward.5} parent=11 // pred_check_branch
        %201 = sbr.rel (%p199) target = $region28
      $region27: #{bottleneck_forward.5} parent=11 // pred_region
        _
      $region28: #{bottleneck_forward.5} parent=11 // pred_fallthru
        _
    $region12: #{bottleneck_forward.5} parent=5 // pred_fallthru
      _
    %p202 = scmp.lt.s32.totalorder %s13, 2
    // Predicated region
    $region29: #{bottleneck_forward.5} parent=5 // pred_check
      %p203 = pneg %p202
    $region30: #{bottleneck_forward.5} parent=5 // pred_check_branch
      %205 = sbr.rel (%p203) target = $region32
    $region31: #{bottleneck_forward.5} parent=5 // pred_region
      // Predicated region
      $region33: #{bottleneck_forward.5} parent=31 // pred_check
        %p206 = pneg %p33
      $region34: #{bottleneck_forward.5} parent=31 // pred_check_branch
        %208 = sbr.rel (%p206) target = $region36
      $region35: #{bottleneck_forward.5} parent=31 // pred_region
        %p209 = scmp.lt.s32.totalorder %s13, 1
        %s210 = scalar_select %p209, %s13, 1
        %s211 = smul.addr %s210, 32
        %s212 = smul.addr %s211, 4
        %s213 = scalar_lea.vmem %s0, %s212
      $region36: #{bottleneck_forward.5} parent=31 // pred_fallthru
        _
    $region32: #{bottleneck_forward.5} parent=5 // pred_fallthru
      _
    %p214 = scmp.le.s32.totalorder 1, %s13
    %p215 = scmp.lt.s32.totalorder %s13, 3
    %p216 = pnand %p214, %p215
    %p217 = pneg %p216
    // Predicated region
    $region37: #{bottleneck_forward.5} parent=5 // pred_check
      _
    $region38: #{bottleneck_forward.5} parent=5 // pred_check_branch
      %219 = sbr.rel (%p216) target = $region40
    $region39: #{bottleneck_forward.5} parent=5 // pred_region
      %s220 = ssub.s32 %s13, 1
      %p221 = scmp.lt.s32.totalorder %s18, 1
      %s222 = scalar_select %p221, %s18, 1
      %s223 = smul.addr %s222, 32
      %s224 = smul.addr %s223, 4
      %s225 = scalar_lea.vmem %s0, %s224
      %p226 = pneg %p39
      %p227 = pneg %p36
      %p228 = pneg %p60
      %p229 = pneg %p57
      %p230 = pneg %p81
      %p231 = pneg %p78
      %p232 = pneg %p102
      %p233 = pneg %p99
      %p234 = pneg %p123
      %p235 = pneg %p120
      %p236 = pneg %p149
      %p237 = pneg %p146
      %p238 = scmp.lt.s32.totalorder %s18, 1
      %s239 = scalar_select %p238, %s18, 1
      %s240 = smul.addr %s239, 32
      %s241 = smul.addr %s240, 8
      %s242 = scalar_lea.vmem %s5, %s241
      %p243 = pneg %p175
      %p244 = pneg %p172
      %p245 = scmp.lt.s32.totalorder %s18, 1
      %s246 = scalar_select %p245, %s18, 1
      %s247 = smul.addr %s246, 2
      %s248 = scalar_lea.vmem %s6, %s247
      %p249 = scmp.lt.s32.totalorder %s18, 1
      %s250 = scalar_select %p249, %s18, 1
      %s251 = smul.addr %s250, 32
      %s252 = smul.addr %s251, 4
      %s253 = scalar_lea.vmem %s0, %s252
      %p254 = scmp.lt.s32.totalorder %s18, 1
      %s255 = scalar_select %p254, %s18, 1
      %s256 = smul.addr %s255, 32
      %s257 = smul.addr %s256, 8
      %s258 = scalar_lea.vmem %s5, %s257
      %p259 = scmp.lt.s32.totalorder %s18, 1
      %s260 = scalar_select %p259, %s18, 1
      %s261 = smul.addr %s260, 2
      %s262 = scalar_lea.vmem %s6, %s261
      %v264 = vld [vmem:[%s253] sm:$0xf]
      %v265 = vld [vmem:[%s253 + $0x4] sm:$0xf]
      %v266 = vld [vmem:[%s253 + $0x8] sm:$0xf]
      %v267 = vld [vmem:[%s253 + $0xc] sm:$0xf]
      %v268 = vld [vmem:[%s253 + $0x10] sm:$0xf]
      %v269 = vld [vmem:[%s253 + $0x14] sm:$0xf]
      %v270 = vld [vmem:[%s253 + $0x18] sm:$0xf]
      %v271 = vld [vmem:[%s253 + $0x1c] sm:$0xf]
      %v272 = vld [vmem:[%s253 + $0x20] sm:$0xf]
      %v273 = vld [vmem:[%s253 + $0x24] sm:$0xf]
      %v274 = vld [vmem:[%s253 + $0x28] sm:$0xf]
      %v275 = vld [vmem:[%s253 + $0x2c] sm:$0xf]
      %v276 = vld [vmem:[%s253 + $0x30] sm:$0xf]
      %v277 = vld [vmem:[%s253 + $0x34] sm:$0xf]
      %v278 = vld [vmem:[%s253 + $0x38] sm:$0xf]
      %v279 = vld [vmem:[%s253 + $0x3c] sm:$0xf]
      %v280 = vld [vmem:[%s253 + $0x40] sm:$0xf]
      %v281 = vld [vmem:[%s253 + $0x44] sm:$0xf]
      %v282 = vld [vmem:[%s253 + $0x48] sm:$0xf]
      %v283 = vld [vmem:[%s253 + $0x4c] sm:$0xf]
      %v284 = vld [vmem:[%s253 + $0x50] sm:$0xf]
      %v285 = vld [vmem:[%s253 + $0x54] sm:$0xf]
      %v286 = vld [vmem:[%s253 + $0x58] sm:$0xf]
      %v287 = vld [vmem:[%s253 + $0x5c] sm:$0xf]
      %v288 = vld [vmem:[%s253 + $0x60] sm:$0xf]
      %v289 = vld [vmem:[%s253 + $0x64] sm:$0xf]
      %v290 = vld [vmem:[%s253 + $0x68] sm:$0xf]
      %v291 = vld [vmem:[%s253 + $0x6c] sm:$0xf]
      %v292 = vld [vmem:[%s253 + $0x70] sm:$0xf]
      %v293 = vld [vmem:[%s253 + $0x74] sm:$0xf]
      %v294 = vld [vmem:[%s253 + $0x78] sm:$0xf]
      %v295 = vld [vmem:[%s253 + $0x7c] sm:$0xf]
      %v296 = vld [vmem:[%s1] sm:$0xf]
      %v297 = vld [vmem:[%s1 + $0x4] sm:$0xf]
      %v298 = vld [vmem:[%s1 + $0x8] sm:$0xf]
      %v299 = vld [vmem:[%s1 + $0xc] sm:$0xf]
      %v300 = vld [vmem:[%s1 + $0x10] sm:$0xf]
      %v301 = vld [vmem:[%s1 + $0x14] sm:$0xf]
      %v302 = vld [vmem:[%s1 + $0x18] sm:$0xf]
      %v303 = vld [vmem:[%s1 + $0x1c] sm:$0xf]
      %v304 = vld [vmem:[%s1 + $0x20] sm:$0xf]
      %v305 = vld [vmem:[%s1 + $0x24] sm:$0xf]
      %v306 = vld [vmem:[%s1 + $0x28] sm:$0xf]
      %v307 = vld [vmem:[%s1 + $0x2c] sm:$0xf]
      %v308 = vld [vmem:[%s1 + $0x30] sm:$0xf]
      %v309 = vld [vmem:[%s1 + $0x34] sm:$0xf]
      %v310 = vld [vmem:[%s1 + $0x38] sm:$0xf]
      %v311 = vld [vmem:[%s1 + $0x3c] sm:$0xf]
      %v344 = vunpack.c.l.b16 %v264
      %v345 = vunpack.c.l.b16 %v265
      %v346 = vunpack.c.l.b16 %v266
      %v347 = vunpack.c.l.b16 %v267
      %v348 = vunpack.c.l.b16 %v268
      %v349 = vunpack.c.l.b16 %v269
      %v350 = vunpack.c.l.b16 %v270
      %v351 = vunpack.c.l.b16 %v271
      %v352 = vunpack.c.l.b16 %v272
      %v353 = vunpack.c.l.b16 %v273
      %v354 = vunpack.c.l.b16 %v274
      %v355 = vunpack.c.l.b16 %v275
      %v356 = vunpack.c.l.b16 %v276
      %v357 = vunpack.c.l.b16 %v277
      %v358 = vunpack.c.l.b16 %v278
      %v359 = vunpack.c.l.b16 %v279
      %v360 = vunpack.c.l.b16 %v280
      %v361 = vunpack.c.l.b16 %v281
      %v362 = vunpack.c.l.b16 %v282
      %v363 = vunpack.c.l.b16 %v283
      %v364 = vunpack.c.l.b16 %v284
      %v365 = vunpack.c.l.b16 %v285
      %v366 = vunpack.c.l.b16 %v286
      %v367 = vunpack.c.l.b16 %v287
      %v368 = vunpack.c.l.b16 %v288
      %v369 = vunpack.c.l.b16 %v289
      %v370 = vunpack.c.l.b16 %v290
      %v371 = vunpack.c.l.b16 %v291
      %v372 = vunpack.c.l.b16 %v292
      %v373 = vunpack.c.l.b16 %v293
      %v374 = vunpack.c.l.b16 %v294
      %v375 = vunpack.c.l.b16 %v295
      %v376 = vpack.c.b16 %v345, %v344
      %v377 = vpack.c.b16 %v347, %v346
      %v378 = vpack.c.b16 %v349, %v348
      %v379 = vpack.c.b16 %v351, %v350
      %v380 = vpack.c.b16 %v353, %v352
      %v381 = vpack.c.b16 %v355, %v354
      %v382 = vpack.c.b16 %v357, %v356
      %v383 = vpack.c.b16 %v359, %v358
      %v384 = vpack.c.b16 %v361, %v360
      %v385 = vpack.c.b16 %v363, %v362
      %v386 = vpack.c.b16 %v365, %v364
      %v387 = vpack.c.b16 %v367, %v366
      %v388 = vpack.c.b16 %v369, %v368
      %v389 = vpack.c.b16 %v371, %v370
      %v390 = vpack.c.b16 %v373, %v372
      %v391 = vpack.c.b16 %v375, %v374
      %v424 = vunpack.c.l.b16 %v296
      %v425 = vunpack.c.l.b16 %v297
      %v426 = vunpack.c.l.b16 %v298
      %v427 = vunpack.c.l.b16 %v299
      %v428 = vunpack.c.l.b16 %v300
      %v429 = vunpack.c.l.b16 %v301
      %v430 = vunpack.c.l.b16 %v302
      %v431 = vunpack.c.l.b16 %v303
      %v432 = vunpack.c.l.b16 %v304
      %v433 = vunpack.c.l.b16 %v305
      %v434 = vunpack.c.l.b16 %v306
      %v435 = vunpack.c.l.b16 %v307
      %v436 = vunpack.c.l.b16 %v308
      %v437 = vunpack.c.l.b16 %v309
      %v438 = vunpack.c.l.b16 %v310
      %v439 = vunpack.c.l.b16 %v311
      %v440 = vpack.c.b16 %v425, %v424
      %v441 = vpack.c.b16 %v427, %v426
      %v442 = vpack.c.b16 %v429, %v428
      %v443 = vpack.c.b16 %v431, %v430
      %v444 = vpack.c.b16 %v433, %v432
      %v445 = vpack.c.b16 %v435, %v434
      %v446 = vpack.c.b16 %v437, %v436
      %v447 = vpack.c.b16 %v439, %v438
      %456 = vmatpush.bf16.msra.mxu0 %v447
      %457 = vmatpush.bf16.msra.mxu0 %v446
      %458 = vmatpush.bf16.msra.mxu0 %v445
      %459 = vmatpush.bf16.msra.mxu0 %v444
      %460 = vmatpush.bf16.msra.mxu0 %v443
      %461 = vmatpush.bf16.msra.mxu0 %v442
      %462 = vmatpush.bf16.msra.mxu0 %v441
      %463 = vmatpush.bf16.msra.mxu0 %v440
      %464 = vmatmul.bf16.gmra.mxu0 %v376
      %v465 = vpop.f32.mrf.mxu0
      %v466 = vadd.f32 0.0, %v465
      %v467 = vpop.f32.mrf.mxu0
      %v468 = vadd.f32 0.0, %v467
      %469 = vmatmul.bf16.gmra.mxu0 %v377
      %v470 = vpop.f32.mrf.mxu0
      %v471 = vadd.f32 0.0, %v470
      %v472 = vpop.f32.mrf.mxu0
      %v473 = vadd.f32 0.0, %v472
      %474 = vmatmul.bf16.gmra.mxu0 %v378
      %v475 = vpop.f32.mrf.mxu0
      %v476 = vadd.f32 0.0, %v475
      %v477 = vpop.f32.mrf.mxu0
      %v478 = vadd.f32 0.0, %v477
      %479 = vmatmul.bf16.gmra.mxu0 %v379
      %v480 = vpop.f32.mrf.mxu0
      %v481 = vadd.f32 0.0, %v480
      %v482 = vpop.f32.mrf.mxu0
      %v483 = vadd.f32 0.0, %v482
      %484 = vmatmul.bf16.gmra.mxu0 %v380
      %v485 = vpop.f32.mrf.mxu0
      %v486 = vadd.f32 0.0, %v485
      %v487 = vpop.f32.mrf.mxu0
      %v488 = vadd.f32 0.0, %v487
      %489 = vmatmul.bf16.gmra.mxu0 %v381
      %v490 = vpop.f32.mrf.mxu0
      %v491 = vadd.f32 0.0, %v490
      %v492 = vpop.f32.mrf.mxu0
      %v493 = vadd.f32 0.0, %v492
      %494 = vmatmul.bf16.gmra.mxu0 %v382
      %v495 = vpop.f32.mrf.mxu0
      %v496 = vadd.f32 0.0, %v495
      %v497 = vpop.f32.mrf.mxu0
      %v498 = vadd.f32 0.0, %v497
      %499 = vmatmul.bf16.gmra.mxu0 %v383
      %v500 = vpop.f32.mrf.mxu0
      %v501 = vadd.f32 0.0, %v500
      %v502 = vpop.f32.mrf.mxu0
      %v503 = vadd.f32 0.0, %v502
      %504 = vmatmul.bf16.gmra.mxu0 %v384
      %v505 = vpop.f32.mrf.mxu0
      %v506 = vadd.f32 0.0, %v505
      %v507 = vpop.f32.mrf.mxu0
      %v508 = vadd.f32 0.0, %v507
      %509 = vmatmul.bf16.gmra.mxu0 %v385
      %v510 = vpop.f32.mrf.mxu0
      %v511 = vadd.f32 0.0, %v510
      %v512 = vpop.f32.mrf.mxu0
      %v513 = vadd.f32 0.0, %v512
      %514 = vmatmul.bf16.gmra.mxu0 %v386
      %v515 = vpop.f32.mrf.mxu0
      %v516 = vadd.f32 0.0, %v515
      %v517 = vpop.f32.mrf.mxu0
      %v518 = vadd.f32 0.0, %v517
      %519 = vmatmul.bf16.gmra.mxu0 %v387
      %v520 = vpop.f32.mrf.mxu0
      %v521 = vadd.f32 0.0, %v520
      %v522 = vpop.f32.mrf.mxu0
      %v523 = vadd.f32 0.0, %v522
      %524 = vmatmul.bf16.gmra.mxu0 %v388
      %v525 = vpop.f32.mrf.mxu0
      %v526 = vadd.f32 0.0, %v525
      %v527 = vpop.f32.mrf.mxu0
      %v528 = vadd.f32 0.0, %v527
      %529 = vmatmul.bf16.gmra.mxu0 %v389
      %v530 = vpop.f32.mrf.mxu0
      %v531 = vadd.f32 0.0, %v530
      %v532 = vpop.f32.mrf.mxu0
      %v533 = vadd.f32 0.0, %v532
      %534 = vmatmul.bf16.gmra.mxu0 %v390
      %v535 = vpop.f32.mrf.mxu0
      %v536 = vadd.f32 0.0, %v535
      %v537 = vpop.f32.mrf.mxu0
      %v538 = vadd.f32 0.0, %v537
      %539 = vmatmul.bf16.gmra.mxu0 %v391
      %v540 = vpop.f32.mrf.mxu0
      %v541 = vadd.f32 0.0, %v540
      %v542 = vpop.f32.mrf.mxu0
      %v543 = vadd.f32 0.0, %v542
      %544 = vdwg.mxu0
      %v545 = vld [vmem:[%s2] sm:$0x1]
      %v547 = vperm.slane %v545, 0
      %v549 = vmul.f32 %v466, %v547
      %v550 = vmul.f32 %v468, %v547
      %v551 = vmul.f32 %v471, %v547
      %v552 = vmul.f32 %v473, %v547
      %v553 = vmul.f32 %v476, %v547
      %v554 = vmul.f32 %v478, %v547
      %v555 = vmul.f32 %v481, %v547
      %v556 = vmul.f32 %v483, %v547
      %v557 = vmul.f32 %v486, %v547
      %v558 = vmul.f32 %v488, %v547
      %v559 = vmul.f32 %v491, %v547
      %v560 = vmul.f32 %v493, %v547
      %v561 = vmul.f32 %v496, %v547
      %v562 = vmul.f32 %v498, %v547
      %v563 = vmul.f32 %v501, %v547
      %v564 = vmul.f32 %v503, %v547
      %v565 = vmul.f32 %v506, %v547
      %v566 = vmul.f32 %v508, %v547
      %v567 = vmul.f32 %v511, %v547
      %v568 = vmul.f32 %v513, %v547
      %v569 = vmul.f32 %v516, %v547
      %v570 = vmul.f32 %v518, %v547
      %v571 = vmul.f32 %v521, %v547
      %v572 = vmul.f32 %v523, %v547
      %v573 = vmul.f32 %v526, %v547
      %v574 = vmul.f32 %v528, %v547
      %v575 = vmul.f32 %v531, %v547
      %v576 = vmul.f32 %v533, %v547
      %v577 = vmul.f32 %v536, %v547
      %v578 = vmul.f32 %v538, %v547
      %v579 = vmul.f32 %v541, %v547
      %v580 = vmul.f32 %v543, %v547
      %v581 = vld [vmem:[%s3] sm:$0x1]
      %v583 = vperm.slane %v581, 0
      %v585 = vadd.f32 %v549, %v583
      %v586 = vadd.f32 %v550, %v583
      %v587 = vadd.f32 %v551, %v583
      %v588 = vadd.f32 %v552, %v583
      %v589 = vadd.f32 %v553, %v583
      %v590 = vadd.f32 %v554, %v583
      %v591 = vadd.f32 %v555, %v583
      %v592 = vadd.f32 %v556, %v583
      %v593 = vadd.f32 %v557, %v583
      %v594 = vadd.f32 %v558, %v583
      %v595 = vadd.f32 %v559, %v583
      %v596 = vadd.f32 %v560, %v583
      %v597 = vadd.f32 %v561, %v583
      %v598 = vadd.f32 %v562, %v583
      %v599 = vadd.f32 %v563, %v583
      %v600 = vadd.f32 %v564, %v583
      %v601 = vadd.f32 %v565, %v583
      %v602 = vadd.f32 %v566, %v583
      %v603 = vadd.f32 %v567, %v583
      %v604 = vadd.f32 %v568, %v583
      %v605 = vadd.f32 %v569, %v583
      %v606 = vadd.f32 %v570, %v583
      %v607 = vadd.f32 %v571, %v583
      %v608 = vadd.f32 %v572, %v583
      %v609 = vadd.f32 %v573, %v583
      %v610 = vadd.f32 %v574, %v583
      %v611 = vadd.f32 %v575, %v583
      %v612 = vadd.f32 %v576, %v583
      %v613 = vadd.f32 %v577, %v583
      %v614 = vadd.f32 %v578, %v583
      %v615 = vadd.f32 %v579, %v583
      %v616 = vadd.f32 %v580, %v583
      %v617 = vmax.f32 %v585, 0.0
      %v618 = vmax.f32 %v586, 0.0
      %v619 = vmax.f32 %v587, 0.0
      %v620 = vmax.f32 %v588, 0.0
      %v621 = vmax.f32 %v589, 0.0
      %v622 = vmax.f32 %v590, 0.0
      %v623 = vmax.f32 %v591, 0.0
      %v624 = vmax.f32 %v592, 0.0
      %v625 = vmax.f32 %v593, 0.0
      %v626 = vmax.f32 %v594, 0.0
      %v627 = vmax.f32 %v595, 0.0
      %v628 = vmax.f32 %v596, 0.0
      %v629 = vmax.f32 %v597, 0.0
      %v630 = vmax.f32 %v598, 0.0
      %v631 = vmax.f32 %v599, 0.0
      %v632 = vmax.f32 %v600, 0.0
      %v633 = vmax.f32 %v601, 0.0
      %v634 = vmax.f32 %v602, 0.0
      %v635 = vmax.f32 %v603, 0.0
      %v636 = vmax.f32 %v604, 0.0
      %v637 = vmax.f32 %v605, 0.0
      %v638 = vmax.f32 %v606, 0.0
      %v639 = vmax.f32 %v607, 0.0
      %v640 = vmax.f32 %v608, 0.0
      %v641 = vmax.f32 %v609, 0.0
      %v642 = vmax.f32 %v610, 0.0
      %v643 = vmax.f32 %v611, 0.0
      %v644 = vmax.f32 %v612, 0.0
      %v645 = vmax.f32 %v613, 0.0
      %v646 = vmax.f32 %v614, 0.0
      %v647 = vmax.f32 %v615, 0.0
      %v648 = vmax.f32 %v616, 0.0
      %649 = vst [vmem:[#allocation2] sm:$0xf] 0
      %650 = vst [vmem:[#allocation2 + $0x4] sm:$0xf] 0
      %651 = vst [vmem:[#allocation2 + $0x90] sm:$0xf] 0
      %652 = vst [vmem:[#allocation2 + $0x94] sm:$0xf] 0
      %653 = vst [vmem:[#allocation2 + $0x120] sm:$0xf] 0
      %654 = vst [vmem:[#allocation2 + $0x124] sm:$0xf] 0
      %s655 = scalar_lea.vmem [#allocation2], 136
      %656 = vst [vmem:[%s655] sm:$0xf] 0
      %657 = vst [vmem:[%s655 + $0x4] sm:$0xf] 0
      %658 = vst [vmem:[%s655 + $0x90] sm:$0xf] 0
      %659 = vst [vmem:[%s655 + $0x94] sm:$0xf] 0
      %660 = vst [vmem:[%s655 + $0x120] sm:$0xf] 0
      %661 = vst [vmem:[%s655 + $0x124] sm:$0xf] 0
      %v662 = vrot.slane %v617, 7
      %v663 = vrot.slane %v619, 7
      %v664 = vrot.slane %v621, 7
      %v665 = vrot.slane %v623, 7
      %v666 = vrot.slane %v625, 7
      %v667 = vrot.slane %v627, 7
      %v668 = vrot.slane %v629, 7
      %v669 = vrot.slane %v631, 7
      %v670 = vrot.slane %v633, 7
      %v671 = vrot.slane %v635, 7
      %v672 = vrot.slane %v637, 7
      %v673 = vrot.slane %v639, 7
      %v674 = vrot.slane %v641, 7
      %v675 = vrot.slane %v643, 7
      %v676 = vrot.slane %v645, 7
      %v677 = vrot.slane %v647, 7
      %v678 = vrot.slane %v618, 7
      %v679 = vrot.slane %v620, 7
      %v680 = vrot.slane %v622, 7
      %v681 = vrot.slane %v624, 7
      %v682 = vrot.slane %v626, 7
      %v683 = vrot.slane %v628, 7
      %v684 = vrot.slane %v630, 7
      %v685 = vrot.slane %v632, 7
      %v686 = vrot.slane %v634, 7
      %v687 = vrot.slane %v636, 7
      %v688 = vrot.slane %v638, 7
      %v689 = vrot.slane %v640, 7
      %v690 = vrot.slane %v642, 7
      %v691 = vrot.slane %v644, 7
      %v692 = vrot.slane %v646, 7
      %v693 = vrot.slane %v648, 7
      %v694 = vlaneseq
      %v695 = vshrl.u32 %v694, 7
      %vm696 = vcmp.lt.s32.totalorder %v695, 1
      %v697 = vsel %vm696, %v662, %v678
      %v698 = vsel %vm696, %v663, %v679
      %v699 = vsel %vm696, %v664, %v680
      %v700 = vsel %vm696, %v665, %v681
      %v701 = vsel %vm696, %v666, %v682
      %v702 = vsel %vm696, %v667, %v683
      %v703 = vsel %vm696, %v668, %v684
      %v704 = vsel %vm696, %v669, %v685
      %v705 = vsel %vm696, %v670, %v686
      %v706 = vsel %vm696, %v671, %v687
      %v707 = vsel %vm696, %v672, %v688
      %v708 = vsel %vm696, %v673, %v689
      %v709 = vsel %vm696, %v674, %v690
      %v710 = vsel %vm696, %v675, %v691
      %v711 = vsel %vm696, %v676, %v692
      %v712 = vsel %vm696, %v677, %v693
      %v713 = vsel %vm696, %v678, %v662
      %v714 = vsel %vm696, %v679, %v663
      %v715 = vsel %vm696, %v680, %v664
      %v716 = vsel %vm696, %v681, %v665
      %v717 = vsel %vm696, %v682, %v666
      %v718 = vsel %vm696, %v683, %v667
      %v719 = vsel %vm696, %v684, %v668
      %v720 = vsel %vm696, %v685, %v669
      %v721 = vsel %vm696, %v686, %v670
      %v722 = vsel %vm696, %v687, %v671
      %v723 = vsel %vm696, %v688, %v672
      %v724 = vsel %vm696, %v689, %v673
      %v725 = vsel %vm696, %v690, %v674
      %v726 = vsel %vm696, %v691, %v675
      %v727 = vsel %vm696, %v692, %v676
      %v728 = vsel %vm696, %v693, %v677
      %v729 = vrot.slane %v617, 1
      %v730 = vrot.slane %v619, 1
      %v731 = vrot.slane %v621, 1
      %v732 = vrot.slane %v623, 1
      %v733 = vrot.slane %v625, 1
      %v734 = vrot.slane %v627, 1
      %v735 = vrot.slane %v629, 1
      %v736 = vrot.slane %v631, 1
      %v737 = vrot.slane %v633, 1
      %v738 = vrot.slane %v635, 1
      %v739 = vrot.slane %v637, 1
      %v740 = vrot.slane %v639, 1
      %v741 = vrot.slane %v641, 1
      %v742 = vrot.slane %v643, 1
      %v743 = vrot.slane %v645, 1
      %v744 = vrot.slane %v647, 1
      %v745 = vrot.slane %v618, 1
      %v746 = vrot.slane %v620, 1
      %v747 = vrot.slane %v622, 1
      %v748 = vrot.slane %v624, 1
      %v749 = vrot.slane %v626, 1
      %v750 = vrot.slane %v628, 1
      %v751 = vrot.slane %v630, 1
      %v752 = vrot.slane %v632, 1
      %v753 = vrot.slane %v634, 1
      %v754 = vrot.slane %v636, 1
      %v755 = vrot.slane %v638, 1
      %v756 = vrot.slane %v640, 1
      %v757 = vrot.slane %v642, 1
      %v758 = vrot.slane %v644, 1
      %v759 = vrot.slane %v646, 1
      %v760 = vrot.slane %v648, 1
      %vm761 = vcmp.lt.s32.totalorder %v695, 7
      %v762 = vsel %vm761, %v729, %v745
      %v763 = vsel %vm761, %v730, %v746
      %v764 = vsel %vm761, %v731, %v747
      %v765 = vsel %vm761, %v732, %v748
      %v766 = vsel %vm761, %v733, %v749
      %v767 = vsel %vm761, %v734, %v750
      %v768 = vsel %vm761, %v735, %v751
      %v769 = vsel %vm761, %v736, %v752
      %v770 = vsel %vm761, %v737, %v753
      %v771 = vsel %vm761, %v738, %v754
      %v772 = vsel %vm761, %v739, %v755
      %v773 = vsel %vm761, %v740, %v756
      %v774 = vsel %vm761, %v741, %v757
      %v775 = vsel %vm761, %v742, %v758
      %v776 = vsel %vm761, %v743, %v759
      %v777 = vsel %vm761, %v744, %v760
      %v778 = vsel %vm761, %v745, %v729
      %v779 = vsel %vm761, %v746, %v730
      %v780 = vsel %vm761, %v747, %v731
      %v781 = vsel %vm761, %v748, %v732
      %v782 = vsel %vm761, %v749, %v733
      %v783 = vsel %vm761, %v750, %v734
      %v784 = vsel %vm761, %v751, %v735
      %v785 = vsel %vm761, %v752, %v736
      %v786 = vsel %vm761, %v753, %v737
      %v787 = vsel %vm761, %v754, %v738
      %v788 = vsel %vm761, %v755, %v739
      %v789 = vsel %vm761, %v756, %v740
      %v790 = vsel %vm761, %v757, %v741
      %v791 = vsel %vm761, %v758, %v742
      %v792 = vsel %vm761, %v759, %v743
      %v793 = vsel %vm761, %v760, %v744
      %v794 = vpack.c.bf16 %v713, %v713
      %v795 = vpack.c.bf16 %v697, %v697
      %v796 = vpack.c.bf16 %v714, %v714
      %v797 = vpack.c.bf16 %v698, %v698
      %v798 = vpack.c.bf16 %v715, %v715
      %v799 = vpack.c.bf16 %v699, %v699
      %v800 = vpack.c.bf16 %v716, %v716
      %v801 = vpack.c.bf16 %v700, %v700
      %v802 = vpack.c.bf16 %v717, %v717
      %v803 = vpack.c.bf16 %v701, %v701
      %v804 = vpack.c.bf16 %v718, %v718
      %v805 = vpack.c.bf16 %v702, %v702
      %v806 = vpack.c.bf16 %v719, %v719
      %v807 = vpack.c.bf16 %v703, %v703
      %v808 = vpack.c.bf16 %v720, %v720
      %v809 = vpack.c.bf16 %v704, %v704
      %v810 = vpack.c.bf16 %v721, %v721
      %v811 = vpack.c.bf16 %v705, %v705
      %v812 = vpack.c.bf16 %v722, %v722
      %v813 = vpack.c.bf16 %v706, %v706
      %v814 = vpack.c.bf16 %v723, %v723
      %v815 = vpack.c.bf16 %v707, %v707
      %v816 = vpack.c.bf16 %v724, %v724
      %v817 = vpack.c.bf16 %v708, %v708
      %v818 = vpack.c.bf16 %v725, %v725
      %v819 = vpack.c.bf16 %v709, %v709
      %v820 = vpack.c.bf16 %v726, %v726
      %v821 = vpack.c.bf16 %v710, %v710
      %v822 = vpack.c.bf16 %v727, %v727
      %v823 = vpack.c.bf16 %v711, %v711
      %v824 = vpack.c.bf16 %v728, %v728
      %v825 = vpack.c.bf16 %v712, %v712
      %s826 = scalar_lea.vmem [#allocation2], 8
      %827 = vst [vmem:[%s826] sm:$0xf] %v794
      %828 = vst [vmem:[%s826 + $0x4] sm:$0xf] %v795
      %829 = vst [vmem:[%s826 + $0x8] sm:$0xf] %v796
      %830 = vst [vmem:[%s826 + $0xc] sm:$0xf] %v797
      %831 = vst [vmem:[%s826 + $0x10] sm:$0xf] %v798
      %832 = vst [vmem:[%s826 + $0x14] sm:$0xf] %v799
      %833 = vst [vmem:[%s826 + $0x18] sm:$0xf] %v800
      %834 = vst [vmem:[%s826 + $0x1c] sm:$0xf] %v801
      %835 = vst [vmem:[%s826 + $0x20] sm:$0xf] %v802
      %836 = vst [vmem:[%s826 + $0x24] sm:$0xf] %v803
      %837 = vst [vmem:[%s826 + $0x28] sm:$0xf] %v804
      %838 = vst [vmem:[%s826 + $0x2c] sm:$0xf] %v805
      %839 = vst [vmem:[%s826 + $0x30] sm:$0xf] %v806
      %840 = vst [vmem:[%s826 + $0x34] sm:$0xf] %v807
      %841 = vst [vmem:[%s826 + $0x38] sm:$0xf] %v808
      %842 = vst [vmem:[%s826 + $0x3c] sm:$0xf] %v809
      %843 = vst [vmem:[%s826 + $0x40] sm:$0xf] %v810
      %844 = vst [vmem:[%s826 + $0x44] sm:$0xf] %v811
      %845 = vst [vmem:[%s826 + $0x48] sm:$0xf] %v812
      %846 = vst [vmem:[%s826 + $0x4c] sm:$0xf] %v813
      %847 = vst [vmem:[%s826 + $0x50] sm:$0xf] %v814
      %848 = vst [vmem:[%s826 + $0x54] sm:$0xf] %v815
      %849 = vst [vmem:[%s826 + $0x58] sm:$0xf] %v816
      %850 = vst [vmem:[%s826 + $0x5c] sm:$0xf] %v817
      %851 = vst [vmem:[%s826 + $0x60] sm:$0xf] %v818
      %852 = vst [vmem:[%s826 + $0x64] sm:$0xf] %v819
      %853 = vst [vmem:[%s826 + $0x68] sm:$0xf] %v820
      %854 = vst [vmem:[%s826 + $0x6c] sm:$0xf] %v821
      %855 = vst [vmem:[%s826 + $0x70] sm:$0xf] %v822
      %856 = vst [vmem:[%s826 + $0x74] sm:$0xf] %v823
      %857 = vst [vmem:[%s826 + $0x78] sm:$0xf] %v824
      %858 = vst [vmem:[%s826 + $0x7c] sm:$0xf] %v825
      %v859 = vpack.c.bf16 %v617, %v617
      %v860 = vpack.c.bf16 %v618, %v618
      %v861 = vpack.c.bf16 %v619, %v619
      %v862 = vpack.c.bf16 %v620, %v620
      %v863 = vpack.c.bf16 %v621, %v621
      %v864 = vpack.c.bf16 %v622, %v622
      %v865 = vpack.c.bf16 %v623, %v623
      %v866 = vpack.c.bf16 %v624, %v624
      %v867 = vpack.c.bf16 %v625, %v625
      %v868 = vpack.c.bf16 %v626, %v626
      %v869 = vpack.c.bf16 %v627, %v627
      %v870 = vpack.c.bf16 %v628, %v628
      %v871 = vpack.c.bf16 %v629, %v629
      %v872 = vpack.c.bf16 %v630, %v630
      %v873 = vpack.c.bf16 %v631, %v631
      %v874 = vpack.c.bf16 %v632, %v632
      %v875 = vpack.c.bf16 %v633, %v633
      %v876 = vpack.c.bf16 %v634, %v634
      %v877 = vpack.c.bf16 %v635, %v635
      %v878 = vpack.c.bf16 %v636, %v636
      %v879 = vpack.c.bf16 %v637, %v637
      %v880 = vpack.c.bf16 %v638, %v638
      %v881 = vpack.c.bf16 %v639, %v639
      %v882 = vpack.c.bf16 %v640, %v640
      %v883 = vpack.c.bf16 %v641, %v641
      %v884 = vpack.c.bf16 %v642, %v642
      %v885 = vpack.c.bf16 %v643, %v643
      %v886 = vpack.c.bf16 %v644, %v644
      %v887 = vpack.c.bf16 %v645, %v645
      %v888 = vpack.c.bf16 %v646, %v646
      %v889 = vpack.c.bf16 %v647, %v647
      %v890 = vpack.c.bf16 %v648, %v648
      %s891 = scalar_lea.vmem [#allocation2], 152
      %892 = vst [vmem:[%s891] sm:$0xf] %v859
      %893 = vst [vmem:[%s891 + $0x4] sm:$0xf] %v860
      %894 = vst [vmem:[%s891 + $0x8] sm:$0xf] %v861
      %895 = vst [vmem:[%s891 + $0xc] sm:$0xf] %v862
      %896 = vst [vmem:[%s891 + $0x10] sm:$0xf] %v863
      %897 = vst [vmem:[%s891 + $0x14] sm:$0xf] %v864
      %898 = vst [vmem:[%s891 + $0x18] sm:$0xf] %v865
      %899 = vst [vmem:[%s891 + $0x1c] sm:$0xf] %v866
      %900 = vst [vmem:[%s891 + $0x20] sm:$0xf] %v867
      %901 = vst [vmem:[%s891 + $0x24] sm:$0xf] %v868
      %902 = vst [vmem:[%s891 + $0x28] sm:$0xf] %v869
      %903 = vst [vmem:[%s891 + $0x2c] sm:$0xf] %v870
      %904 = vst [vmem:[%s891 + $0x30] sm:$0xf] %v871
      %905 = vst [vmem:[%s891 + $0x34] sm:$0xf] %v872
      %906 = vst [vmem:[%s891 + $0x38] sm:$0xf] %v873
      %907 = vst [vmem:[%s891 + $0x3c] sm:$0xf] %v874
      %908 = vst [vmem:[%s891 + $0x40] sm:$0xf] %v875
      %909 = vst [vmem:[%s891 + $0x44] sm:$0xf] %v876
      %910 = vst [vmem:[%s891 + $0x48] sm:$0xf] %v877
      %911 = vst [vmem:[%s891 + $0x4c] sm:$0xf] %v878
      %912 = vst [vmem:[%s891 + $0x50] sm:$0xf] %v879
      %913 = vst [vmem:[%s891 + $0x54] sm:$0xf] %v880
      %914 = vst [vmem:[%s891 + $0x58] sm:$0xf] %v881
      %915 = vst [vmem:[%s891 + $0x5c] sm:$0xf] %v882
      %916 = vst [vmem:[%s891 + $0x60] sm:$0xf] %v883
      %917 = vst [vmem:[%s891 + $0x64] sm:$0xf] %v884
      %918 = vst [vmem:[%s891 + $0x68] sm:$0xf] %v885
      %919 = vst [vmem:[%s891 + $0x6c] sm:$0xf] %v886
      %920 = vst [vmem:[%s891 + $0x70] sm:$0xf] %v887
      %921 = vst [vmem:[%s891 + $0x74] sm:$0xf] %v888
      %922 = vst [vmem:[%s891 + $0x78] sm:$0xf] %v889
      %923 = vst [vmem:[%s891 + $0x7c] sm:$0xf] %v890
      %v924 = vpack.c.bf16 %v762, %v762
      %v925 = vpack.c.bf16 %v778, %v778
      %v926 = vpack.c.bf16 %v763, %v763
      %v927 = vpack.c.bf16 %v779, %v779
      %v928 = vpack.c.bf16 %v764, %v764
      %v929 = vpack.c.bf16 %v780, %v780
      %v930 = vpack.c.bf16 %v765, %v765
      %v931 = vpack.c.bf16 %v781, %v781
      %v932 = vpack.c.bf16 %v766, %v766
      %v933 = vpack.c.bf16 %v782, %v782
      %v934 = vpack.c.bf16 %v767, %v767
      %v935 = vpack.c.bf16 %v783, %v783
      %v936 = vpack.c.bf16 %v768, %v768
      %v937 = vpack.c.bf16 %v784, %v784
      %v938 = vpack.c.bf16 %v769, %v769
      %v939 = vpack.c.bf16 %v785, %v785
      %v940 = vpack.c.bf16 %v770, %v770
      %v941 = vpack.c.bf16 %v786, %v786
      %v942 = vpack.c.bf16 %v771, %v771
      %v943 = vpack.c.bf16 %v787, %v787
      %v944 = vpack.c.bf16 %v772, %v772
      %v945 = vpack.c.bf16 %v788, %v788
      %v946 = vpack.c.bf16 %v773, %v773
      %v947 = vpack.c.bf16 %v789, %v789
      %v948 = vpack.c.bf16 %v774, %v774
      %v949 = vpack.c.bf16 %v790, %v790
      %v950 = vpack.c.bf16 %v775, %v775
      %v951 = vpack.c.bf16 %v791, %v791
      %v952 = vpack.c.bf16 %v776, %v776
      %v953 = vpack.c.bf16 %v792, %v792
      %v954 = vpack.c.bf16 %v777, %v777
      %v955 = vpack.c.bf16 %v793, %v793
      %s956 = scalar_lea.vmem [#allocation2], 296
      %957 = vst [vmem:[%s956] sm:$0xf] %v924
      %958 = vst [vmem:[%s956 + $0x4] sm:$0xf] %v925
      %959 = vst [vmem:[%s956 + $0x8] sm:$0xf] %v926
      %960 = vst [vmem:[%s956 + $0xc] sm:$0xf] %v927
      %961 = vst [vmem:[%s956 + $0x10] sm:$0xf] %v928
      %962 = vst [vmem:[%s956 + $0x14] sm:$0xf] %v929
      %963 = vst [vmem:[%s956 + $0x18] sm:$0xf] %v930
      %964 = vst [vmem:[%s956 + $0x1c] sm:$0xf] %v931
      %965 = vst [vmem:[%s956 + $0x20] sm:$0xf] %v932
      %966 = vst [vmem:[%s956 + $0x24] sm:$0xf] %v933
      %967 = vst [vmem:[%s956 + $0x28] sm:$0xf] %v934
      %968 = vst [vmem:[%s956 + $0x2c] sm:$0xf] %v935
      %969 = vst [vmem:[%s956 + $0x30] sm:$0xf] %v936
      %970 = vst [vmem:[%s956 + $0x34] sm:$0xf] %v937
      %971 = vst [vmem:[%s956 + $0x38] sm:$0xf] %v938
      %972 = vst [vmem:[%s956 + $0x3c] sm:$0xf] %v939
      %973 = vst [vmem:[%s956 + $0x40] sm:$0xf] %v940
      %974 = vst [vmem:[%s956 + $0x44] sm:$0xf] %v941
      %975 = vst [vmem:[%s956 + $0x48] sm:$0xf] %v942
      %976 = vst [vmem:[%s956 + $0x4c] sm:$0xf] %v943
      %977 = vst [vmem:[%s956 + $0x50] sm:$0xf] %v944
      %978 = vst [vmem:[%s956 + $0x54] sm:$0xf] %v945
      %979 = vst [vmem:[%s956 + $0x58] sm:$0xf] %v946
      %980 = vst [vmem:[%s956 + $0x5c] sm:$0xf] %v947
      %981 = vst [vmem:[%s956 + $0x60] sm:$0xf] %v948
      %982 = vst [vmem:[%s956 + $0x64] sm:$0xf] %v949
      %983 = vst [vmem:[%s956 + $0x68] sm:$0xf] %v950
      %984 = vst [vmem:[%s956 + $0x6c] sm:$0xf] %v951
      %985 = vst [vmem:[%s956 + $0x70] sm:$0xf] %v952
      %986 = vst [vmem:[%s956 + $0x74] sm:$0xf] %v953
      %987 = vst [vmem:[%s956 + $0x78] sm:$0xf] %v954
      %988 = vst [vmem:[%s956 + $0x7c] sm:$0xf] %v955
      %vm989 = vcmask 1040384
      %vm990 = vsmask.f32 256
      %vm991 = vmand %vm989, %vm990
      %v992 = vld [vmem:[%s826] sm:$0x1]
      %v993 = vsel %vm991, 0, %v992
      %994 = vst [vmem:[%s826] sm:$0x1] %v993
      %v995 = vld [vmem:[%s826 + $0x8] sm:$0x1]
      %v996 = vsel %vm991, 0, %v995
      %997 = vst [vmem:[%s826 + $0x8] sm:$0x1] %v996
      %v998 = vld [vmem:[%s826 + $0x10] sm:$0x1]
      %v999 = vsel %vm991, 0, %v998
      %1000 = vst [vmem:[%s826 + $0x10] sm:$0x1] %v999
      %v1001 = vld [vmem:[%s826 + $0x18] sm:$0x1]
      %v1002 = vsel %vm991, 0, %v1001
      %1003 = vst [vmem:[%s826 + $0x18] sm:$0x1] %v1002
      %v1004 = vld [vmem:[%s826 + $0x20] sm:$0x1]
      %v1005 = vsel %vm991, 0, %v1004
      %1006 = vst [vmem:[%s826 + $0x20] sm:$0x1] %v1005
      %v1007 = vld [vmem:[%s826 + $0x28] sm:$0x1]
      %v1008 = vsel %vm991, 0, %v1007
      %1009 = vst [vmem:[%s826 + $0x28] sm:$0x1] %v1008
      %v1010 = vld [vmem:[%s826 + $0x30] sm:$0x1]
      %v1011 = vsel %vm991, 0, %v1010
      %1012 = vst [vmem:[%s826 + $0x30] sm:$0x1] %v1011
      %v1013 = vld [vmem:[%s826 + $0x38] sm:$0x1]
      %v1014 = vsel %vm991, 0, %v1013
      %1015 = vst [vmem:[%s826 + $0x38] sm:$0x1] %v1014
      %v1016 = vld [vmem:[%s826 + $0x40] sm:$0x1]
      %v1017 = vsel %vm991, 0, %v1016
      %1018 = vst [vmem:[%s826 + $0x40] sm:$0x1] %v1017
      %v1019 = vld [vmem:[%s826 + $0x48] sm:$0x1]
      %v1020 = vsel %vm991, 0, %v1019
      %1021 = vst [vmem:[%s826 + $0x48] sm:$0x1] %v1020
      %v1022 = vld [vmem:[%s826 + $0x50] sm:$0x1]
      %v1023 = vsel %vm991, 0, %v1022
      %1024 = vst [vmem:[%s826 + $0x50] sm:$0x1] %v1023
      %v1025 = vld [vmem:[%s826 + $0x58] sm:$0x1]
      %v1026 = vsel %vm991, 0, %v1025
      %1027 = vst [vmem:[%s826 + $0x58] sm:$0x1] %v1026
      %v1028 = vld [vmem:[%s826 + $0x60] sm:$0x1]
      %v1029 = vsel %vm991, 0, %v1028
      %1030 = vst [vmem:[%s826 + $0x60] sm:$0x1] %v1029
      %v1031 = vld [vmem:[%s826 + $0x68] sm:$0x1]
      %v1032 = vsel %vm991, 0, %v1031
      %1033 = vst [vmem:[%s826 + $0x68] sm:$0x1] %v1032
      %v1034 = vld [vmem:[%s826 + $0x70] sm:$0x1]
      %v1035 = vsel %vm991, 0, %v1034
      %1036 = vst [vmem:[%s826 + $0x70] sm:$0x1] %v1035
      %v1037 = vld [vmem:[%s826 + $0x78] sm:$0x1]
      %v1038 = vsel %vm991, 0, %v1037
      %1039 = vst [vmem:[%s826 + $0x78] sm:$0x1] %v1038
      %vm1040 = vcmask 1043459
      %vm1041 = vsmask.f32 7950
      %vm1042 = vmand %vm1040, %vm1041
      %v1043 = vld [vmem:[%s956 + $0x4] sm:$0x8]
      %v1044 = vsel %vm1042, 0, %v1043
      %1045 = vst [vmem:[%s956 + $0x4] sm:$0x8] %v1044
      %v1046 = vld [vmem:[%s956 + $0xc] sm:$0x8]
      %v1047 = vsel %vm1042, 0, %v1046
      %1048 = vst [vmem:[%s956 + $0xc] sm:$0x8] %v1047
      %v1049 = vld [vmem:[%s956 + $0x14] sm:$0x8]
      %v1050 = vsel %vm1042, 0, %v1049
      %1051 = vst [vmem:[%s956 + $0x14] sm:$0x8] %v1050
      %v1052 = vld [vmem:[%s956 + $0x1c] sm:$0x8]
      %v1053 = vsel %vm1042, 0, %v1052
      %1054 = vst [vmem:[%s956 + $0x1c] sm:$0x8] %v1053
      %v1055 = vld [vmem:[%s956 + $0x24] sm:$0x8]
      %v1056 = vsel %vm1042, 0, %v1055
      %1057 = vst [vmem:[%s956 + $0x24] sm:$0x8] %v1056
      %v1058 = vld [vmem:[%s956 + $0x2c] sm:$0x8]
      %v1059 = vsel %vm1042, 0, %v1058
      %1060 = vst [vmem:[%s956 + $0x2c] sm:$0x8] %v1059
      %v1061 = vld [vmem:[%s956 + $0x34] sm:$0x8]
      %v1062 = vsel %vm1042, 0, %v1061
      %1063 = vst [vmem:[%s956 + $0x34] sm:$0x8] %v1062
      %v1064 = vld [vmem:[%s956 + $0x3c] sm:$0x8]
      %v1065 = vsel %vm1042, 0, %v1064
      %1066 = vst [vmem:[%s956 + $0x3c] sm:$0x8] %v1065
      %v1067 = vld [vmem:[%s956 + $0x44] sm:$0x8]
      %v1068 = vsel %vm1042, 0, %v1067
      %1069 = vst [vmem:[%s956 + $0x44] sm:$0x8] %v1068
      %v1070 = vld [vmem:[%s956 + $0x4c] sm:$0x8]
      %v1071 = vsel %vm1042, 0, %v1070
      %1072 = vst [vmem:[%s956 + $0x4c] sm:$0x8] %v1071
      %v1073 = vld [vmem:[%s956 + $0x54] sm:$0x8]
      %v1074 = vsel %vm1042, 0, %v1073
      %1075 = vst [vmem:[%s956 + $0x54] sm:$0x8] %v1074
      %v1076 = vld [vmem:[%s956 + $0x5c] sm:$0x8]
      %v1077 = vsel %vm1042, 0, %v1076
      %1078 = vst [vmem:[%s956 + $0x5c] sm:$0x8] %v1077
      %v1079 = vld [vmem:[%s956 + $0x64] sm:$0x8]
      %v1080 = vsel %vm1042, 0, %v1079
      %1081 = vst [vmem:[%s956 + $0x64] sm:$0x8] %v1080
      %v1082 = vld [vmem:[%s956 + $0x6c] sm:$0x8]
      %v1083 = vsel %vm1042, 0, %v1082
      %1084 = vst [vmem:[%s956 + $0x6c] sm:$0x8] %v1083
      %v1085 = vld [vmem:[%s956 + $0x74] sm:$0x8]
      %v1086 = vsel %vm1042, 0, %v1085
      %1087 = vst [vmem:[%s956 + $0x74] sm:$0x8] %v1086
      %v1088 = vld [vmem:[%s956 + $0x7c] sm:$0x8]
      %v1089 = vsel %vm1042, 0, %v1088
      %1090 = vst [vmem:[%s956 + $0x7c] sm:$0x8] %v1089
      %v1091 = vld [vmem:[#allocation2] sm:$0xf]
      %v1092 = vld [vmem:[#allocation2 + $0x4] sm:$0xf]
      %v1093 = vld [vmem:[#allocation2 + $0x8] sm:$0xf]
      %v1094 = vld [vmem:[#allocation2 + $0xc] sm:$0xf]
      %v1095 = vld [vmem:[#allocation2 + $0x10] sm:$0xf]
      %v1096 = vld [vmem:[#allocation2 + $0x14] sm:$0xf]
      %v1097 = vld [vmem:[#allocation2 + $0x18] sm:$0xf]
      %v1098 = vld [vmem:[#allocation2 + $0x1c] sm:$0xf]
      %v1099 = vld [vmem:[#allocation2 + $0x20] sm:$0xf]
      %v1100 = vld [vmem:[#allocation2 + $0x24] sm:$0xf]
      %v1101 = vld [vmem:[#allocation2 + $0x28] sm:$0xf]
      %v1102 = vld [vmem:[#allocation2 + $0x2c] sm:$0xf]
      %v1103 = vld [vmem:[#allocation2 + $0x30] sm:$0xf]
      %v1104 = vld [vmem:[#allocation2 + $0x34] sm:$0xf]
      %v1105 = vld [vmem:[#allocation2 + $0x38] sm:$0xf]
      %v1106 = vld [vmem:[#allocation2 + $0x3c] sm:$0xf]
      %v1107 = vld [vmem:[#allocation2 + $0x40] sm:$0xf]
      %v1108 = vld [vmem:[#allocation2 + $0x44] sm:$0xf]
      %v1109 = vld [vmem:[#allocation2 + $0x48] sm:$0xf]
      %v1110 = vld [vmem:[#allocation2 + $0x4c] sm:$0xf]
      %v1111 = vld [vmem:[#allocation2 + $0x50] sm:$0xf]
      %v1112 = vld [vmem:[#allocation2 + $0x54] sm:$0xf]
      %v1113 = vld [vmem:[#allocation2 + $0x58] sm:$0xf]
      %v1114 = vld [vmem:[#allocation2 + $0x5c] sm:$0xf]
      %v1115 = vld [vmem:[#allocation2 + $0x60] sm:$0xf]
      %v1116 = vld [vmem:[#allocation2 + $0x64] sm:$0xf]
      %v1117 = vld [vmem:[#allocation2 + $0x68] sm:$0xf]
      %v1118 = vld [vmem:[#allocation2 + $0x6c] sm:$0xf]
      %v1119 = vld [vmem:[#allocation2 + $0x70] sm:$0xf]
      %v1120 = vld [vmem:[#allocation2 + $0x74] sm:$0xf]
      %v1121 = vld [vmem:[#allocation2 + $0x78] sm:$0xf]
      %v1122 = vld [vmem:[#allocation2 + $0x7c] sm:$0xf]
      %v1123 = vld [vmem:[%s4] sm:$0xf]
      %v1124 = vld [vmem:[%s4 + $0x4] sm:$0xf]
      %v1125 = vld [vmem:[%s4 + $0x8] sm:$0xf]
      %v1126 = vld [vmem:[%s4 + $0xc] sm:$0xf]
      %v1127 = vld [vmem:[%s4 + $0x10] sm:$0xf]
      %v1128 = vld [vmem:[%s4 + $0x14] sm:$0xf]
      %v1129 = vld [vmem:[%s4 + $0x18] sm:$0xf]
      %v1130 = vld [vmem:[%s4 + $0x1c] sm:$0xf]
      %v1131 = vld [vmem:[%s4 + $0x20] sm:$0xf]
      %v1132 = vld [vmem:[%s4 + $0x24] sm:$0xf]
      %v1133 = vld [vmem:[%s4 + $0x28] sm:$0xf]
      %v1134 = vld [vmem:[%s4 + $0x2c] sm:$0xf]
      %v1135 = vld [vmem:[%s4 + $0x30] sm:$0xf]
      %v1136 = vld [vmem:[%s4 + $0x34] sm:$0xf]
      %v1137 = vld [vmem:[%s4 + $0x38] sm:$0xf]
      %v1138 = vld [vmem:[%s4 + $0x3c] sm:$0xf]
      %s1139 = scalar_lea.vmem [#allocation2], 144
      %v1140 = vld [vmem:[%s1139] sm:$0xf]
      %v1141 = vld [vmem:[%s1139 + $0x4] sm:$0xf]
      %v1142 = vld [vmem:[%s1139 + $0x8] sm:$0xf]
      %v1143 = vld [vmem:[%s1139 + $0xc] sm:$0xf]
      %v1144 = vld [vmem:[%s1139 + $0x10] sm:$0xf]
      %v1145 = vld [vmem:[%s1139 + $0x14] sm:$0xf]
      %v1146 = vld [vmem:[%s1139 + $0x18] sm:$0xf]
      %v1147 = vld [vmem:[%s1139 + $0x1c] sm:$0xf]
      %v1148 = vld [vmem:[%s1139 + $0x20] sm:$0xf]
      %v1149 = vld [vmem:[%s1139 + $0x24] sm:$0xf]
      %v1150 = vld [vmem:[%s1139 + $0x28] sm:$0xf]
      %v1151 = vld [vmem:[%s1139 + $0x2c] sm:$0xf]
      %v1152 = vld [vmem:[%s1139 + $0x30] sm:$0xf]
      %v1153 = vld [vmem:[%s1139 + $0x34] sm:$0xf]
      %v1154 = vld [vmem:[%s1139 + $0x38] sm:$0xf]
      %v1155 = vld [vmem:[%s1139 + $0x3c] sm:$0xf]
      %v1156 = vld [vmem:[%s1139 + $0x40] sm:$0xf]
      %v1157 = vld [vmem:[%s1139 + $0x44] sm:$0xf]
      %v1158 = vld [vmem:[%s1139 + $0x48] sm:$0xf]
      %v1159 = vld [vmem:[%s1139 + $0x4c] sm:$0xf]
      %v1160 = vld [vmem:[%s1139 + $0x50] sm:$0xf]
      %v1161 = vld [vmem:[%s1139 + $0x54] sm:$0xf]
      %v1162 = vld [vmem:[%s1139 + $0x58] sm:$0xf]
      %v1163 = vld [vmem:[%s1139 + $0x5c] sm:$0xf]
      %v1164 = vld [vmem:[%s1139 + $0x60] sm:$0xf]
      %v1165 = vld [vmem:[%s1139 + $0x64] sm:$0xf]
      %v1166 = vld [vmem:[%s1139 + $0x68] sm:$0xf]
      %v1167 = vld [vmem:[%s1139 + $0x6c] sm:$0xf]
      %v1168 = vld [vmem:[%s1139 + $0x70] sm:$0xf]
      %v1169 = vld [vmem:[%s1139 + $0x74] sm:$0xf]
      %v1170 = vld [vmem:[%s1139 + $0x78] sm:$0xf]
      %v1171 = vld [vmem:[%s1139 + $0x7c] sm:$0xf]
      %s1172 = scalar_lea.vmem %s4, 64
      %v1173 = vld [vmem:[%s1172] sm:$0xf]
      %v1174 = vld [vmem:[%s1172 + $0x4] sm:$0xf]
      %v1175 = vld [vmem:[%s1172 + $0x8] sm:$0xf]
      %v1176 = vld [vmem:[%s1172 + $0xc] sm:$0xf]
      %v1177 = vld [vmem:[%s1172 + $0x10] sm:$0xf]
      %v1178 = vld [vmem:[%s1172 + $0x14] sm:$0xf]
      %v1179 = vld [vmem:[%s1172 + $0x18] sm:$0xf]
      %v1180 = vld [vmem:[%s1172 + $0x1c] sm:$0xf]
      %v1181 = vld [vmem:[%s1172 + $0x20] sm:$0xf]
      %v1182 = vld [vmem:[%s1172 + $0x24] sm:$0xf]
      %v1183 = vld [vmem:[%s1172 + $0x28] sm:$0xf]
      %v1184 = vld [vmem:[%s1172 + $0x2c] sm:$0xf]
      %v1185 = vld [vmem:[%s1172 + $0x30] sm:$0xf]
      %v1186 = vld [vmem:[%s1172 + $0x34] sm:$0xf]
      %v1187 = vld [vmem:[%s1172 + $0x38] sm:$0xf]
      %v1188 = vld [vmem:[%s1172 + $0x3c] sm:$0xf]
      %v1221 = vunpack.c.l.b16 %v1140
      %v1222 = vunpack.c.l.b16 %v1141
      %v1223 = vunpack.c.l.b16 %v1142
      %v1224 = vunpack.c.l.b16 %v1143
      %v1225 = vunpack.c.l.b16 %v1144
      %v1226 = vunpack.c.l.b16 %v1145
      %v1227 = vunpack.c.l.b16 %v1146
      %v1228 = vunpack.c.l.b16 %v1147
      %v1229 = vunpack.c.l.b16 %v1148
      %v1230 = vunpack.c.l.b16 %v1149
      %v1231 = vunpack.c.l.b16 %v1150
      %v1232 = vunpack.c.l.b16 %v1151
      %v1233 = vunpack.c.l.b16 %v1152
      %v1234 = vunpack.c.l.b16 %v1153
      %v1235 = vunpack.c.l.b16 %v1154
      %v1236 = vunpack.c.l.b16 %v1155
      %v1237 = vunpack.c.l.b16 %v1156
      %v1238 = vunpack.c.l.b16 %v1157
      %v1239 = vunpack.c.l.b16 %v1158
      %v1240 = vunpack.c.l.b16 %v1159
      %v1241 = vunpack.c.l.b16 %v1160
      %v1242 = vunpack.c.l.b16 %v1161
      %v1243 = vunpack.c.l.b16 %v1162
      %v1244 = vunpack.c.l.b16 %v1163
      %v1245 = vunpack.c.l.b16 %v1164
      %v1246 = vunpack.c.l.b16 %v1165
      %v1247 = vunpack.c.l.b16 %v1166
      %v1248 = vunpack.c.l.b16 %v1167
      %v1249 = vunpack.c.l.b16 %v1168
      %v1250 = vunpack.c.l.b16 %v1169
      %v1251 = vunpack.c.l.b16 %v1170
      %v1252 = vunpack.c.l.b16 %v1171
      %v1253 = vpack.c.b16 %v1222, %v1221
      %v1254 = vpack.c.b16 %v1224, %v1223
      %v1255 = vpack.c.b16 %v1226, %v1225
      %v1256 = vpack.c.b16 %v1228, %v1227
      %v1257 = vpack.c.b16 %v1230, %v1229
      %v1258 = vpack.c.b16 %v1232, %v1231
      %v1259 = vpack.c.b16 %v1234, %v1233
      %v1260 = vpack.c.b16 %v1236, %v1235
      %v1261 = vpack.c.b16 %v1238, %v1237
      %v1262 = vpack.c.b16 %v1240, %v1239
      %v1263 = vpack.c.b16 %v1242, %v1241
      %v1264 = vpack.c.b16 %v1244, %v1243
      %v1265 = vpack.c.b16 %v1246, %v1245
      %v1266 = vpack.c.b16 %v1248, %v1247
      %v1267 = vpack.c.b16 %v1250, %v1249
      %v1268 = vpack.c.b16 %v1252, %v1251
      %v1301 = vunpack.c.l.b16 %v1173
      %v1302 = vunpack.c.l.b16 %v1174
      %v1303 = vunpack.c.l.b16 %v1175
      %v1304 = vunpack.c.l.b16 %v1176
      %v1305 = vunpack.c.l.b16 %v1177
      %v1306 = vunpack.c.l.b16 %v1178
      %v1307 = vunpack.c.l.b16 %v1179
      %v1308 = vunpack.c.l.b16 %v1180
      %v1309 = vunpack.c.l.b16 %v1181
      %v1310 = vunpack.c.l.b16 %v1182
      %v1311 = vunpack.c.l.b16 %v1183
      %v1312 = vunpack.c.l.b16 %v1184
      %v1313 = vunpack.c.l.b16 %v1185
      %v1314 = vunpack.c.l.b16 %v1186
      %v1315 = vunpack.c.l.b16 %v1187
      %v1316 = vunpack.c.l.b16 %v1188
      %v1317 = vpack.c.b16 %v1302, %v1301
      %v1318 = vpack.c.b16 %v1304, %v1303
      %v1319 = vpack.c.b16 %v1306, %v1305
      %v1320 = vpack.c.b16 %v1308, %v1307
      %v1321 = vpack.c.b16 %v1310, %v1309
      %v1322 = vpack.c.b16 %v1312, %v1311
      %v1323 = vpack.c.b16 %v1314, %v1313
      %v1324 = vpack.c.b16 %v1316, %v1315
      %1333 = vmatpush.bf16.msra.mxu0 %v1324
      %1334 = vmatpush.bf16.msra.mxu0 %v1323
      %1335 = vmatpush.bf16.msra.mxu0 %v1322
      %1336 = vmatpush.bf16.msra.mxu0 %v1321
      %1337 = vmatpush.bf16.msra.mxu0 %v1320
      %1338 = vmatpush.bf16.msra.mxu0 %v1319
      %1339 = vmatpush.bf16.msra.mxu0 %v1318
      %1340 = vmatpush.bf16.msra.mxu0 %v1317
      %1341 = vmatmul.bf16.gmra.mxu0 %v1253
      %v1342 = vpop.f32.mrf.mxu0
      %v1343 = vadd.f32 0.0, %v1342
      %v1344 = vpop.f32.mrf.mxu0
      %v1345 = vadd.f32 0.0, %v1344
      %1346 = vmatmul.bf16.gmra.mxu0 %v1254
      %v1347 = vpop.f32.mrf.mxu0
      %v1348 = vadd.f32 0.0, %v1347
      %v1349 = vpop.f32.mrf.mxu0
      %v1350 = vadd.f32 0.0, %v1349
      %1351 = vmatmul.bf16.gmra.mxu0 %v1255
      %v1352 = vpop.f32.mrf.mxu0
      %v1353 = vadd.f32 0.0, %v1352
      %v1354 = vpop.f32.mrf.mxu0
      %v1355 = vadd.f32 0.0, %v1354
      %1356 = vmatmul.bf16.gmra.mxu0 %v1256
      %v1357 = vpop.f32.mrf.mxu0
      %v1358 = vadd.f32 0.0, %v1357
      %v1359 = vpop.f32.mrf.mxu0
      %v1360 = vadd.f32 0.0, %v1359
      %1361 = vmatmul.bf16.gmra.mxu0 %v1257
      %v1362 = vpop.f32.mrf.mxu0
      %v1363 = vadd.f32 0.0, %v1362
      %v1364 = vpop.f32.mrf.mxu0
      %v1365 = vadd.f32 0.0, %v1364
      %1366 = vmatmul.bf16.gmra.mxu0 %v1258
      %v1367 = vpop.f32.mrf.mxu0
      %v1368 = vadd.f32 0.0, %v1367
      %v1369 = vpop.f32.mrf.mxu0
      %v1370 = vadd.f32 0.0, %v1369
      %1371 = vmatmul.bf16.gmra.mxu0 %v1259
      %v1372 = vpop.f32.mrf.mxu0
      %v1373 = vadd.f32 0.0, %v1372
      %v1374 = vpop.f32.mrf.mxu0
      %v1375 = vadd.f32 0.0, %v1374
      %1376 = vmatmul.bf16.gmra.mxu0 %v1260
      %v1377 = vpop.f32.mrf.mxu0
      %v1378 = vadd.f32 0.0, %v1377
      %v1379 = vpop.f32.mrf.mxu0
      %v1380 = vadd.f32 0.0, %v1379
      %1381 = vmatmul.bf16.gmra.mxu0 %v1261
      %v1382 = vpop.f32.mrf.mxu0
      %v1383 = vadd.f32 0.0, %v1382
      %v1384 = vpop.f32.mrf.mxu0
      %v1385 = vadd.f32 0.0, %v1384
      %1386 = vmatmul.bf16.gmra.mxu0 %v1262
      %v1387 = vpop.f32.mrf.mxu0
      %v1388 = vadd.f32 0.0, %v1387
      %v1389 = vpop.f32.mrf.mxu0
      %v1390 = vadd.f32 0.0, %v1389
      %1391 = vmatmul.bf16.gmra.mxu0 %v1263
      %v1392 = vpop.f32.mrf.mxu0
      %v1393 = vadd.f32 0.0, %v1392
      %v1394 = vpop.f32.mrf.mxu0
      %v1395 = vadd.f32 0.0, %v1394
      %1396 = vmatmul.bf16.gmra.mxu0 %v1264
      %v1397 = vpop.f32.mrf.mxu0
      %v1398 = vadd.f32 0.0, %v1397
      %v1399 = vpop.f32.mrf.mxu0
      %v1400 = vadd.f32 0.0, %v1399
      %1401 = vmatmul.bf16.gmra.mxu0 %v1265
      %v1402 = vpop.f32.mrf.mxu0
      %v1403 = vadd.f32 0.0, %v1402
      %v1404 = vpop.f32.mrf.mxu0
      %v1405 = vadd.f32 0.0, %v1404
      %1406 = vmatmul.bf16.gmra.mxu0 %v1266
      %v1407 = vpop.f32.mrf.mxu0
      %v1408 = vadd.f32 0.0, %v1407
      %v1409 = vpop.f32.mrf.mxu0
      %v1410 = vadd.f32 0.0, %v1409
      %1411 = vmatmul.bf16.gmra.mxu0 %v1267
      %v1412 = vpop.f32.mrf.mxu0
      %v1413 = vadd.f32 0.0, %v1412
      %v1414 = vpop.f32.mrf.mxu0
      %v1415 = vadd.f32 0.0, %v1414
      %1416 = vmatmul.bf16.gmra.mxu0 %v1268
      %v1417 = vpop.f32.mrf.mxu0
      %v1418 = vadd.f32 0.0, %v1417
      %v1419 = vpop.f32.mrf.mxu0
      %v1420 = vadd.f32 0.0, %v1419
      %1421 = vdwg.mxu0
      %v1454 = vunpack.c.l.b16 %v1091
      %v1455 = vunpack.c.l.b16 %v1092
      %v1456 = vunpack.c.l.b16 %v1093
      %v1457 = vunpack.c.l.b16 %v1094
      %v1458 = vunpack.c.l.b16 %v1095
      %v1459 = vunpack.c.l.b16 %v1096
      %v1460 = vunpack.c.l.b16 %v1097
      %v1461 = vunpack.c.l.b16 %v1098
      %v1462 = vunpack.c.l.b16 %v1099
      %v1463 = vunpack.c.l.b16 %v1100
      %v1464 = vunpack.c.l.b16 %v1101
      %v1465 = vunpack.c.l.b16 %v1102
      %v1466 = vunpack.c.l.b16 %v1103
      %v1467 = vunpack.c.l.b16 %v1104
      %v1468 = vunpack.c.l.b16 %v1105
      %v1469 = vunpack.c.l.b16 %v1106
      %v1470 = vunpack.c.l.b16 %v1107
      %v1471 = vunpack.c.l.b16 %v1108
      %v1472 = vunpack.c.l.b16 %v1109
      %v1473 = vunpack.c.l.b16 %v1110
      %v1474 = vunpack.c.l.b16 %v1111
      %v1475 = vunpack.c.l.b16 %v1112
      %v1476 = vunpack.c.l.b16 %v1113
      %v1477 = vunpack.c.l.b16 %v1114
      %v1478 = vunpack.c.l.b16 %v1115
      %v1479 = vunpack.c.l.b16 %v1116
      %v1480 = vunpack.c.l.b16 %v1117
      %v1481 = vunpack.c.l.b16 %v1118
      %v1482 = vunpack.c.l.b16 %v1119
      %v1483 = vunpack.c.l.b16 %v1120
      %v1484 = vunpack.c.l.b16 %v1121
      %v1485 = vunpack.c.l.b16 %v1122
      %v1486 = vpack.c.b16 %v1455, %v1454
      %v1487 = vpack.c.b16 %v1457, %v1456
      %v1488 = vpack.c.b16 %v1459, %v1458
      %v1489 = vpack.c.b16 %v1461, %v1460
      %v1490 = vpack.c.b16 %v1463, %v1462
      %v1491 = vpack.c.b16 %v1465, %v1464
      %v1492 = vpack.c.b16 %v1467, %v1466
      %v1493 = vpack.c.b16 %v1469, %v1468
      %v1494 = vpack.c.b16 %v1471, %v1470
      %v1495 = vpack.c.b16 %v1473, %v1472
      %v1496 = vpack.c.b16 %v1475, %v1474
      %v1497 = vpack.c.b16 %v1477, %v1476
      %v1498 = vpack.c.b16 %v1479, %v1478
      %v1499 = vpack.c.b16 %v1481, %v1480
      %v1500 = vpack.c.b16 %v1483, %v1482
      %v1501 = vpack.c.b16 %v1485, %v1484
      %v1534 = vunpack.c.l.b16 %v1123
      %v1535 = vunpack.c.l.b16 %v1124
      %v1536 = vunpack.c.l.b16 %v1125
      %v1537 = vunpack.c.l.b16 %v1126
      %v1538 = vunpack.c.l.b16 %v1127
      %v1539 = vunpack.c.l.b16 %v1128
      %v1540 = vunpack.c.l.b16 %v1129
      %v1541 = vunpack.c.l.b16 %v1130
      %v1542 = vunpack.c.l.b16 %v1131
      %v1543 = vunpack.c.l.b16 %v1132
      %v1544 = vunpack.c.l.b16 %v1133
      %v1545 = vunpack.c.l.b16 %v1134
      %v1546 = vunpack.c.l.b16 %v1135
      %v1547 = vunpack.c.l.b16 %v1136
      %v1548 = vunpack.c.l.b16 %v1137
      %v1549 = vunpack.c.l.b16 %v1138
      %v1550 = vpack.c.b16 %v1535, %v1534
      %v1551 = vpack.c.b16 %v1537, %v1536
      %v1552 = vpack.c.b16 %v1539, %v1538
      %v1553 = vpack.c.b16 %v1541, %v1540
      %v1554 = vpack.c.b16 %v1543, %v1542
      %v1555 = vpack.c.b16 %v1545, %v1544
      %v1556 = vpack.c.b16 %v1547, %v1546
      %v1557 = vpack.c.b16 %v1549, %v1548
      %1566 = vmatpush.bf16.msra.mxu0 %v1557
      %1567 = vmatpush.bf16.msra.mxu0 %v1556
      %1568 = vmatpush.bf16.msra.mxu0 %v1555
      %1569 = vmatpush.bf16.msra.mxu0 %v1554
      %1570 = vmatpush.bf16.msra.mxu0 %v1553
      %1571 = vmatpush.bf16.msra.mxu0 %v1552
      %1572 = vmatpush.bf16.msra.mxu0 %v1551
      %1573 = vmatpush.bf16.msra.mxu0 %v1550
      %1574 = vmatmul.bf16.gmra.mxu0 %v1486
      %v1575 = vpop.f32.mrf.mxu0
      %v1576 = vadd.f32 %v1343, %v1575
      %v1577 = vpop.f32.mrf.mxu0
      %v1578 = vadd.f32 %v1345, %v1577
      %1579 = vmatmul.bf16.gmra.mxu0 %v1487
      %v1580 = vpop.f32.mrf.mxu0
      %v1581 = vadd.f32 %v1348, %v1580
      %v1582 = vpop.f32.mrf.mxu0
      %v1583 = vadd.f32 %v1350, %v1582
      %1584 = vmatmul.bf16.gmra.mxu0 %v1488
      %v1585 = vpop.f32.mrf.mxu0
      %v1586 = vadd.f32 %v1353, %v1585
      %v1587 = vpop.f32.mrf.mxu0
      %v1588 = vadd.f32 %v1355, %v1587
      %1589 = vmatmul.bf16.gmra.mxu0 %v1489
      %v1590 = vpop.f32.mrf.mxu0
      %v1591 = vadd.f32 %v1358, %v1590
      %v1592 = vpop.f32.mrf.mxu0
      %v1593 = vadd.f32 %v1360, %v1592
      %1594 = vmatmul.bf16.gmra.mxu0 %v1490
      %v1595 = vpop.f32.mrf.mxu0
      %v1596 = vadd.f32 %v1363, %v1595
      %v1597 = vpop.f32.mrf.mxu0
      %v1598 = vadd.f32 %v1365, %v1597
      %1599 = vmatmul.bf16.gmra.mxu0 %v1491
      %v1600 = vpop.f32.mrf.mxu0
      %v1601 = vadd.f32 %v1368, %v1600
      %v1602 = vpop.f32.mrf.mxu0
      %v1603 = vadd.f32 %v1370, %v1602
      %1604 = vmatmul.bf16.gmra.mxu0 %v1492
      %v1605 = vpop.f32.mrf.mxu0
      %v1606 = vadd.f32 %v1373, %v1605
      %v1607 = vpop.f32.mrf.mxu0
      %v1608 = vadd.f32 %v1375, %v1607
      %1609 = vmatmul.bf16.gmra.mxu0 %v1493
      %v1610 = vpop.f32.mrf.mxu0
      %v1611 = vadd.f32 %v1378, %v1610
      %v1612 = vpop.f32.mrf.mxu0
      %v1613 = vadd.f32 %v1380, %v1612
      %1614 = vmatmul.bf16.gmra.mxu0 %v1494
      %v1615 = vpop.f32.mrf.mxu0
      %v1616 = vadd.f32 %v1383, %v1615
      %v1617 = vpop.f32.mrf.mxu0
      %v1618 = vadd.f32 %v1385, %v1617
      %1619 = vmatmul.bf16.gmra.mxu0 %v1495
      %v1620 = vpop.f32.mrf.mxu0
      %v1621 = vadd.f32 %v1388, %v1620
      %v1622 = vpop.f32.mrf.mxu0
      %v1623 = vadd.f32 %v1390, %v1622
      %1624 = vmatmul.bf16.gmra.mxu0 %v1496
      %v1625 = vpop.f32.mrf.mxu0
      %v1626 = vadd.f32 %v1393, %v1625
      %v1627 = vpop.f32.mrf.mxu0
      %v1628 = vadd.f32 %v1395, %v1627
      %1629 = vmatmul.bf16.gmra.mxu0 %v1497
      %v1630 = vpop.f32.mrf.mxu0
      %v1631 = vadd.f32 %v1398, %v1630
      %v1632 = vpop.f32.mrf.mxu0
      %v1633 = vadd.f32 %v1400, %v1632
      %1634 = vmatmul.bf16.gmra.mxu0 %v1498
      %v1635 = vpop.f32.mrf.mxu0
      %v1636 = vadd.f32 %v1403, %v1635
      %v1637 = vpop.f32.mrf.mxu0
      %v1638 = vadd.f32 %v1405, %v1637
      %1639 = vmatmul.bf16.gmra.mxu0 %v1499
      %v1640 = vpop.f32.mrf.mxu0
      %v1641 = vadd.f32 %v1408, %v1640
      %v1642 = vpop.f32.mrf.mxu0
      %v1643 = vadd.f32 %v1410, %v1642
      %1644 = vmatmul.bf16.gmra.mxu0 %v1500
      %v1645 = vpop.f32.mrf.mxu0
      %v1646 = vadd.f32 %v1413, %v1645
      %v1647 = vpop.f32.mrf.mxu0
      %v1648 = vadd.f32 %v1415, %v1647
      %1649 = vmatmul.bf16.gmra.mxu0 %v1501
      %v1650 = vpop.f32.mrf.mxu0
      %v1651 = vadd.f32 %v1418, %v1650
      %v1652 = vpop.f32.mrf.mxu0
      %v1653 = vadd.f32 %v1420, %v1652
      %1654 = vdwg.mxu0
      %s1655 = scalar_lea.vmem [#allocation2], 288
      %v1656 = vld [vmem:[%s1655] sm:$0xf]
      %v1657 = vld [vmem:[%s1655 + $0x4] sm:$0xf]
      %v1658 = vld [vmem:[%s1655 + $0x8] sm:$0xf]
      %v1659 = vld [vmem:[%s1655 + $0xc] sm:$0xf]
      %v1660 = vld [vmem:[%s1655 + $0x10] sm:$0xf]
      %v1661 = vld [vmem:[%s1655 + $0x14] sm:$0xf]
      %v1662 = vld [vmem:[%s1655 + $0x18] sm:$0xf]
      %v1663 = vld [vmem:[%s1655 + $0x1c] sm:$0xf]
      %v1664 = vld [vmem:[%s1655 + $0x20] sm:$0xf]
      %v1665 = vld [vmem:[%s1655 + $0x24] sm:$0xf]
      %v1666 = vld [vmem:[%s1655 + $0x28] sm:$0xf]
      %v1667 = vld [vmem:[%s1655 + $0x2c] sm:$0xf]
      %v1668 = vld [vmem:[%s1655 + $0x30] sm:$0xf]
      %v1669 = vld [vmem:[%s1655 + $0x34] sm:$0xf]
      %v1670 = vld [vmem:[%s1655 + $0x38] sm:$0xf]
      %v1671 = vld [vmem:[%s1655 + $0x3c] sm:$0xf]
      %v1672 = vld [vmem:[%s1655 + $0x40] sm:$0xf]
      %v1673 = vld [vmem:[%s1655 + $0x44] sm:$0xf]
      %v1674 = vld [vmem:[%s1655 + $0x48] sm:$0xf]
      %v1675 = vld [vmem:[%s1655 + $0x4c] sm:$0xf]
      %v1676 = vld [vmem:[%s1655 + $0x50] sm:$0xf]
      %v1677 = vld [vmem:[%s1655 + $0x54] sm:$0xf]
      %v1678 = vld [vmem:[%s1655 + $0x58] sm:$0xf]
      %v1679 = vld [vmem:[%s1655 + $0x5c] sm:$0xf]
      %v1680 = vld [vmem:[%s1655 + $0x60] sm:$0xf]
      %v1681 = vld [vmem:[%s1655 + $0x64] sm:$0xf]
      %v1682 = vld [vmem:[%s1655 + $0x68] sm:$0xf]
      %v1683 = vld [vmem:[%s1655 + $0x6c] sm:$0xf]
      %v1684 = vld [vmem:[%s1655 + $0x70] sm:$0xf]
      %v1685 = vld [vmem:[%s1655 + $0x74] sm:$0xf]
      %v1686 = vld [vmem:[%s1655 + $0x78] sm:$0xf]
      %v1687 = vld [vmem:[%s1655 + $0x7c] sm:$0xf]
      %s1688 = scalar_lea.vmem %s4, 128
      %v1689 = vld [vmem:[%s1688] sm:$0xf]
      %v1690 = vld [vmem:[%s1688 + $0x4] sm:$0xf]
      %v1691 = vld [vmem:[%s1688 + $0x8] sm:$0xf]
      %v1692 = vld [vmem:[%s1688 + $0xc] sm:$0xf]
      %v1693 = vld [vmem:[%s1688 + $0x10] sm:$0xf]
      %v1694 = vld [vmem:[%s1688 + $0x14] sm:$0xf]
      %v1695 = vld [vmem:[%s1688 + $0x18] sm:$0xf]
      %v1696 = vld [vmem:[%s1688 + $0x1c] sm:$0xf]
      %v1697 = vld [vmem:[%s1688 + $0x20] sm:$0xf]
      %v1698 = vld [vmem:[%s1688 + $0x24] sm:$0xf]
      %v1699 = vld [vmem:[%s1688 + $0x28] sm:$0xf]
      %v1700 = vld [vmem:[%s1688 + $0x2c] sm:$0xf]
      %v1701 = vld [vmem:[%s1688 + $0x30] sm:$0xf]
      %v1702 = vld [vmem:[%s1688 + $0x34] sm:$0xf]
      %v1703 = vld [vmem:[%s1688 + $0x38] sm:$0xf]
      %v1704 = vld [vmem:[%s1688 + $0x3c] sm:$0xf]
      %v1737 = vunpack.c.l.b16 %v1656
      %v1738 = vunpack.c.l.b16 %v1657
      %v1739 = vunpack.c.l.b16 %v1658
      %v1740 = vunpack.c.l.b16 %v1659
      %v1741 = vunpack.c.l.b16 %v1660
      %v1742 = vunpack.c.l.b16 %v1661
      %v1743 = vunpack.c.l.b16 %v1662
      %v1744 = vunpack.c.l.b16 %v1663
      %v1745 = vunpack.c.l.b16 %v1664
      %v1746 = vunpack.c.l.b16 %v1665
      %v1747 = vunpack.c.l.b16 %v1666
      %v1748 = vunpack.c.l.b16 %v1667
      %v1749 = vunpack.c.l.b16 %v1668
      %v1750 = vunpack.c.l.b16 %v1669
      %v1751 = vunpack.c.l.b16 %v1670
      %v1752 = vunpack.c.l.b16 %v1671
      %v1753 = vunpack.c.l.b16 %v1672
      %v1754 = vunpack.c.l.b16 %v1673
      %v1755 = vunpack.c.l.b16 %v1674
      %v1756 = vunpack.c.l.b16 %v1675
      %v1757 = vunpack.c.l.b16 %v1676
      %v1758 = vunpack.c.l.b16 %v1677
      %v1759 = vunpack.c.l.b16 %v1678
      %v1760 = vunpack.c.l.b16 %v1679
      %v1761 = vunpack.c.l.b16 %v1680
      %v1762 = vunpack.c.l.b16 %v1681
      %v1763 = vunpack.c.l.b16 %v1682
      %v1764 = vunpack.c.l.b16 %v1683
      %v1765 = vunpack.c.l.b16 %v1684
      %v1766 = vunpack.c.l.b16 %v1685
      %v1767 = vunpack.c.l.b16 %v1686
      %v1768 = vunpack.c.l.b16 %v1687
      %v1769 = vpack.c.b16 %v1738, %v1737
      %v1770 = vpack.c.b16 %v1740, %v1739
      %v1771 = vpack.c.b16 %v1742, %v1741
      %v1772 = vpack.c.b16 %v1744, %v1743
      %v1773 = vpack.c.b16 %v1746, %v1745
      %v1774 = vpack.c.b16 %v1748, %v1747
      %v1775 = vpack.c.b16 %v1750, %v1749
      %v1776 = vpack.c.b16 %v1752, %v1751
      %v1777 = vpack.c.b16 %v1754, %v1753
      %v1778 = vpack.c.b16 %v1756, %v1755
      %v1779 = vpack.c.b16 %v1758, %v1757
      %v1780 = vpack.c.b16 %v1760, %v1759
      %v1781 = vpack.c.b16 %v1762, %v1761
      %v1782 = vpack.c.b16 %v1764, %v1763
      %v1783 = vpack.c.b16 %v1766, %v1765
      %v1784 = vpack.c.b16 %v1768, %v1767
      %v1817 = vunpack.c.l.b16 %v1689
      %v1818 = vunpack.c.l.b16 %v1690
      %v1819 = vunpack.c.l.b16 %v1691
      %v1820 = vunpack.c.l.b16 %v1692
      %v1821 = vunpack.c.l.b16 %v1693
      %v1822 = vunpack.c.l.b16 %v1694
      %v1823 = vunpack.c.l.b16 %v1695
      %v1824 = vunpack.c.l.b16 %v1696
      %v1825 = vunpack.c.l.b16 %v1697
      %v1826 = vunpack.c.l.b16 %v1698
      %v1827 = vunpack.c.l.b16 %v1699
      %v1828 = vunpack.c.l.b16 %v1700
      %v1829 = vunpack.c.l.b16 %v1701
      %v1830 = vunpack.c.l.b16 %v1702
      %v1831 = vunpack.c.l.b16 %v1703
      %v1832 = vunpack.c.l.b16 %v1704
      %v1833 = vpack.c.b16 %v1818, %v1817
      %v1834 = vpack.c.b16 %v1820, %v1819
      %v1835 = vpack.c.b16 %v1822, %v1821
      %v1836 = vpack.c.b16 %v1824, %v1823
      %v1837 = vpack.c.b16 %v1826, %v1825
      %v1838 = vpack.c.b16 %v1828, %v1827
      %v1839 = vpack.c.b16 %v1830, %v1829
      %v1840 = vpack.c.b16 %v1832, %v1831
      %1849 = vmatpush.bf16.msra.mxu0 %v1840
      %1850 = vmatpush.bf16.msra.mxu0 %v1839
      %1851 = vmatpush.bf16.msra.mxu0 %v1838
      %1852 = vmatpush.bf16.msra.mxu0 %v1837
      %1853 = vmatpush.bf16.msra.mxu0 %v1836
      %1854 = vmatpush.bf16.msra.mxu0 %v1835
      %1855 = vmatpush.bf16.msra.mxu0 %v1834
      %1856 = vmatpush.bf16.msra.mxu0 %v1833
      %1857 = vmatmul.bf16.gmra.mxu0 %v1769
      %v1858 = vpop.f32.mrf.mxu0
      %v1859 = vadd.f32 0.0, %v1858
      %v1860 = vpop.f32.mrf.mxu0
      %v1861 = vadd.f32 0.0, %v1860
      %1862 = vmatmul.bf16.gmra.mxu0 %v1770
      %v1863 = vpop.f32.mrf.mxu0
      %v1864 = vadd.f32 0.0, %v1863
      %v1865 = vpop.f32.mrf.mxu0
      %v1866 = vadd.f32 0.0, %v1865
      %1867 = vmatmul.bf16.gmra.mxu0 %v1771
      %v1868 = vpop.f32.mrf.mxu0
      %v1869 = vadd.f32 0.0, %v1868
      %v1870 = vpop.f32.mrf.mxu0
      %v1871 = vadd.f32 0.0, %v1870
      %1872 = vmatmul.bf16.gmra.mxu0 %v1772
      %v1873 = vpop.f32.mrf.mxu0
      %v1874 = vadd.f32 0.0, %v1873
      %v1875 = vpop.f32.mrf.mxu0
      %v1876 = vadd.f32 0.0, %v1875
      %1877 = vmatmul.bf16.gmra.mxu0 %v1773
      %v1878 = vpop.f32.mrf.mxu0
      %v1879 = vadd.f32 0.0, %v1878
      %v1880 = vpop.f32.mrf.mxu0
      %v1881 = vadd.f32 0.0, %v1880
      %1882 = vmatmul.bf16.gmra.mxu0 %v1774
      %v1883 = vpop.f32.mrf.mxu0
      %v1884 = vadd.f32 0.0, %v1883
      %v1885 = vpop.f32.mrf.mxu0
      %v1886 = vadd.f32 0.0, %v1885
      %1887 = vmatmul.bf16.gmra.mxu0 %v1775
      %v1888 = vpop.f32.mrf.mxu0
      %v1889 = vadd.f32 0.0, %v1888
      %v1890 = vpop.f32.mrf.mxu0
      %v1891 = vadd.f32 0.0, %v1890
      %1892 = vmatmul.bf16.gmra.mxu0 %v1776
      %v1893 = vpop.f32.mrf.mxu0
      %v1894 = vadd.f32 0.0, %v1893
      %v1895 = vpop.f32.mrf.mxu0
      %v1896 = vadd.f32 0.0, %v1895
      %1897 = vmatmul.bf16.gmra.mxu0 %v1777
      %v1898 = vpop.f32.mrf.mxu0
      %v1899 = vadd.f32 0.0, %v1898
      %v1900 = vpop.f32.mrf.mxu0
      %v1901 = vadd.f32 0.0, %v1900
      %1902 = vmatmul.bf16.gmra.mxu0 %v1778
      %v1903 = vpop.f32.mrf.mxu0
      %v1904 = vadd.f32 0.0, %v1903
      %v1905 = vpop.f32.mrf.mxu0
      %v1906 = vadd.f32 0.0, %v1905
      %1907 = vmatmul.bf16.gmra.mxu0 %v1779
      %v1908 = vpop.f32.mrf.mxu0
      %v1909 = vadd.f32 0.0, %v1908
      %v1910 = vpop.f32.mrf.mxu0
      %v1911 = vadd.f32 0.0, %v1910
      %1912 = vmatmul.bf16.gmra.mxu0 %v1780
      %v1913 = vpop.f32.mrf.mxu0
      %v1914 = vadd.f32 0.0, %v1913
      %v1915 = vpop.f32.mrf.mxu0
      %v1916 = vadd.f32 0.0, %v1915
      %1917 = vmatmul.bf16.gmra.mxu0 %v1781
      %v1918 = vpop.f32.mrf.mxu0
      %v1919 = vadd.f32 0.0, %v1918
      %v1920 = vpop.f32.mrf.mxu0
      %v1921 = vadd.f32 0.0, %v1920
      %1922 = vmatmul.bf16.gmra.mxu0 %v1782
      %v1923 = vpop.f32.mrf.mxu0
      %v1924 = vadd.f32 0.0, %v1923
      %v1925 = vpop.f32.mrf.mxu0
      %v1926 = vadd.f32 0.0, %v1925
      %1927 = vmatmul.bf16.gmra.mxu0 %v1783
      %v1928 = vpop.f32.mrf.mxu0
      %v1929 = vadd.f32 0.0, %v1928
      %v1930 = vpop.f32.mrf.mxu0
      %v1931 = vadd.f32 0.0, %v1930
      %1932 = vmatmul.bf16.gmra.mxu0 %v1784
      %v1933 = vpop.f32.mrf.mxu0
      %v1934 = vadd.f32 0.0, %v1933
      %v1935 = vpop.f32.mrf.mxu0
      %v1936 = vadd.f32 0.0, %v1935
      %1937 = vdwg.mxu0
      %v1938 = vadd.f32 %v1576, %v1859
      %v1939 = vadd.f32 %v1578, %v1861
      %v1940 = vadd.f32 %v1581, %v1864
      %v1941 = vadd.f32 %v1583, %v1866
      %v1942 = vadd.f32 %v1586, %v1869
      %v1943 = vadd.f32 %v1588, %v1871
      %v1944 = vadd.f32 %v1591, %v1874
      %v1945 = vadd.f32 %v1593, %v1876
      %v1946 = vadd.f32 %v1596, %v1879
      %v1947 = vadd.f32 %v1598, %v1881
      %v1948 = vadd.f32 %v1601, %v1884
      %v1949 = vadd.f32 %v1603, %v1886
      %v1950 = vadd.f32 %v1606, %v1889
      %v1951 = vadd.f32 %v1608, %v1891
      %v1952 = vadd.f32 %v1611, %v1894
      %v1953 = vadd.f32 %v1613, %v1896
      %v1954 = vadd.f32 %v1616, %v1899
      %v1955 = vadd.f32 %v1618, %v1901
      %v1956 = vadd.f32 %v1621, %v1904
      %v1957 = vadd.f32 %v1623, %v1906
      %v1958 = vadd.f32 %v1626, %v1909
      %v1959 = vadd.f32 %v1628, %v1911
      %v1960 = vadd.f32 %v1631, %v1914
      %v1961 = vadd.f32 %v1633, %v1916
      %v1962 = vadd.f32 %v1636, %v1919
      %v1963 = vadd.f32 %v1638, %v1921
      %v1964 = vadd.f32 %v1641, %v1924
      %v1965 = vadd.f32 %v1643, %v1926
      %v1966 = vadd.f32 %v1646, %v1929
      %v1967 = vadd.f32 %v1648, %v1931
      %v1968 = vadd.f32 %v1651, %v1934
      %v1969 = vadd.f32 %v1653, %v1936
      %v1970 = vld [vmem:[%s826] sm:$0xf]
      %v1971 = vld [vmem:[%s826 + $0x4] sm:$0xf]
      %v1972 = vld [vmem:[%s826 + $0x8] sm:$0xf]
      %v1973 = vld [vmem:[%s826 + $0xc] sm:$0xf]
      %v1974 = vld [vmem:[%s826 + $0x10] sm:$0xf]
      %v1975 = vld [vmem:[%s826 + $0x14] sm:$0xf]
      %v1976 = vld [vmem:[%s826 + $0x18] sm:$0xf]
      %v1977 = vld [vmem:[%s826 + $0x1c] sm:$0xf]
      %v1978 = vld [vmem:[%s826 + $0x20] sm:$0xf]
      %v1979 = vld [vmem:[%s826 + $0x24] sm:$0xf]
      %v1980 = vld [vmem:[%s826 + $0x28] sm:$0xf]
      %v1981 = vld [vmem:[%s826 + $0x2c] sm:$0xf]
      %v1982 = vld [vmem:[%s826 + $0x30] sm:$0xf]
      %v1983 = vld [vmem:[%s826 + $0x34] sm:$0xf]
      %v1984 = vld [vmem:[%s826 + $0x38] sm:$0xf]
      %v1985 = vld [vmem:[%s826 + $0x3c] sm:$0xf]
      %v1986 = vld [vmem:[%s826 + $0x40] sm:$0xf]
      %v1987 = vld [vmem:[%s826 + $0x44] sm:$0xf]
      %v1988 = vld [vmem:[%s826 + $0x48] sm:$0xf]
      %v1989 = vld [vmem:[%s826 + $0x4c] sm:$0xf]
      %v1990 = vld [vmem:[%s826 + $0x50] sm:$0xf]
      %v1991 = vld [vmem:[%s826 + $0x54] sm:$0xf]
      %v1992 = vld [vmem:[%s826 + $0x58] sm:$0xf]
      %v1993 = vld [vmem:[%s826 + $0x5c] sm:$0xf]
      %v1994 = vld [vmem:[%s826 + $0x60] sm:$0xf]
      %v1995 = vld [vmem:[%s826 + $0x64] sm:$0xf]
      %v1996 = vld [vmem:[%s826 + $0x68] sm:$0xf]
      %v1997 = vld [vmem:[%s826 + $0x6c] sm:$0xf]
      %v1998 = vld [vmem:[%s826 + $0x70] sm:$0xf]
      %v1999 = vld [vmem:[%s826 + $0x74] sm:$0xf]
      %v2000 = vld [vmem:[%s826 + $0x78] sm:$0xf]
      %v2001 = vld [vmem:[%s826 + $0x7c] sm:$0xf]
      %s2002 = scalar_lea.vmem %s4, 192
      %v2003 = vld [vmem:[%s2002] sm:$0xf]
      %v2004 = vld [vmem:[%s2002 + $0x4] sm:$0xf]
      %v2005 = vld [vmem:[%s2002 + $0x8] sm:$0xf]
      %v2006 = vld [vmem:[%s2002 + $0xc] sm:$0xf]
      %v2007 = vld [vmem:[%s2002 + $0x10] sm:$0xf]
      %v2008 = vld [vmem:[%s2002 + $0x14] sm:$0xf]
      %v2009 = vld [vmem:[%s2002 + $0x18] sm:$0xf]
      %v2010 = vld [vmem:[%s2002 + $0x1c] sm:$0xf]
      %v2011 = vld [vmem:[%s2002 + $0x20] sm:$0xf]
      %v2012 = vld [vmem:[%s2002 + $0x24] sm:$0xf]
      %v2013 = vld [vmem:[%s2002 + $0x28] sm:$0xf]
      %v2014 = vld [vmem:[%s2002 + $0x2c] sm:$0xf]
      %v2015 = vld [vmem:[%s2002 + $0x30] sm:$0xf]
      %v2016 = vld [vmem:[%s2002 + $0x34] sm:$0xf]
      %v2017 = vld [vmem:[%s2002 + $0x38] sm:$0xf]
      %v2018 = vld [vmem:[%s2002 + $0x3c] sm:$0xf]
      %v2051 = vunpack.c.l.b16 %v1970
      %v2052 = vunpack.c.l.b16 %v1971
      %v2053 = vunpack.c.l.b16 %v1972
      %v2054 = vunpack.c.l.b16 %v1973
      %v2055 = vunpack.c.l.b16 %v1974
      %v2056 = vunpack.c.l.b16 %v1975
      %v2057 = vunpack.c.l.b16 %v1976
      %v2058 = vunpack.c.l.b16 %v1977
      %v2059 = vunpack.c.l.b16 %v1978
      %v2060 = vunpack.c.l.b16 %v1979
      %v2061 = vunpack.c.l.b16 %v1980
      %v2062 = vunpack.c.l.b16 %v1981
      %v2063 = vunpack.c.l.b16 %v1982
      %v2064 = vunpack.c.l.b16 %v1983
      %v2065 = vunpack.c.l.b16 %v1984
      %v2066 = vunpack.c.l.b16 %v1985
      %v2067 = vunpack.c.l.b16 %v1986
      %v2068 = vunpack.c.l.b16 %v1987
      %v2069 = vunpack.c.l.b16 %v1988
      %v2070 = vunpack.c.l.b16 %v1989
      %v2071 = vunpack.c.l.b16 %v1990
      %v2072 = vunpack.c.l.b16 %v1991
      %v2073 = vunpack.c.l.b16 %v1992
      %v2074 = vunpack.c.l.b16 %v1993
      %v2075 = vunpack.c.l.b16 %v1994
      %v2076 = vunpack.c.l.b16 %v1995
      %v2077 = vunpack.c.l.b16 %v1996
      %v2078 = vunpack.c.l.b16 %v1997
      %v2079 = vunpack.c.l.b16 %v1998
      %v2080 = vunpack.c.l.b16 %v1999
      %v2081 = vunpack.c.l.b16 %v2000
      %v2082 = vunpack.c.l.b16 %v2001
      %v2083 = vpack.c.b16 %v2052, %v2051
      %v2084 = vpack.c.b16 %v2054, %v2053
      %v2085 = vpack.c.b16 %v2056, %v2055
      %v2086 = vpack.c.b16 %v2058, %v2057
      %v2087 = vpack.c.b16 %v2060, %v2059
      %v2088 = vpack.c.b16 %v2062, %v2061
      %v2089 = vpack.c.b16 %v2064, %v2063
      %v2090 = vpack.c.b16 %v2066, %v2065
      %v2091 = vpack.c.b16 %v2068, %v2067
      %v2092 = vpack.c.b16 %v2070, %v2069
      %v2093 = vpack.c.b16 %v2072, %v2071
      %v2094 = vpack.c.b16 %v2074, %v2073
      %v2095 = vpack.c.b16 %v2076, %v2075
      %v2096 = vpack.c.b16 %v2078, %v2077
      %v2097 = vpack.c.b16 %v2080, %v2079
      %v2098 = vpack.c.b16 %v2082, %v2081
      %v2131 = vunpack.c.l.b16 %v2003
      %v2132 = vunpack.c.l.b16 %v2004
      %v2133 = vunpack.c.l.b16 %v2005
      %v2134 = vunpack.c.l.b16 %v2006
      %v2135 = vunpack.c.l.b16 %v2007
      %v2136 = vunpack.c.l.b16 %v2008
      %v2137 = vunpack.c.l.b16 %v2009
      %v2138 = vunpack.c.l.b16 %v2010
      %v2139 = vunpack.c.l.b16 %v2011
      %v2140 = vunpack.c.l.b16 %v2012
      %v2141 = vunpack.c.l.b16 %v2013
      %v2142 = vunpack.c.l.b16 %v2014
      %v2143 = vunpack.c.l.b16 %v2015
      %v2144 = vunpack.c.l.b16 %v2016
      %v2145 = vunpack.c.l.b16 %v2017
      %v2146 = vunpack.c.l.b16 %v2018
      %v2147 = vpack.c.b16 %v2132, %v2131
      %v2148 = vpack.c.b16 %v2134, %v2133
      %v2149 = vpack.c.b16 %v2136, %v2135
      %v2150 = vpack.c.b16 %v2138, %v2137
      %v2151 = vpack.c.b16 %v2140, %v2139
      %v2152 = vpack.c.b16 %v2142, %v2141
      %v2153 = vpack.c.b16 %v2144, %v2143
      %v2154 = vpack.c.b16 %v2146, %v2145
      %2163 = vmatpush.bf16.msra.mxu0 %v2154
      %2164 = vmatpush.bf16.msra.mxu0 %v2153
      %2165 = vmatpush.bf16.msra.mxu0 %v2152
      %2166 = vmatpush.bf16.msra.mxu0 %v2151
      %2167 = vmatpush.bf16.msra.mxu0 %v2150
      %2168 = vmatpush.bf16.msra.mxu0 %v2149
      %2169 = vmatpush.bf16.msra.mxu0 %v2148
      %2170 = vmatpush.bf16.msra.mxu0 %v2147
      %2171 = vmatmul.bf16.gmra.mxu0 %v2083
      %v2172 = vpop.f32.mrf.mxu0
      %v2173 = vadd.f32 0.0, %v2172
      %v2174 = vpop.f32.mrf.mxu0
      %v2175 = vadd.f32 0.0, %v2174
      %2176 = vmatmul.bf16.gmra.mxu0 %v2084
      %v2177 = vpop.f32.mrf.mxu0
      %v2178 = vadd.f32 0.0, %v2177
      %v2179 = vpop.f32.mrf.mxu0
      %v2180 = vadd.f32 0.0, %v2179
      %2181 = vmatmul.bf16.gmra.mxu0 %v2085
      %v2182 = vpop.f32.mrf.mxu0
      %v2183 = vadd.f32 0.0, %v2182
      %v2184 = vpop.f32.mrf.mxu0
      %v2185 = vadd.f32 0.0, %v2184
      %2186 = vmatmul.bf16.gmra.mxu0 %v2086
      %v2187 = vpop.f32.mrf.mxu0
      %v2188 = vadd.f32 0.0, %v2187
      %v2189 = vpop.f32.mrf.mxu0
      %v2190 = vadd.f32 0.0, %v2189
      %2191 = vmatmul.bf16.gmra.mxu0 %v2087
      %v2192 = vpop.f32.mrf.mxu0
      %v2193 = vadd.f32 0.0, %v2192
      %v2194 = vpop.f32.mrf.mxu0
      %v2195 = vadd.f32 0.0, %v2194
      %2196 = vmatmul.bf16.gmra.mxu0 %v2088
      %v2197 = vpop.f32.mrf.mxu0
      %v2198 = vadd.f32 0.0, %v2197
      %v2199 = vpop.f32.mrf.mxu0
      %v2200 = vadd.f32 0.0, %v2199
      %2201 = vmatmul.bf16.gmra.mxu0 %v2089
      %v2202 = vpop.f32.mrf.mxu0
      %v2203 = vadd.f32 0.0, %v2202
      %v2204 = vpop.f32.mrf.mxu0
      %v2205 = vadd.f32 0.0, %v2204
      %2206 = vmatmul.bf16.gmra.mxu0 %v2090
      %v2207 = vpop.f32.mrf.mxu0
      %v2208 = vadd.f32 0.0, %v2207
      %v2209 = vpop.f32.mrf.mxu0
      %v2210 = vadd.f32 0.0, %v2209
      %2211 = vmatmul.bf16.gmra.mxu0 %v2091
      %v2212 = vpop.f32.mrf.mxu0
      %v2213 = vadd.f32 0.0, %v2212
      %v2214 = vpop.f32.mrf.mxu0
      %v2215 = vadd.f32 0.0, %v2214
      %2216 = vmatmul.bf16.gmra.mxu0 %v2092
      %v2217 = vpop.f32.mrf.mxu0
      %v2218 = vadd.f32 0.0, %v2217
      %v2219 = vpop.f32.mrf.mxu0
      %v2220 = vadd.f32 0.0, %v2219
      %2221 = vmatmul.bf16.gmra.mxu0 %v2093
      %v2222 = vpop.f32.mrf.mxu0
      %v2223 = vadd.f32 0.0, %v2222
      %v2224 = vpop.f32.mrf.mxu0
      %v2225 = vadd.f32 0.0, %v2224
      %2226 = vmatmul.bf16.gmra.mxu0 %v2094
      %v2227 = vpop.f32.mrf.mxu0
      %v2228 = vadd.f32 0.0, %v2227
      %v2229 = vpop.f32.mrf.mxu0
      %v2230 = vadd.f32 0.0, %v2229
      %2231 = vmatmul.bf16.gmra.mxu0 %v2095
      %v2232 = vpop.f32.mrf.mxu0
      %v2233 = vadd.f32 0.0, %v2232
      %v2234 = vpop.f32.mrf.mxu0
      %v2235 = vadd.f32 0.0, %v2234
      %2236 = vmatmul.bf16.gmra.mxu0 %v2096
      %v2237 = vpop.f32.mrf.mxu0
      %v2238 = vadd.f32 0.0, %v2237
      %v2239 = vpop.f32.mrf.mxu0
      %v2240 = vadd.f32 0.0, %v2239
      %2241 = vmatmul.bf16.gmra.mxu0 %v2097
      %v2242 = vpop.f32.mrf.mxu0
      %v2243 = vadd.f32 0.0, %v2242
      %v2244 = vpop.f32.mrf.mxu0
      %v2245 = vadd.f32 0.0, %v2244
      %2246 = vmatmul.bf16.gmra.mxu0 %v2098
      %v2247 = vpop.f32.mrf.mxu0
      %v2248 = vadd.f32 0.0, %v2247
      %v2249 = vpop.f32.mrf.mxu0
      %v2250 = vadd.f32 0.0, %v2249
      %2251 = vdwg.mxu0
      %v2252 = vadd.f32 %v1938, %v2173
      %v2253 = vadd.f32 %v1939, %v2175
      %v2254 = vadd.f32 %v1940, %v2178
      %v2255 = vadd.f32 %v1941, %v2180
      %v2256 = vadd.f32 %v1942, %v2183
      %v2257 = vadd.f32 %v1943, %v2185
      %v2258 = vadd.f32 %v1944, %v2188
      %v2259 = vadd.f32 %v1945, %v2190
      %v2260 = vadd.f32 %v1946, %v2193
      %v2261 = vadd.f32 %v1947, %v2195
      %v2262 = vadd.f32 %v1948, %v2198
      %v2263 = vadd.f32 %v1949, %v2200
      %v2264 = vadd.f32 %v1950, %v2203
      %v2265 = vadd.f32 %v1951, %v2205
      %v2266 = vadd.f32 %v1952, %v2208
      %v2267 = vadd.f32 %v1953, %v2210
      %v2268 = vadd.f32 %v1954, %v2213
      %v2269 = vadd.f32 %v1955, %v2215
      %v2270 = vadd.f32 %v1956, %v2218
      %v2271 = vadd.f32 %v1957, %v2220
      %v2272 = vadd.f32 %v1958, %v2223
      %v2273 = vadd.f32 %v1959, %v2225
      %v2274 = vadd.f32 %v1960, %v2228
      %v2275 = vadd.f32 %v1961, %v2230
      %v2276 = vadd.f32 %v1962, %v2233
      %v2277 = vadd.f32 %v1963, %v2235
      %v2278 = vadd.f32 %v1964, %v2238
      %v2279 = vadd.f32 %v1965, %v2240
      %v2280 = vadd.f32 %v1966, %v2243
      %v2281 = vadd.f32 %v1967, %v2245
      %v2282 = vadd.f32 %v1968, %v2248
      %v2283 = vadd.f32 %v1969, %v2250
      %v2284 = vld [vmem:[%s891] sm:$0xf]
      %v2285 = vld [vmem:[%s891 + $0x4] sm:$0xf]
      %v2286 = vld [vmem:[%s891 + $0x8] sm:$0xf]
      %v2287 = vld [vmem:[%s891 + $0xc] sm:$0xf]
      %v2288 = vld [vmem:[%s891 + $0x10] sm:$0xf]
      %v2289 = vld [vmem:[%s891 + $0x14] sm:$0xf]
      %v2290 = vld [vmem:[%s891 + $0x18] sm:$0xf]
      %v2291 = vld [vmem:[%s891 + $0x1c] sm:$0xf]
      %v2292 = vld [vmem:[%s891 + $0x20] sm:$0xf]
      %v2293 = vld [vmem:[%s891 + $0x24] sm:$0xf]
      %v2294 = vld [vmem:[%s891 + $0x28] sm:$0xf]
      %v2295 = vld [vmem:[%s891 + $0x2c] sm:$0xf]
      %v2296 = vld [vmem:[%s891 + $0x30] sm:$0xf]
      %v2297 = vld [vmem:[%s891 + $0x34] sm:$0xf]
      %v2298 = vld [vmem:[%s891 + $0x38] sm:$0xf]
      %v2299 = vld [vmem:[%s891 + $0x3c] sm:$0xf]
      %v2300 = vld [vmem:[%s891 + $0x40] sm:$0xf]
      %v2301 = vld [vmem:[%s891 + $0x44] sm:$0xf]
      %v2302 = vld [vmem:[%s891 + $0x48] sm:$0xf]
      %v2303 = vld [vmem:[%s891 + $0x4c] sm:$0xf]
      %v2304 = vld [vmem:[%s891 + $0x50] sm:$0xf]
      %v2305 = vld [vmem:[%s891 + $0x54] sm:$0xf]
      %v2306 = vld [vmem:[%s891 + $0x58] sm:$0xf]
      %v2307 = vld [vmem:[%s891 + $0x5c] sm:$0xf]
      %v2308 = vld [vmem:[%s891 + $0x60] sm:$0xf]
      %v2309 = vld [vmem:[%s891 + $0x64] sm:$0xf]
      %v2310 = vld [vmem:[%s891 + $0x68] sm:$0xf]
      %v2311 = vld [vmem:[%s891 + $0x6c] sm:$0xf]
      %v2312 = vld [vmem:[%s891 + $0x70] sm:$0xf]
      %v2313 = vld [vmem:[%s891 + $0x74] sm:$0xf]
      %v2314 = vld [vmem:[%s891 + $0x78] sm:$0xf]
      %v2315 = vld [vmem:[%s891 + $0x7c] sm:$0xf]
      %s2316 = scalar_lea.vmem %s4, 256
      %v2317 = vld [vmem:[%s2316] sm:$0xf]
      %v2318 = vld [vmem:[%s2316 + $0x4] sm:$0xf]
      %v2319 = vld [vmem:[%s2316 + $0x8] sm:$0xf]
      %v2320 = vld [vmem:[%s2316 + $0xc] sm:$0xf]
      %v2321 = vld [vmem:[%s2316 + $0x10] sm:$0xf]
      %v2322 = vld [vmem:[%s2316 + $0x14] sm:$0xf]
      %v2323 = vld [vmem:[%s2316 + $0x18] sm:$0xf]
      %v2324 = vld [vmem:[%s2316 + $0x1c] sm:$0xf]
      %v2325 = vld [vmem:[%s2316 + $0x20] sm:$0xf]
      %v2326 = vld [vmem:[%s2316 + $0x24] sm:$0xf]
      %v2327 = vld [vmem:[%s2316 + $0x28] sm:$0xf]
      %v2328 = vld [vmem:[%s2316 + $0x2c] sm:$0xf]
      %v2329 = vld [vmem:[%s2316 + $0x30] sm:$0xf]
      %v2330 = vld [vmem:[%s2316 + $0x34] sm:$0xf]
      %v2331 = vld [vmem:[%s2316 + $0x38] sm:$0xf]
      %v2332 = vld [vmem:[%s2316 + $0x3c] sm:$0xf]
      %v2365 = vunpack.c.l.b16 %v2284
      %v2366 = vunpack.c.l.b16 %v2285
      %v2367 = vunpack.c.l.b16 %v2286
      %v2368 = vunpack.c.l.b16 %v2287
      %v2369 = vunpack.c.l.b16 %v2288
      %v2370 = vunpack.c.l.b16 %v2289
      %v2371 = vunpack.c.l.b16 %v2290
      %v2372 = vunpack.c.l.b16 %v2291
      %v2373 = vunpack.c.l.b16 %v2292
      %v2374 = vunpack.c.l.b16 %v2293
      %v2375 = vunpack.c.l.b16 %v2294
      %v2376 = vunpack.c.l.b16 %v2295
      %v2377 = vunpack.c.l.b16 %v2296
      %v2378 = vunpack.c.l.b16 %v2297
      %v2379 = vunpack.c.l.b16 %v2298
      %v2380 = vunpack.c.l.b16 %v2299
      %v2381 = vunpack.c.l.b16 %v2300
      %v2382 = vunpack.c.l.b16 %v2301
      %v2383 = vunpack.c.l.b16 %v2302
      %v2384 = vunpack.c.l.b16 %v2303
      %v2385 = vunpack.c.l.b16 %v2304
      %v2386 = vunpack.c.l.b16 %v2305
      %v2387 = vunpack.c.l.b16 %v2306
      %v2388 = vunpack.c.l.b16 %v2307
      %v2389 = vunpack.c.l.b16 %v2308
      %v2390 = vunpack.c.l.b16 %v2309
      %v2391 = vunpack.c.l.b16 %v2310
      %v2392 = vunpack.c.l.b16 %v2311
      %v2393 = vunpack.c.l.b16 %v2312
      %v2394 = vunpack.c.l.b16 %v2313
      %v2395 = vunpack.c.l.b16 %v2314
      %v2396 = vunpack.c.l.b16 %v2315
      %v2397 = vpack.c.b16 %v2366, %v2365
      %v2398 = vpack.c.b16 %v2368, %v2367
      %v2399 = vpack.c.b16 %v2370, %v2369
      %v2400 = vpack.c.b16 %v2372, %v2371
      %v2401 = vpack.c.b16 %v2374, %v2373
      %v2402 = vpack.c.b16 %v2376, %v2375
      %v2403 = vpack.c.b16 %v2378, %v2377
      %v2404 = vpack.c.b16 %v2380, %v2379
      %v2405 = vpack.c.b16 %v2382, %v2381
      %v2406 = vpack.c.b16 %v2384, %v2383
      %v2407 = vpack.c.b16 %v2386, %v2385
      %v2408 = vpack.c.b16 %v2388, %v2387
      %v2409 = vpack.c.b16 %v2390, %v2389
      %v2410 = vpack.c.b16 %v2392, %v2391
      %v2411 = vpack.c.b16 %v2394, %v2393
      %v2412 = vpack.c.b16 %v2396, %v2395
      %v2445 = vunpack.c.l.b16 %v2317
      %v2446 = vunpack.c.l.b16 %v2318
      %v2447 = vunpack.c.l.b16 %v2319
      %v2448 = vunpack.c.l.b16 %v2320
      %v2449 = vunpack.c.l.b16 %v2321
      %v2450 = vunpack.c.l.b16 %v2322
      %v2451 = vunpack.c.l.b16 %v2323
      %v2452 = vunpack.c.l.b16 %v2324
      %v2453 = vunpack.c.l.b16 %v2325
      %v2454 = vunpack.c.l.b16 %v2326
      %v2455 = vunpack.c.l.b16 %v2327
      %v2456 = vunpack.c.l.b16 %v2328
      %v2457 = vunpack.c.l.b16 %v2329
      %v2458 = vunpack.c.l.b16 %v2330
      %v2459 = vunpack.c.l.b16 %v2331
      %v2460 = vunpack.c.l.b16 %v2332
      %v2461 = vpack.c.b16 %v2446, %v2445
      %v2462 = vpack.c.b16 %v2448, %v2447
      %v2463 = vpack.c.b16 %v2450, %v2449
      %v2464 = vpack.c.b16 %v2452, %v2451
      %v2465 = vpack.c.b16 %v2454, %v2453
      %v2466 = vpack.c.b16 %v2456, %v2455
      %v2467 = vpack.c.b16 %v2458, %v2457
      %v2468 = vpack.c.b16 %v2460, %v2459
      %2477 = vmatpush.bf16.msra.mxu0 %v2468
      %2478 = vmatpush.bf16.msra.mxu0 %v2467
      %2479 = vmatpush.bf16.msra.mxu0 %v2466
      %2480 = vmatpush.bf16.msra.mxu0 %v2465
      %2481 = vmatpush.bf16.msra.mxu0 %v2464
      %2482 = vmatpush.bf16.msra.mxu0 %v2463
      %2483 = vmatpush.bf16.msra.mxu0 %v2462
      %2484 = vmatpush.bf16.msra.mxu0 %v2461
      %2485 = vmatmul.bf16.gmra.mxu0 %v2397
      %v2486 = vpop.f32.mrf.mxu0
      %v2487 = vadd.f32 0.0, %v2486
      %v2488 = vpop.f32.mrf.mxu0
      %v2489 = vadd.f32 0.0, %v2488
      %2490 = vmatmul.bf16.gmra.mxu0 %v2398
      %v2491 = vpop.f32.mrf.mxu0
      %v2492 = vadd.f32 0.0, %v2491
      %v2493 = vpop.f32.mrf.mxu0
      %v2494 = vadd.f32 0.0, %v2493
      %2495 = vmatmul.bf16.gmra.mxu0 %v2399
      %v2496 = vpop.f32.mrf.mxu0
      %v2497 = vadd.f32 0.0, %v2496
      %v2498 = vpop.f32.mrf.mxu0
      %v2499 = vadd.f32 0.0, %v2498
      %2500 = vmatmul.bf16.gmra.mxu0 %v2400
      %v2501 = vpop.f32.mrf.mxu0
      %v2502 = vadd.f32 0.0, %v2501
      %v2503 = vpop.f32.mrf.mxu0
      %v2504 = vadd.f32 0.0, %v2503
      %2505 = vmatmul.bf16.gmra.mxu0 %v2401
      %v2506 = vpop.f32.mrf.mxu0
      %v2507 = vadd.f32 0.0, %v2506
      %v2508 = vpop.f32.mrf.mxu0
      %v2509 = vadd.f32 0.0, %v2508
      %2510 = vmatmul.bf16.gmra.mxu0 %v2402
      %v2511 = vpop.f32.mrf.mxu0
      %v2512 = vadd.f32 0.0, %v2511
      %v2513 = vpop.f32.mrf.mxu0
      %v2514 = vadd.f32 0.0, %v2513
      %2515 = vmatmul.bf16.gmra.mxu0 %v2403
      %v2516 = vpop.f32.mrf.mxu0
      %v2517 = vadd.f32 0.0, %v2516
      %v2518 = vpop.f32.mrf.mxu0
      %v2519 = vadd.f32 0.0, %v2518
      %2520 = vmatmul.bf16.gmra.mxu0 %v2404
      %v2521 = vpop.f32.mrf.mxu0
      %v2522 = vadd.f32 0.0, %v2521
      %v2523 = vpop.f32.mrf.mxu0
      %v2524 = vadd.f32 0.0, %v2523
      %2525 = vmatmul.bf16.gmra.mxu0 %v2405
      %v2526 = vpop.f32.mrf.mxu0
      %v2527 = vadd.f32 0.0, %v2526
      %v2528 = vpop.f32.mrf.mxu0
      %v2529 = vadd.f32 0.0, %v2528
      %2530 = vmatmul.bf16.gmra.mxu0 %v2406
      %v2531 = vpop.f32.mrf.mxu0
      %v2532 = vadd.f32 0.0, %v2531
      %v2533 = vpop.f32.mrf.mxu0
      %v2534 = vadd.f32 0.0, %v2533
      %2535 = vmatmul.bf16.gmra.mxu0 %v2407
      %v2536 = vpop.f32.mrf.mxu0
      %v2537 = vadd.f32 0.0, %v2536
      %v2538 = vpop.f32.mrf.mxu0
      %v2539 = vadd.f32 0.0, %v2538
      %2540 = vmatmul.bf16.gmra.mxu0 %v2408
      %v2541 = vpop.f32.mrf.mxu0
      %v2542 = vadd.f32 0.0, %v2541
      %v2543 = vpop.f32.mrf.mxu0
      %v2544 = vadd.f32 0.0, %v2543
      %2545 = vmatmul.bf16.gmra.mxu0 %v2409
      %v2546 = vpop.f32.mrf.mxu0
      %v2547 = vadd.f32 0.0, %v2546
      %v2548 = vpop.f32.mrf.mxu0
      %v2549 = vadd.f32 0.0, %v2548
      %2550 = vmatmul.bf16.gmra.mxu0 %v2410
      %v2551 = vpop.f32.mrf.mxu0
      %v2552 = vadd.f32 0.0, %v2551
      %v2553 = vpop.f32.mrf.mxu0
      %v2554 = vadd.f32 0.0, %v2553
      %2555 = vmatmul.bf16.gmra.mxu0 %v2411
      %v2556 = vpop.f32.mrf.mxu0
      %v2557 = vadd.f32 0.0, %v2556
      %v2558 = vpop.f32.mrf.mxu0
      %v2559 = vadd.f32 0.0, %v2558
      %2560 = vmatmul.bf16.gmra.mxu0 %v2412
      %v2561 = vpop.f32.mrf.mxu0
      %v2562 = vadd.f32 0.0, %v2561
      %v2563 = vpop.f32.mrf.mxu0
      %v2564 = vadd.f32 0.0, %v2563
      %2565 = vdwg.mxu0
      %v2566 = vadd.f32 %v2252, %v2487
      %v2567 = vadd.f32 %v2253, %v2489
      %v2568 = vadd.f32 %v2254, %v2492
      %v2569 = vadd.f32 %v2255, %v2494
      %v2570 = vadd.f32 %v2256, %v2497
      %v2571 = vadd.f32 %v2257, %v2499
      %v2572 = vadd.f32 %v2258, %v2502
      %v2573 = vadd.f32 %v2259, %v2504
      %v2574 = vadd.f32 %v2260, %v2507
      %v2575 = vadd.f32 %v2261, %v2509
      %v2576 = vadd.f32 %v2262, %v2512
      %v2577 = vadd.f32 %v2263, %v2514
      %v2578 = vadd.f32 %v2264, %v2517
      %v2579 = vadd.f32 %v2265, %v2519
      %v2580 = vadd.f32 %v2266, %v2522
      %v2581 = vadd.f32 %v2267, %v2524
      %v2582 = vadd.f32 %v2268, %v2527
      %v2583 = vadd.f32 %v2269, %v2529
      %v2584 = vadd.f32 %v2270, %v2532
      %v2585 = vadd.f32 %v2271, %v2534
      %v2586 = vadd.f32 %v2272, %v2537
      %v2587 = vadd.f32 %v2273, %v2539
      %v2588 = vadd.f32 %v2274, %v2542
      %v2589 = vadd.f32 %v2275, %v2544
      %v2590 = vadd.f32 %v2276, %v2547
      %v2591 = vadd.f32 %v2277, %v2549
      %v2592 = vadd.f32 %v2278, %v2552
      %v2593 = vadd.f32 %v2279, %v2554
      %v2594 = vadd.f32 %v2280, %v2557
      %v2595 = vadd.f32 %v2281, %v2559
      %v2596 = vadd.f32 %v2282, %v2562
      %v2597 = vadd.f32 %v2283, %v2564
      %v2598 = vld [vmem:[%s956] sm:$0xf]
      %v2599 = vld [vmem:[%s956 + $0x4] sm:$0xf]
      %v2600 = vld [vmem:[%s956 + $0x8] sm:$0xf]
      %v2601 = vld [vmem:[%s956 + $0xc] sm:$0xf]
      %v2602 = vld [vmem:[%s956 + $0x10] sm:$0xf]
      %v2603 = vld [vmem:[%s956 + $0x14] sm:$0xf]
      %v2604 = vld [vmem:[%s956 + $0x18] sm:$0xf]
      %v2605 = vld [vmem:[%s956 + $0x1c] sm:$0xf]
      %v2606 = vld [vmem:[%s956 + $0x20] sm:$0xf]
      %v2607 = vld [vmem:[%s956 + $0x24] sm:$0xf]
      %v2608 = vld [vmem:[%s956 + $0x28] sm:$0xf]
      %v2609 = vld [vmem:[%s956 + $0x2c] sm:$0xf]
      %v2610 = vld [vmem:[%s956 + $0x30] sm:$0xf]
      %v2611 = vld [vmem:[%s956 + $0x34] sm:$0xf]
      %v2612 = vld [vmem:[%s956 + $0x38] sm:$0xf]
      %v2613 = vld [vmem:[%s956 + $0x3c] sm:$0xf]
      %v2614 = vld [vmem:[%s956 + $0x40] sm:$0xf]
      %v2615 = vld [vmem:[%s956 + $0x44] sm:$0xf]
      %v2616 = vld [vmem:[%s956 + $0x48] sm:$0xf]
      %v2617 = vld [vmem:[%s956 + $0x4c] sm:$0xf]
      %v2618 = vld [vmem:[%s956 + $0x50] sm:$0xf]
      %v2619 = vld [vmem:[%s956 + $0x54] sm:$0xf]
      %v2620 = vld [vmem:[%s956 + $0x58] sm:$0xf]
      %v2621 = vld [vmem:[%s956 + $0x5c] sm:$0xf]
      %v2622 = vld [vmem:[%s956 + $0x60] sm:$0xf]
      %v2623 = vld [vmem:[%s956 + $0x64] sm:$0xf]
      %v2624 = vld [vmem:[%s956 + $0x68] sm:$0xf]
      %v2625 = vld [vmem:[%s956 + $0x6c] sm:$0xf]
      %v2626 = vld [vmem:[%s956 + $0x70] sm:$0xf]
      %v2627 = vld [vmem:[%s956 + $0x74] sm:$0xf]
      %v2628 = vld [vmem:[%s956 + $0x78] sm:$0xf]
      %v2629 = vld [vmem:[%s956 + $0x7c] sm:$0xf]
      %s2630 = scalar_lea.vmem %s4, 320
      %v2631 = vld [vmem:[%s2630] sm:$0xf]
      %v2632 = vld [vmem:[%s2630 + $0x4] sm:$0xf]
      %v2633 = vld [vmem:[%s2630 + $0x8] sm:$0xf]
      %v2634 = vld [vmem:[%s2630 + $0xc] sm:$0xf]
      %v2635 = vld [vmem:[%s2630 + $0x10] sm:$0xf]
      %v2636 = vld [vmem:[%s2630 + $0x14] sm:$0xf]
      %v2637 = vld [vmem:[%s2630 + $0x18] sm:$0xf]
      %v2638 = vld [vmem:[%s2630 + $0x1c] sm:$0xf]
      %v2639 = vld [vmem:[%s2630 + $0x20] sm:$0xf]
      %v2640 = vld [vmem:[%s2630 + $0x24] sm:$0xf]
      %v2641 = vld [vmem:[%s2630 + $0x28] sm:$0xf]
      %v2642 = vld [vmem:[%s2630 + $0x2c] sm:$0xf]
      %v2643 = vld [vmem:[%s2630 + $0x30] sm:$0xf]
      %v2644 = vld [vmem:[%s2630 + $0x34] sm:$0xf]
      %v2645 = vld [vmem:[%s2630 + $0x38] sm:$0xf]
      %v2646 = vld [vmem:[%s2630 + $0x3c] sm:$0xf]
      %v2679 = vunpack.c.l.b16 %v2598
      %v2680 = vunpack.c.l.b16 %v2599
      %v2681 = vunpack.c.l.b16 %v2600
      %v2682 = vunpack.c.l.b16 %v2601
      %v2683 = vunpack.c.l.b16 %v2602
      %v2684 = vunpack.c.l.b16 %v2603
      %v2685 = vunpack.c.l.b16 %v2604
      %v2686 = vunpack.c.l.b16 %v2605
      %v2687 = vunpack.c.l.b16 %v2606
      %v2688 = vunpack.c.l.b16 %v2607
      %v2689 = vunpack.c.l.b16 %v2608
      %v2690 = vunpack.c.l.b16 %v2609
      %v2691 = vunpack.c.l.b16 %v2610
      %v2692 = vunpack.c.l.b16 %v2611
      %v2693 = vunpack.c.l.b16 %v2612
      %v2694 = vunpack.c.l.b16 %v2613
      %v2695 = vunpack.c.l.b16 %v2614
      %v2696 = vunpack.c.l.b16 %v2615
      %v2697 = vunpack.c.l.b16 %v2616
      %v2698 = vunpack.c.l.b16 %v2617
      %v2699 = vunpack.c.l.b16 %v2618
      %v2700 = vunpack.c.l.b16 %v2619
      %v2701 = vunpack.c.l.b16 %v2620
      %v2702 = vunpack.c.l.b16 %v2621
      %v2703 = vunpack.c.l.b16 %v2622
      %v2704 = vunpack.c.l.b16 %v2623
      %v2705 = vunpack.c.l.b16 %v2624
      %v2706 = vunpack.c.l.b16 %v2625
      %v2707 = vunpack.c.l.b16 %v2626
      %v2708 = vunpack.c.l.b16 %v2627
      %v2709 = vunpack.c.l.b16 %v2628
      %v2710 = vunpack.c.l.b16 %v2629
      %v2711 = vpack.c.b16 %v2680, %v2679
      %v2712 = vpack.c.b16 %v2682, %v2681
      %v2713 = vpack.c.b16 %v2684, %v2683
      %v2714 = vpack.c.b16 %v2686, %v2685
      %v2715 = vpack.c.b16 %v2688, %v2687
      %v2716 = vpack.c.b16 %v2690, %v2689
      %v2717 = vpack.c.b16 %v2692, %v2691
      %v2718 = vpack.c.b16 %v2694, %v2693
      %v2719 = vpack.c.b16 %v2696, %v2695
      %v2720 = vpack.c.b16 %v2698, %v2697
      %v2721 = vpack.c.b16 %v2700, %v2699
      %v2722 = vpack.c.b16 %v2702, %v2701
      %v2723 = vpack.c.b16 %v2704, %v2703
      %v2724 = vpack.c.b16 %v2706, %v2705
      %v2725 = vpack.c.b16 %v2708, %v2707
      %v2726 = vpack.c.b16 %v2710, %v2709
      %v2759 = vunpack.c.l.b16 %v2631
      %v2760 = vunpack.c.l.b16 %v2632
      %v2761 = vunpack.c.l.b16 %v2633
      %v2762 = vunpack.c.l.b16 %v2634
      %v2763 = vunpack.c.l.b16 %v2635
      %v2764 = vunpack.c.l.b16 %v2636
      %v2765 = vunpack.c.l.b16 %v2637
      %v2766 = vunpack.c.l.b16 %v2638
      %v2767 = vunpack.c.l.b16 %v2639
      %v2768 = vunpack.c.l.b16 %v2640
      %v2769 = vunpack.c.l.b16 %v2641
      %v2770 = vunpack.c.l.b16 %v2642
      %v2771 = vunpack.c.l.b16 %v2643
      %v2772 = vunpack.c.l.b16 %v2644
      %v2773 = vunpack.c.l.b16 %v2645
      %v2774 = vunpack.c.l.b16 %v2646
      %v2775 = vpack.c.b16 %v2760, %v2759
      %v2776 = vpack.c.b16 %v2762, %v2761
      %v2777 = vpack.c.b16 %v2764, %v2763
      %v2778 = vpack.c.b16 %v2766, %v2765
      %v2779 = vpack.c.b16 %v2768, %v2767
      %v2780 = vpack.c.b16 %v2770, %v2769
      %v2781 = vpack.c.b16 %v2772, %v2771
      %v2782 = vpack.c.b16 %v2774, %v2773
      %2791 = vmatpush.bf16.msra.mxu0 %v2782
      %2792 = vmatpush.bf16.msra.mxu0 %v2781
      %2793 = vmatpush.bf16.msra.mxu0 %v2780
      %2794 = vmatpush.bf16.msra.mxu0 %v2779
      %2795 = vmatpush.bf16.msra.mxu0 %v2778
      %2796 = vmatpush.bf16.msra.mxu0 %v2777
      %2797 = vmatpush.bf16.msra.mxu0 %v2776
      %2798 = vmatpush.bf16.msra.mxu0 %v2775
      %2799 = vmatmul.bf16.gmra.mxu0 %v2711
      %v2800 = vpop.f32.mrf.mxu0
      %v2801 = vadd.f32 0.0, %v2800
      %v2802 = vpop.f32.mrf.mxu0
      %v2803 = vadd.f32 0.0, %v2802
      %2804 = vmatmul.bf16.gmra.mxu0 %v2712
      %v2805 = vpop.f32.mrf.mxu0
      %v2806 = vadd.f32 0.0, %v2805
      %v2807 = vpop.f32.mrf.mxu0
      %v2808 = vadd.f32 0.0, %v2807
      %2809 = vmatmul.bf16.gmra.mxu0 %v2713
      %v2810 = vpop.f32.mrf.mxu0
      %v2811 = vadd.f32 0.0, %v2810
      %v2812 = vpop.f32.mrf.mxu0
      %v2813 = vadd.f32 0.0, %v2812
      %2814 = vmatmul.bf16.gmra.mxu0 %v2714
      %v2815 = vpop.f32.mrf.mxu0
      %v2816 = vadd.f32 0.0, %v2815
      %v2817 = vpop.f32.mrf.mxu0
      %v2818 = vadd.f32 0.0, %v2817
      %2819 = vmatmul.bf16.gmra.mxu0 %v2715
      %v2820 = vpop.f32.mrf.mxu0
      %v2821 = vadd.f32 0.0, %v2820
      %v2822 = vpop.f32.mrf.mxu0
      %v2823 = vadd.f32 0.0, %v2822
      %2824 = vmatmul.bf16.gmra.mxu0 %v2716
      %v2825 = vpop.f32.mrf.mxu0
      %v2826 = vadd.f32 0.0, %v2825
      %v2827 = vpop.f32.mrf.mxu0
      %v2828 = vadd.f32 0.0, %v2827
      %2829 = vmatmul.bf16.gmra.mxu0 %v2717
      %v2830 = vpop.f32.mrf.mxu0
      %v2831 = vadd.f32 0.0, %v2830
      %v2832 = vpop.f32.mrf.mxu0
      %v2833 = vadd.f32 0.0, %v2832
      %2834 = vmatmul.bf16.gmra.mxu0 %v2718
      %v2835 = vpop.f32.mrf.mxu0
      %v2836 = vadd.f32 0.0, %v2835
      %v2837 = vpop.f32.mrf.mxu0
      %v2838 = vadd.f32 0.0, %v2837
      %2839 = vmatmul.bf16.gmra.mxu0 %v2719
      %v2840 = vpop.f32.mrf.mxu0
      %v2841 = vadd.f32 0.0, %v2840
      %v2842 = vpop.f32.mrf.mxu0
      %v2843 = vadd.f32 0.0, %v2842
      %2844 = vmatmul.bf16.gmra.mxu0 %v2720
      %v2845 = vpop.f32.mrf.mxu0
      %v2846 = vadd.f32 0.0, %v2845
      %v2847 = vpop.f32.mrf.mxu0
      %v2848 = vadd.f32 0.0, %v2847
      %2849 = vmatmul.bf16.gmra.mxu0 %v2721
      %v2850 = vpop.f32.mrf.mxu0
      %v2851 = vadd.f32 0.0, %v2850
      %v2852 = vpop.f32.mrf.mxu0
      %v2853 = vadd.f32 0.0, %v2852
      %2854 = vmatmul.bf16.gmra.mxu0 %v2722
      %v2855 = vpop.f32.mrf.mxu0
      %v2856 = vadd.f32 0.0, %v2855
      %v2857 = vpop.f32.mrf.mxu0
      %v2858 = vadd.f32 0.0, %v2857
      %2859 = vmatmul.bf16.gmra.mxu0 %v2723
      %v2860 = vpop.f32.mrf.mxu0
      %v2861 = vadd.f32 0.0, %v2860
      %v2862 = vpop.f32.mrf.mxu0
      %v2863 = vadd.f32 0.0, %v2862
      %2864 = vmatmul.bf16.gmra.mxu0 %v2724
      %v2865 = vpop.f32.mrf.mxu0
      %v2866 = vadd.f32 0.0, %v2865
      %v2867 = vpop.f32.mrf.mxu0
      %v2868 = vadd.f32 0.0, %v2867
      %2869 = vmatmul.bf16.gmra.mxu0 %v2725
      %v2870 = vpop.f32.mrf.mxu0
      %v2871 = vadd.f32 0.0, %v2870
      %v2872 = vpop.f32.mrf.mxu0
      %v2873 = vadd.f32 0.0, %v2872
      %2874 = vmatmul.bf16.gmra.mxu0 %v2726
      %v2875 = vpop.f32.mrf.mxu0
      %v2876 = vadd.f32 0.0, %v2875
      %v2877 = vpop.f32.mrf.mxu0
      %v2878 = vadd.f32 0.0, %v2877
      %2879 = vdwg.mxu0
      %v2880 = vadd.f32 %v2566, %v2801
      %v2881 = vadd.f32 %v2567, %v2803
      %v2882 = vadd.f32 %v2568, %v2806
      %v2883 = vadd.f32 %v2569, %v2808
      %v2884 = vadd.f32 %v2570, %v2811
      %v2885 = vadd.f32 %v2571, %v2813
      %v2886 = vadd.f32 %v2572, %v2816
      %v2887 = vadd.f32 %v2573, %v2818
      %v2888 = vadd.f32 %v2574, %v2821
      %v2889 = vadd.f32 %v2575, %v2823
      %v2890 = vadd.f32 %v2576, %v2826
      %v2891 = vadd.f32 %v2577, %v2828
      %v2892 = vadd.f32 %v2578, %v2831
      %v2893 = vadd.f32 %v2579, %v2833
      %v2894 = vadd.f32 %v2580, %v2836
      %v2895 = vadd.f32 %v2581, %v2838
      %v2896 = vadd.f32 %v2582, %v2841
      %v2897 = vadd.f32 %v2583, %v2843
      %v2898 = vadd.f32 %v2584, %v2846
      %v2899 = vadd.f32 %v2585, %v2848
      %v2900 = vadd.f32 %v2586, %v2851
      %v2901 = vadd.f32 %v2587, %v2853
      %v2902 = vadd.f32 %v2588, %v2856
      %v2903 = vadd.f32 %v2589, %v2858
      %v2904 = vadd.f32 %v2590, %v2861
      %v2905 = vadd.f32 %v2591, %v2863
      %v2906 = vadd.f32 %v2592, %v2866
      %v2907 = vadd.f32 %v2593, %v2868
      %v2908 = vadd.f32 %v2594, %v2871
      %v2909 = vadd.f32 %v2595, %v2873
      %v2910 = vadd.f32 %v2596, %v2876
      %v2911 = vadd.f32 %v2597, %v2878
      %s2912 = scalar_lea.vmem [#allocation2], 16
      %v2913 = vld [vmem:[%s2912] sm:$0xf]
      %v2914 = vld [vmem:[%s2912 + $0x4] sm:$0xf]
      %v2915 = vld [vmem:[%s2912 + $0x8] sm:$0xf]
      %v2916 = vld [vmem:[%s2912 + $0xc] sm:$0xf]
      %v2917 = vld [vmem:[%s2912 + $0x10] sm:$0xf]
      %v2918 = vld [vmem:[%s2912 + $0x14] sm:$0xf]
      %v2919 = vld [vmem:[%s2912 + $0x18] sm:$0xf]
      %v2920 = vld [vmem:[%s2912 + $0x1c] sm:$0xf]
      %v2921 = vld [vmem:[%s2912 + $0x20] sm:$0xf]
      %v2922 = vld [vmem:[%s2912 + $0x24] sm:$0xf]
      %v2923 = vld [vmem:[%s2912 + $0x28] sm:$0xf]
      %v2924 = vld [vmem:[%s2912 + $0x2c] sm:$0xf]
      %v2925 = vld [vmem:[%s2912 + $0x30] sm:$0xf]
      %v2926 = vld [vmem:[%s2912 + $0x34] sm:$0xf]
      %v2927 = vld [vmem:[%s2912 + $0x38] sm:$0xf]
      %v2928 = vld [vmem:[%s2912 + $0x3c] sm:$0xf]
      %v2929 = vld [vmem:[%s2912 + $0x40] sm:$0xf]
      %v2930 = vld [vmem:[%s2912 + $0x44] sm:$0xf]
      %v2931 = vld [vmem:[%s2912 + $0x48] sm:$0xf]
      %v2932 = vld [vmem:[%s2912 + $0x4c] sm:$0xf]
      %v2933 = vld [vmem:[%s2912 + $0x50] sm:$0xf]
      %v2934 = vld [vmem:[%s2912 + $0x54] sm:$0xf]
      %v2935 = vld [vmem:[%s2912 + $0x58] sm:$0xf]
      %v2936 = vld [vmem:[%s2912 + $0x5c] sm:$0xf]
      %v2937 = vld [vmem:[%s2912 + $0x60] sm:$0xf]
      %v2938 = vld [vmem:[%s2912 + $0x64] sm:$0xf]
      %v2939 = vld [vmem:[%s2912 + $0x68] sm:$0xf]
      %v2940 = vld [vmem:[%s2912 + $0x6c] sm:$0xf]
      %v2941 = vld [vmem:[%s2912 + $0x70] sm:$0xf]
      %v2942 = vld [vmem:[%s2912 + $0x74] sm:$0xf]
      %v2943 = vld [vmem:[%s2912 + $0x78] sm:$0xf]
      %v2944 = vld [vmem:[%s2912 + $0x7c] sm:$0xf]
      %s2945 = scalar_lea.vmem %s4, 384
      %v2946 = vld [vmem:[%s2945] sm:$0xf]
      %v2947 = vld [vmem:[%s2945 + $0x4] sm:$0xf]
      %v2948 = vld [vmem:[%s2945 + $0x8] sm:$0xf]
      %v2949 = vld [vmem:[%s2945 + $0xc] sm:$0xf]
      %v2950 = vld [vmem:[%s2945 + $0x10] sm:$0xf]
      %v2951 = vld [vmem:[%s2945 + $0x14] sm:$0xf]
      %v2952 = vld [vmem:[%s2945 + $0x18] sm:$0xf]
      %v2953 = vld [vmem:[%s2945 + $0x1c] sm:$0xf]
      %v2954 = vld [vmem:[%s2945 + $0x20] sm:$0xf]
      %v2955 = vld [vmem:[%s2945 + $0x24] sm:$0xf]
      %v2956 = vld [vmem:[%s2945 + $0x28] sm:$0xf]
      %v2957 = vld [vmem:[%s2945 + $0x2c] sm:$0xf]
      %v2958 = vld [vmem:[%s2945 + $0x30] sm:$0xf]
      %v2959 = vld [vmem:[%s2945 + $0x34] sm:$0xf]
      %v2960 = vld [vmem:[%s2945 + $0x38] sm:$0xf]
      %v2961 = vld [vmem:[%s2945 + $0x3c] sm:$0xf]
      %v2994 = vunpack.c.l.b16 %v2913
      %v2995 = vunpack.c.l.b16 %v2914
      %v2996 = vunpack.c.l.b16 %v2915
      %v2997 = vunpack.c.l.b16 %v2916
      %v2998 = vunpack.c.l.b16 %v2917
      %v2999 = vunpack.c.l.b16 %v2918
      %v3000 = vunpack.c.l.b16 %v2919
      %v3001 = vunpack.c.l.b16 %v2920
      %v3002 = vunpack.c.l.b16 %v2921
      %v3003 = vunpack.c.l.b16 %v2922
      %v3004 = vunpack.c.l.b16 %v2923
      %v3005 = vunpack.c.l.b16 %v2924
      %v3006 = vunpack.c.l.b16 %v2925
      %v3007 = vunpack.c.l.b16 %v2926
      %v3008 = vunpack.c.l.b16 %v2927
      %v3009 = vunpack.c.l.b16 %v2928
      %v3010 = vunpack.c.l.b16 %v2929
      %v3011 = vunpack.c.l.b16 %v2930
      %v3012 = vunpack.c.l.b16 %v2931
      %v3013 = vunpack.c.l.b16 %v2932
      %v3014 = vunpack.c.l.b16 %v2933
      %v3015 = vunpack.c.l.b16 %v2934
      %v3016 = vunpack.c.l.b16 %v2935
      %v3017 = vunpack.c.l.b16 %v2936
      %v3018 = vunpack.c.l.b16 %v2937
      %v3019 = vunpack.c.l.b16 %v2938
      %v3020 = vunpack.c.l.b16 %v2939
      %v3021 = vunpack.c.l.b16 %v2940
      %v3022 = vunpack.c.l.b16 %v2941
      %v3023 = vunpack.c.l.b16 %v2942
      %v3024 = vunpack.c.l.b16 %v2943
      %v3025 = vunpack.c.l.b16 %v2944
      %v3026 = vpack.c.b16 %v2995, %v2994
      %v3027 = vpack.c.b16 %v2997, %v2996
      %v3028 = vpack.c.b16 %v2999, %v2998
      %v3029 = vpack.c.b16 %v3001, %v3000
      %v3030 = vpack.c.b16 %v3003, %v3002
      %v3031 = vpack.c.b16 %v3005, %v3004
      %v3032 = vpack.c.b16 %v3007, %v3006
      %v3033 = vpack.c.b16 %v3009, %v3008
      %v3034 = vpack.c.b16 %v3011, %v3010
      %v3035 = vpack.c.b16 %v3013, %v3012
      %v3036 = vpack.c.b16 %v3015, %v3014
      %v3037 = vpack.c.b16 %v3017, %v3016
      %v3038 = vpack.c.b16 %v3019, %v3018
      %v3039 = vpack.c.b16 %v3021, %v3020
      %v3040 = vpack.c.b16 %v3023, %v3022
      %v3041 = vpack.c.b16 %v3025, %v3024
      %v3074 = vunpack.c.l.b16 %v2946
      %v3075 = vunpack.c.l.b16 %v2947
      %v3076 = vunpack.c.l.b16 %v2948
      %v3077 = vunpack.c.l.b16 %v2949
      %v3078 = vunpack.c.l.b16 %v2950
      %v3079 = vunpack.c.l.b16 %v2951
      %v3080 = vunpack.c.l.b16 %v2952
      %v3081 = vunpack.c.l.b16 %v2953
      %v3082 = vunpack.c.l.b16 %v2954
      %v3083 = vunpack.c.l.b16 %v2955
      %v3084 = vunpack.c.l.b16 %v2956
      %v3085 = vunpack.c.l.b16 %v2957
      %v3086 = vunpack.c.l.b16 %v2958
      %v3087 = vunpack.c.l.b16 %v2959
      %v3088 = vunpack.c.l.b16 %v2960
      %v3089 = vunpack.c.l.b16 %v2961
      %v3090 = vpack.c.b16 %v3075, %v3074
      %v3091 = vpack.c.b16 %v3077, %v3076
      %v3092 = vpack.c.b16 %v3079, %v3078
      %v3093 = vpack.c.b16 %v3081, %v3080
      %v3094 = vpack.c.b16 %v3083, %v3082
      %v3095 = vpack.c.b16 %v3085, %v3084
      %v3096 = vpack.c.b16 %v3087, %v3086
      %v3097 = vpack.c.b16 %v3089, %v3088
      %3106 = vmatpush.bf16.msra.mxu0 %v3097
      %3107 = vmatpush.bf16.msra.mxu0 %v3096
      %3108 = vmatpush.bf16.msra.mxu0 %v3095
      %3109 = vmatpush.bf16.msra.mxu0 %v3094
      %3110 = vmatpush.bf16.msra.mxu0 %v3093
      %3111 = vmatpush.bf16.msra.mxu0 %v3092
      %3112 = vmatpush.bf16.msra.mxu0 %v3091
      %3113 = vmatpush.bf16.msra.mxu0 %v3090
      %3114 = vmatmul.bf16.gmra.mxu0 %v3026
      %v3115 = vpop.f32.mrf.mxu0
      %v3116 = vadd.f32 0.0, %v3115
      %v3117 = vpop.f32.mrf.mxu0
      %v3118 = vadd.f32 0.0, %v3117
      %3119 = vmatmul.bf16.gmra.mxu0 %v3027
      %v3120 = vpop.f32.mrf.mxu0
      %v3121 = vadd.f32 0.0, %v3120
      %v3122 = vpop.f32.mrf.mxu0
      %v3123 = vadd.f32 0.0, %v3122
      %3124 = vmatmul.bf16.gmra.mxu0 %v3028
      %v3125 = vpop.f32.mrf.mxu0
      %v3126 = vadd.f32 0.0, %v3125
      %v3127 = vpop.f32.mrf.mxu0
      %v3128 = vadd.f32 0.0, %v3127
      %3129 = vmatmul.bf16.gmra.mxu0 %v3029
      %v3130 = vpop.f32.mrf.mxu0
      %v3131 = vadd.f32 0.0, %v3130
      %v3132 = vpop.f32.mrf.mxu0
      %v3133 = vadd.f32 0.0, %v3132
      %3134 = vmatmul.bf16.gmra.mxu0 %v3030
      %v3135 = vpop.f32.mrf.mxu0
      %v3136 = vadd.f32 0.0, %v3135
      %v3137 = vpop.f32.mrf.mxu0
      %v3138 = vadd.f32 0.0, %v3137
      %3139 = vmatmul.bf16.gmra.mxu0 %v3031
      %v3140 = vpop.f32.mrf.mxu0
      %v3141 = vadd.f32 0.0, %v3140
      %v3142 = vpop.f32.mrf.mxu0
      %v3143 = vadd.f32 0.0, %v3142
      %3144 = vmatmul.bf16.gmra.mxu0 %v3032
      %v3145 = vpop.f32.mrf.mxu0
      %v3146 = vadd.f32 0.0, %v3145
      %v3147 = vpop.f32.mrf.mxu0
      %v3148 = vadd.f32 0.0, %v3147
      %3149 = vmatmul.bf16.gmra.mxu0 %v3033
      %v3150 = vpop.f32.mrf.mxu0
      %v3151 = vadd.f32 0.0, %v3150
      %v3152 = vpop.f32.mrf.mxu0
      %v3153 = vadd.f32 0.0, %v3152
      %3154 = vmatmul.bf16.gmra.mxu0 %v3034
      %v3155 = vpop.f32.mrf.mxu0
      %v3156 = vadd.f32 0.0, %v3155
      %v3157 = vpop.f32.mrf.mxu0
      %v3158 = vadd.f32 0.0, %v3157
      %3159 = vmatmul.bf16.gmra.mxu0 %v3035
      %v3160 = vpop.f32.mrf.mxu0
      %v3161 = vadd.f32 0.0, %v3160
      %v3162 = vpop.f32.mrf.mxu0
      %v3163 = vadd.f32 0.0, %v3162
      %3164 = vmatmul.bf16.gmra.mxu0 %v3036
      %v3165 = vpop.f32.mrf.mxu0
      %v3166 = vadd.f32 0.0, %v3165
      %v3167 = vpop.f32.mrf.mxu0
      %v3168 = vadd.f32 0.0, %v3167
      %3169 = vmatmul.bf16.gmra.mxu0 %v3037
      %v3170 = vpop.f32.mrf.mxu0
      %v3171 = vadd.f32 0.0, %v3170
      %v3172 = vpop.f32.mrf.mxu0
      %v3173 = vadd.f32 0.0, %v3172
      %3174 = vmatmul.bf16.gmra.mxu0 %v3038
      %v3175 = vpop.f32.mrf.mxu0
      %v3176 = vadd.f32 0.0, %v3175
      %v3177 = vpop.f32.mrf.mxu0
      %v3178 = vadd.f32 0.0, %v3177
      %3179 = vmatmul.bf16.gmra.mxu0 %v3039
      %v3180 = vpop.f32.mrf.mxu0
      %v3181 = vadd.f32 0.0, %v3180
      %v3182 = vpop.f32.mrf.mxu0
      %v3183 = vadd.f32 0.0, %v3182
      %3184 = vmatmul.bf16.gmra.mxu0 %v3040
      %v3185 = vpop.f32.mrf.mxu0
      %v3186 = vadd.f32 0.0, %v3185
      %v3187 = vpop.f32.mrf.mxu0
      %v3188 = vadd.f32 0.0, %v3187
      %3189 = vmatmul.bf16.gmra.mxu0 %v3041
      %v3190 = vpop.f32.mrf.mxu0
      %v3191 = vadd.f32 0.0, %v3190
      %v3192 = vpop.f32.mrf.mxu0
      %v3193 = vadd.f32 0.0, %v3192
      %3194 = vdwg.mxu0
      %v3195 = vadd.f32 %v2880, %v3116
      %v3196 = vadd.f32 %v2881, %v3118
      %v3197 = vadd.f32 %v2882, %v3121
      %v3198 = vadd.f32 %v2883, %v3123
      %v3199 = vadd.f32 %v2884, %v3126
      %v3200 = vadd.f32 %v2885, %v3128
      %v3201 = vadd.f32 %v2886, %v3131
      %v3202 = vadd.f32 %v2887, %v3133
      %v3203 = vadd.f32 %v2888, %v3136
      %v3204 = vadd.f32 %v2889, %v3138
      %v3205 = vadd.f32 %v2890, %v3141
      %v3206 = vadd.f32 %v2891, %v3143
      %v3207 = vadd.f32 %v2892, %v3146
      %v3208 = vadd.f32 %v2893, %v3148
      %v3209 = vadd.f32 %v2894, %v3151
      %v3210 = vadd.f32 %v2895, %v3153
      %v3211 = vadd.f32 %v2896, %v3156
      %v3212 = vadd.f32 %v2897, %v3158
      %v3213 = vadd.f32 %v2898, %v3161
      %v3214 = vadd.f32 %v2899, %v3163
      %v3215 = vadd.f32 %v2900, %v3166
      %v3216 = vadd.f32 %v2901, %v3168
      %v3217 = vadd.f32 %v2902, %v3171
      %v3218 = vadd.f32 %v2903, %v3173
      %v3219 = vadd.f32 %v2904, %v3176
      %v3220 = vadd.f32 %v2905, %v3178
      %v3221 = vadd.f32 %v2906, %v3181
      %v3222 = vadd.f32 %v2907, %v3183
      %v3223 = vadd.f32 %v2908, %v3186
      %v3224 = vadd.f32 %v2909, %v3188
      %v3225 = vadd.f32 %v2910, %v3191
      %v3226 = vadd.f32 %v2911, %v3193
      %s3227 = scalar_lea.vmem [#allocation2], 160
      %v3228 = vld [vmem:[%s3227] sm:$0xf]
      %v3229 = vld [vmem:[%s3227 + $0x4] sm:$0xf]
      %v3230 = vld [vmem:[%s3227 + $0x8] sm:$0xf]
      %v3231 = vld [vmem:[%s3227 + $0xc] sm:$0xf]
      %v3232 = vld [vmem:[%s3227 + $0x10] sm:$0xf]
      %v3233 = vld [vmem:[%s3227 + $0x14] sm:$0xf]
      %v3234 = vld [vmem:[%s3227 + $0x18] sm:$0xf]
      %v3235 = vld [vmem:[%s3227 + $0x1c] sm:$0xf]
      %v3236 = vld [vmem:[%s3227 + $0x20] sm:$0xf]
      %v3237 = vld [vmem:[%s3227 + $0x24] sm:$0xf]
      %v3238 = vld [vmem:[%s3227 + $0x28] sm:$0xf]
      %v3239 = vld [vmem:[%s3227 + $0x2c] sm:$0xf]
      %v3240 = vld [vmem:[%s3227 + $0x30] sm:$0xf]
      %v3241 = vld [vmem:[%s3227 + $0x34] sm:$0xf]
      %v3242 = vld [vmem:[%s3227 + $0x38] sm:$0xf]
      %v3243 = vld [vmem:[%s3227 + $0x3c] sm:$0xf]
      %v3244 = vld [vmem:[%s3227 + $0x40] sm:$0xf]
      %v3245 = vld [vmem:[%s3227 + $0x44] sm:$0xf]
      %v3246 = vld [vmem:[%s3227 + $0x48] sm:$0xf]
      %v3247 = vld [vmem:[%s3227 + $0x4c] sm:$0xf]
      %v3248 = vld [vmem:[%s3227 + $0x50] sm:$0xf]
      %v3249 = vld [vmem:[%s3227 + $0x54] sm:$0xf]
      %v3250 = vld [vmem:[%s3227 + $0x58] sm:$0xf]
      %v3251 = vld [vmem:[%s3227 + $0x5c] sm:$0xf]
      %v3252 = vld [vmem:[%s3227 + $0x60] sm:$0xf]
      %v3253 = vld [vmem:[%s3227 + $0x64] sm:$0xf]
      %v3254 = vld [vmem:[%s3227 + $0x68] sm:$0xf]
      %v3255 = vld [vmem:[%s3227 + $0x6c] sm:$0xf]
      %v3256 = vld [vmem:[%s3227 + $0x70] sm:$0xf]
      %v3257 = vld [vmem:[%s3227 + $0x74] sm:$0xf]
      %v3258 = vld [vmem:[%s3227 + $0x78] sm:$0xf]
      %v3259 = vld [vmem:[%s3227 + $0x7c] sm:$0xf]
      %s3260 = scalar_lea.vmem %s4, 448
      %v3261 = vld [vmem:[%s3260] sm:$0xf]
      %v3262 = vld [vmem:[%s3260 + $0x4] sm:$0xf]
      %v3263 = vld [vmem:[%s3260 + $0x8] sm:$0xf]
      %v3264 = vld [vmem:[%s3260 + $0xc] sm:$0xf]
      %v3265 = vld [vmem:[%s3260 + $0x10] sm:$0xf]
      %v3266 = vld [vmem:[%s3260 + $0x14] sm:$0xf]
      %v3267 = vld [vmem:[%s3260 + $0x18] sm:$0xf]
      %v3268 = vld [vmem:[%s3260 + $0x1c] sm:$0xf]
      %v3269 = vld [vmem:[%s3260 + $0x20] sm:$0xf]
      %v3270 = vld [vmem:[%s3260 + $0x24] sm:$0xf]
      %v3271 = vld [vmem:[%s3260 + $0x28] sm:$0xf]
      %v3272 = vld [vmem:[%s3260 + $0x2c] sm:$0xf]
      %v3273 = vld [vmem:[%s3260 + $0x30] sm:$0xf]
      %v3274 = vld [vmem:[%s3260 + $0x34] sm:$0xf]
      %v3275 = vld [vmem:[%s3260 + $0x38] sm:$0xf]
      %v3276 = vld [vmem:[%s3260 + $0x3c] sm:$0xf]
      %v3309 = vunpack.c.l.b16 %v3228
      %v3310 = vunpack.c.l.b16 %v3229
      %v3311 = vunpack.c.l.b16 %v3230
      %v3312 = vunpack.c.l.b16 %v3231
      %v3313 = vunpack.c.l.b16 %v3232
      %v3314 = vunpack.c.l.b16 %v3233
      %v3315 = vunpack.c.l.b16 %v3234
      %v3316 = vunpack.c.l.b16 %v3235
      %v3317 = vunpack.c.l.b16 %v3236
      %v3318 = vunpack.c.l.b16 %v3237
      %v3319 = vunpack.c.l.b16 %v3238
      %v3320 = vunpack.c.l.b16 %v3239
      %v3321 = vunpack.c.l.b16 %v3240
      %v3322 = vunpack.c.l.b16 %v3241
      %v3323 = vunpack.c.l.b16 %v3242
      %v3324 = vunpack.c.l.b16 %v3243
      %v3325 = vunpack.c.l.b16 %v3244
      %v3326 = vunpack.c.l.b16 %v3245
      %v3327 = vunpack.c.l.b16 %v3246
      %v3328 = vunpack.c.l.b16 %v3247
      %v3329 = vunpack.c.l.b16 %v3248
      %v3330 = vunpack.c.l.b16 %v3249
      %v3331 = vunpack.c.l.b16 %v3250
      %v3332 = vunpack.c.l.b16 %v3251
      %v3333 = vunpack.c.l.b16 %v3252
      %v3334 = vunpack.c.l.b16 %v3253
      %v3335 = vunpack.c.l.b16 %v3254
      %v3336 = vunpack.c.l.b16 %v3255
      %v3337 = vunpack.c.l.b16 %v3256
      %v3338 = vunpack.c.l.b16 %v3257
      %v3339 = vunpack.c.l.b16 %v3258
      %v3340 = vunpack.c.l.b16 %v3259
      %v3341 = vpack.c.b16 %v3310, %v3309
      %v3342 = vpack.c.b16 %v3312, %v3311
      %v3343 = vpack.c.b16 %v3314, %v3313
      %v3344 = vpack.c.b16 %v3316, %v3315
      %v3345 = vpack.c.b16 %v3318, %v3317
      %v3346 = vpack.c.b16 %v3320, %v3319
      %v3347 = vpack.c.b16 %v3322, %v3321
      %v3348 = vpack.c.b16 %v3324, %v3323
      %v3349 = vpack.c.b16 %v3326, %v3325
      %v3350 = vpack.c.b16 %v3328, %v3327
      %v3351 = vpack.c.b16 %v3330, %v3329
      %v3352 = vpack.c.b16 %v3332, %v3331
      %v3353 = vpack.c.b16 %v3334, %v3333
      %v3354 = vpack.c.b16 %v3336, %v3335
      %v3355 = vpack.c.b16 %v3338, %v3337
      %v3356 = vpack.c.b16 %v3340, %v3339
      %v3389 = vunpack.c.l.b16 %v3261
      %v3390 = vunpack.c.l.b16 %v3262
      %v3391 = vunpack.c.l.b16 %v3263
      %v3392 = vunpack.c.l.b16 %v3264
      %v3393 = vunpack.c.l.b16 %v3265
      %v3394 = vunpack.c.l.b16 %v3266
      %v3395 = vunpack.c.l.b16 %v3267
      %v3396 = vunpack.c.l.b16 %v3268
      %v3397 = vunpack.c.l.b16 %v3269
      %v3398 = vunpack.c.l.b16 %v3270
      %v3399 = vunpack.c.l.b16 %v3271
      %v3400 = vunpack.c.l.b16 %v3272
      %v3401 = vunpack.c.l.b16 %v3273
      %v3402 = vunpack.c.l.b16 %v3274
      %v3403 = vunpack.c.l.b16 %v3275
      %v3404 = vunpack.c.l.b16 %v3276
      %v3405 = vpack.c.b16 %v3390, %v3389
      %v3406 = vpack.c.b16 %v3392, %v3391
      %v3407 = vpack.c.b16 %v3394, %v3393
      %v3408 = vpack.c.b16 %v3396, %v3395
      %v3409 = vpack.c.b16 %v3398, %v3397
      %v3410 = vpack.c.b16 %v3400, %v3399
      %v3411 = vpack.c.b16 %v3402, %v3401
      %v3412 = vpack.c.b16 %v3404, %v3403
      %3421 = vmatpush.bf16.msra.mxu0 %v3412
      %3422 = vmatpush.bf16.msra.mxu0 %v3411
      %3423 = vmatpush.bf16.msra.mxu0 %v3410
      %3424 = vmatpush.bf16.msra.mxu0 %v3409
      %3425 = vmatpush.bf16.msra.mxu0 %v3408
      %3426 = vmatpush.bf16.msra.mxu0 %v3407
      %3427 = vmatpush.bf16.msra.mxu0 %v3406
      %3428 = vmatpush.bf16.msra.mxu0 %v3405
      %3429 = vmatmul.bf16.gmra.mxu0 %v3341
      %v3430 = vpop.f32.mrf.mxu0
      %v3431 = vadd.f32 0.0, %v3430
      %v3432 = vpop.f32.mrf.mxu0
      %v3433 = vadd.f32 0.0, %v3432
      %3434 = vmatmul.bf16.gmra.mxu0 %v3342
      %v3435 = vpop.f32.mrf.mxu0
      %v3436 = vadd.f32 0.0, %v3435
      %v3437 = vpop.f32.mrf.mxu0
      %v3438 = vadd.f32 0.0, %v3437
      %3439 = vmatmul.bf16.gmra.mxu0 %v3343
      %v3440 = vpop.f32.mrf.mxu0
      %v3441 = vadd.f32 0.0, %v3440
      %v3442 = vpop.f32.mrf.mxu0
      %v3443 = vadd.f32 0.0, %v3442
      %3444 = vmatmul.bf16.gmra.mxu0 %v3344
      %v3445 = vpop.f32.mrf.mxu0
      %v3446 = vadd.f32 0.0, %v3445
      %v3447 = vpop.f32.mrf.mxu0
      %v3448 = vadd.f32 0.0, %v3447
      %3449 = vmatmul.bf16.gmra.mxu0 %v3345
      %v3450 = vpop.f32.mrf.mxu0
      %v3451 = vadd.f32 0.0, %v3450
      %v3452 = vpop.f32.mrf.mxu0
      %v3453 = vadd.f32 0.0, %v3452
      %3454 = vmatmul.bf16.gmra.mxu0 %v3346
      %v3455 = vpop.f32.mrf.mxu0
      %v3456 = vadd.f32 0.0, %v3455
      %v3457 = vpop.f32.mrf.mxu0
      %v3458 = vadd.f32 0.0, %v3457
      %3459 = vmatmul.bf16.gmra.mxu0 %v3347
      %v3460 = vpop.f32.mrf.mxu0
      %v3461 = vadd.f32 0.0, %v3460
      %v3462 = vpop.f32.mrf.mxu0
      %v3463 = vadd.f32 0.0, %v3462
      %3464 = vmatmul.bf16.gmra.mxu0 %v3348
      %v3465 = vpop.f32.mrf.mxu0
      %v3466 = vadd.f32 0.0, %v3465
      %v3467 = vpop.f32.mrf.mxu0
      %v3468 = vadd.f32 0.0, %v3467
      %3469 = vmatmul.bf16.gmra.mxu0 %v3349
      %v3470 = vpop.f32.mrf.mxu0
      %v3471 = vadd.f32 0.0, %v3470
      %v3472 = vpop.f32.mrf.mxu0
      %v3473 = vadd.f32 0.0, %v3472
      %3474 = vmatmul.bf16.gmra.mxu0 %v3350
      %v3475 = vpop.f32.mrf.mxu0
      %v3476 = vadd.f32 0.0, %v3475
      %v3477 = vpop.f32.mrf.mxu0
      %v3478 = vadd.f32 0.0, %v3477
      %3479 = vmatmul.bf16.gmra.mxu0 %v3351
      %v3480 = vpop.f32.mrf.mxu0
      %v3481 = vadd.f32 0.0, %v3480
      %v3482 = vpop.f32.mrf.mxu0
      %v3483 = vadd.f32 0.0, %v3482
      %3484 = vmatmul.bf16.gmra.mxu0 %v3352
      %v3485 = vpop.f32.mrf.mxu0
      %v3486 = vadd.f32 0.0, %v3485
      %v3487 = vpop.f32.mrf.mxu0
      %v3488 = vadd.f32 0.0, %v3487
      %3489 = vmatmul.bf16.gmra.mxu0 %v3353
      %v3490 = vpop.f32.mrf.mxu0
      %v3491 = vadd.f32 0.0, %v3490
      %v3492 = vpop.f32.mrf.mxu0
      %v3493 = vadd.f32 0.0, %v3492
      %3494 = vmatmul.bf16.gmra.mxu0 %v3354
      %v3495 = vpop.f32.mrf.mxu0
      %v3496 = vadd.f32 0.0, %v3495
      %v3497 = vpop.f32.mrf.mxu0
      %v3498 = vadd.f32 0.0, %v3497
      %3499 = vmatmul.bf16.gmra.mxu0 %v3355
      %v3500 = vpop.f32.mrf.mxu0
      %v3501 = vadd.f32 0.0, %v3500
      %v3502 = vpop.f32.mrf.mxu0
      %v3503 = vadd.f32 0.0, %v3502
      %3504 = vmatmul.bf16.gmra.mxu0 %v3356
      %v3505 = vpop.f32.mrf.mxu0
      %v3506 = vadd.f32 0.0, %v3505
      %v3507 = vpop.f32.mrf.mxu0
      %v3508 = vadd.f32 0.0, %v3507
      %3509 = vdwg.mxu0
      %v3510 = vadd.f32 %v3195, %v3431
      %v3511 = vadd.f32 %v3196, %v3433
      %v3512 = vadd.f32 %v3197, %v3436
      %v3513 = vadd.f32 %v3198, %v3438
      %v3514 = vadd.f32 %v3199, %v3441
      %v3515 = vadd.f32 %v3200, %v3443
      %v3516 = vadd.f32 %v3201, %v3446
      %v3517 = vadd.f32 %v3202, %v3448
      %v3518 = vadd.f32 %v3203, %v3451
      %v3519 = vadd.f32 %v3204, %v3453
      %v3520 = vadd.f32 %v3205, %v3456
      %v3521 = vadd.f32 %v3206, %v3458
      %v3522 = vadd.f32 %v3207, %v3461
      %v3523 = vadd.f32 %v3208, %v3463
      %v3524 = vadd.f32 %v3209, %v3466
      %v3525 = vadd.f32 %v3210, %v3468
      %v3526 = vadd.f32 %v3211, %v3471
      %v3527 = vadd.f32 %v3212, %v3473
      %v3528 = vadd.f32 %v3213, %v3476
      %v3529 = vadd.f32 %v3214, %v3478
      %v3530 = vadd.f32 %v3215, %v3481
      %v3531 = vadd.f32 %v3216, %v3483
      %v3532 = vadd.f32 %v3217, %v3486
      %v3533 = vadd.f32 %v3218, %v3488
      %v3534 = vadd.f32 %v3219, %v3491
      %v3535 = vadd.f32 %v3220, %v3493
      %v3536 = vadd.f32 %v3221, %v3496
      %v3537 = vadd.f32 %v3222, %v3498
      %v3538 = vadd.f32 %v3223, %v3501
      %v3539 = vadd.f32 %v3224, %v3503
      %v3540 = vadd.f32 %v3225, %v3506
      %v3541 = vadd.f32 %v3226, %v3508
      %s3542 = scalar_lea.vmem [#allocation2], 304
      %v3543 = vld [vmem:[%s3542] sm:$0xf]
      %v3544 = vld [vmem:[%s3542 + $0x4] sm:$0xf]
      %v3545 = vld [vmem:[%s3542 + $0x8] sm:$0xf]
      %v3546 = vld [vmem:[%s3542 + $0xc] sm:$0xf]
      %v3547 = vld [vmem:[%s3542 + $0x10] sm:$0xf]
      %v3548 = vld [vmem:[%s3542 + $0x14] sm:$0xf]
      %v3549 = vld [vmem:[%s3542 + $0x18] sm:$0xf]
      %v3550 = vld [vmem:[%s3542 + $0x1c] sm:$0xf]
      %v3551 = vld [vmem:[%s3542 + $0x20] sm:$0xf]
      %v3552 = vld [vmem:[%s3542 + $0x24] sm:$0xf]
      %v3553 = vld [vmem:[%s3542 + $0x28] sm:$0xf]
      %v3554 = vld [vmem:[%s3542 + $0x2c] sm:$0xf]
      %v3555 = vld [vmem:[%s3542 + $0x30] sm:$0xf]
      %v3556 = vld [vmem:[%s3542 + $0x34] sm:$0xf]
      %v3557 = vld [vmem:[%s3542 + $0x38] sm:$0xf]
      %v3558 = vld [vmem:[%s3542 + $0x3c] sm:$0xf]
      %v3559 = vld [vmem:[%s3542 + $0x40] sm:$0xf]
      %v3560 = vld [vmem:[%s3542 + $0x44] sm:$0xf]
      %v3561 = vld [vmem:[%s3542 + $0x48] sm:$0xf]
      %v3562 = vld [vmem:[%s3542 + $0x4c] sm:$0xf]
      %v3563 = vld [vmem:[%s3542 + $0x50] sm:$0xf]
      %v3564 = vld [vmem:[%s3542 + $0x54] sm:$0xf]
      %v3565 = vld [vmem:[%s3542 + $0x58] sm:$0xf]
      %v3566 = vld [vmem:[%s3542 + $0x5c] sm:$0xf]
      %v3567 = vld [vmem:[%s3542 + $0x60] sm:$0xf]
      %v3568 = vld [vmem:[%s3542 + $0x64] sm:$0xf]
      %v3569 = vld [vmem:[%s3542 + $0x68] sm:$0xf]
      %v3570 = vld [vmem:[%s3542 + $0x6c] sm:$0xf]
      %v3571 = vld [vmem:[%s3542 + $0x70] sm:$0xf]
      %v3572 = vld [vmem:[%s3542 + $0x74] sm:$0xf]
      %v3573 = vld [vmem:[%s3542 + $0x78] sm:$0xf]
      %v3574 = vld [vmem:[%s3542 + $0x7c] sm:$0xf]
      %s3575 = scalar_lea.vmem %s4, 512
      %v3576 = vld [vmem:[%s3575] sm:$0xf]
      %v3577 = vld [vmem:[%s3575 + $0x4] sm:$0xf]
      %v3578 = vld [vmem:[%s3575 + $0x8] sm:$0xf]
      %v3579 = vld [vmem:[%s3575 + $0xc] sm:$0xf]
      %v3580 = vld [vmem:[%s3575 + $0x10] sm:$0xf]
      %v3581 = vld [vmem:[%s3575 + $0x14] sm:$0xf]
      %v3582 = vld [vmem:[%s3575 + $0x18] sm:$0xf]
      %v3583 = vld [vmem:[%s3575 + $0x1c] sm:$0xf]
      %v3584 = vld [vmem:[%s3575 + $0x20] sm:$0xf]
      %v3585 = vld [vmem:[%s3575 + $0x24] sm:$0xf]
      %v3586 = vld [vmem:[%s3575 + $0x28] sm:$0xf]
      %v3587 = vld [vmem:[%s3575 + $0x2c] sm:$0xf]
      %v3588 = vld [vmem:[%s3575 + $0x30] sm:$0xf]
      %v3589 = vld [vmem:[%s3575 + $0x34] sm:$0xf]
      %v3590 = vld [vmem:[%s3575 + $0x38] sm:$0xf]
      %v3591 = vld [vmem:[%s3575 + $0x3c] sm:$0xf]
      %v3624 = vunpack.c.l.b16 %v3543
      %v3625 = vunpack.c.l.b16 %v3544
      %v3626 = vunpack.c.l.b16 %v3545
      %v3627 = vunpack.c.l.b16 %v3546
      %v3628 = vunpack.c.l.b16 %v3547
      %v3629 = vunpack.c.l.b16 %v3548
      %v3630 = vunpack.c.l.b16 %v3549
      %v3631 = vunpack.c.l.b16 %v3550
      %v3632 = vunpack.c.l.b16 %v3551
      %v3633 = vunpack.c.l.b16 %v3552
      %v3634 = vunpack.c.l.b16 %v3553
      %v3635 = vunpack.c.l.b16 %v3554
      %v3636 = vunpack.c.l.b16 %v3555
      %v3637 = vunpack.c.l.b16 %v3556
      %v3638 = vunpack.c.l.b16 %v3557
      %v3639 = vunpack.c.l.b16 %v3558
      %v3640 = vunpack.c.l.b16 %v3559
      %v3641 = vunpack.c.l.b16 %v3560
      %v3642 = vunpack.c.l.b16 %v3561
      %v3643 = vunpack.c.l.b16 %v3562
      %v3644 = vunpack.c.l.b16 %v3563
      %v3645 = vunpack.c.l.b16 %v3564
      %v3646 = vunpack.c.l.b16 %v3565
      %v3647 = vunpack.c.l.b16 %v3566
      %v3648 = vunpack.c.l.b16 %v3567
      %v3649 = vunpack.c.l.b16 %v3568
      %v3650 = vunpack.c.l.b16 %v3569
      %v3651 = vunpack.c.l.b16 %v3570
      %v3652 = vunpack.c.l.b16 %v3571
      %v3653 = vunpack.c.l.b16 %v3572
      %v3654 = vunpack.c.l.b16 %v3573
      %v3655 = vunpack.c.l.b16 %v3574
      %v3656 = vpack.c.b16 %v3625, %v3624
      %v3657 = vpack.c.b16 %v3627, %v3626
      %v3658 = vpack.c.b16 %v3629, %v3628
      %v3659 = vpack.c.b16 %v3631, %v3630
      %v3660 = vpack.c.b16 %v3633, %v3632
      %v3661 = vpack.c.b16 %v3635, %v3634
      %v3662 = vpack.c.b16 %v3637, %v3636
      %v3663 = vpack.c.b16 %v3639, %v3638
      %v3664 = vpack.c.b16 %v3641, %v3640
      %v3665 = vpack.c.b16 %v3643, %v3642
      %v3666 = vpack.c.b16 %v3645, %v3644
      %v3667 = vpack.c.b16 %v3647, %v3646
      %v3668 = vpack.c.b16 %v3649, %v3648
      %v3669 = vpack.c.b16 %v3651, %v3650
      %v3670 = vpack.c.b16 %v3653, %v3652
      %v3671 = vpack.c.b16 %v3655, %v3654
      %v3704 = vunpack.c.l.b16 %v3576
      %v3705 = vunpack.c.l.b16 %v3577
      %v3706 = vunpack.c.l.b16 %v3578
      %v3707 = vunpack.c.l.b16 %v3579
      %v3708 = vunpack.c.l.b16 %v3580
      %v3709 = vunpack.c.l.b16 %v3581
      %v3710 = vunpack.c.l.b16 %v3582
      %v3711 = vunpack.c.l.b16 %v3583
      %v3712 = vunpack.c.l.b16 %v3584
      %v3713 = vunpack.c.l.b16 %v3585
      %v3714 = vunpack.c.l.b16 %v3586
      %v3715 = vunpack.c.l.b16 %v3587
      %v3716 = vunpack.c.l.b16 %v3588
      %v3717 = vunpack.c.l.b16 %v3589
      %v3718 = vunpack.c.l.b16 %v3590
      %v3719 = vunpack.c.l.b16 %v3591
      %v3720 = vpack.c.b16 %v3705, %v3704
      %v3721 = vpack.c.b16 %v3707, %v3706
      %v3722 = vpack.c.b16 %v3709, %v3708
      %v3723 = vpack.c.b16 %v3711, %v3710
      %v3724 = vpack.c.b16 %v3713, %v3712
      %v3725 = vpack.c.b16 %v3715, %v3714
      %v3726 = vpack.c.b16 %v3717, %v3716
      %v3727 = vpack.c.b16 %v3719, %v3718
      %3736 = vmatpush.bf16.msra.mxu0 %v3727
      %3737 = vmatpush.bf16.msra.mxu0 %v3726
      %3738 = vmatpush.bf16.msra.mxu0 %v3725
      %3739 = vmatpush.bf16.msra.mxu0 %v3724
      %3740 = vmatpush.bf16.msra.mxu0 %v3723
      %3741 = vmatpush.bf16.msra.mxu0 %v3722
      %3742 = vmatpush.bf16.msra.mxu0 %v3721
      %3743 = vmatpush.bf16.msra.mxu0 %v3720
      %3744 = vmatmul.bf16.gmra.mxu0 %v3656
      %v3745 = vpop.f32.mrf.mxu0
      %v3746 = vadd.f32 0.0, %v3745
      %v3747 = vpop.f32.mrf.mxu0
      %v3748 = vadd.f32 0.0, %v3747
      %3749 = vmatmul.bf16.gmra.mxu0 %v3657
      %v3750 = vpop.f32.mrf.mxu0
      %v3751 = vadd.f32 0.0, %v3750
      %v3752 = vpop.f32.mrf.mxu0
      %v3753 = vadd.f32 0.0, %v3752
      %3754 = vmatmul.bf16.gmra.mxu0 %v3658
      %v3755 = vpop.f32.mrf.mxu0
      %v3756 = vadd.f32 0.0, %v3755
      %v3757 = vpop.f32.mrf.mxu0
      %v3758 = vadd.f32 0.0, %v3757
      %3759 = vmatmul.bf16.gmra.mxu0 %v3659
      %v3760 = vpop.f32.mrf.mxu0
      %v3761 = vadd.f32 0.0, %v3760
      %v3762 = vpop.f32.mrf.mxu0
      %v3763 = vadd.f32 0.0, %v3762
      %3764 = vmatmul.bf16.gmra.mxu0 %v3660
      %v3765 = vpop.f32.mrf.mxu0
      %v3766 = vadd.f32 0.0, %v3765
      %v3767 = vpop.f32.mrf.mxu0
      %v3768 = vadd.f32 0.0, %v3767
      %3769 = vmatmul.bf16.gmra.mxu0 %v3661
      %v3770 = vpop.f32.mrf.mxu0
      %v3771 = vadd.f32 0.0, %v3770
      %v3772 = vpop.f32.mrf.mxu0
      %v3773 = vadd.f32 0.0, %v3772
      %3774 = vmatmul.bf16.gmra.mxu0 %v3662
      %v3775 = vpop.f32.mrf.mxu0
      %v3776 = vadd.f32 0.0, %v3775
      %v3777 = vpop.f32.mrf.mxu0
      %v3778 = vadd.f32 0.0, %v3777
      %3779 = vmatmul.bf16.gmra.mxu0 %v3663
      %v3780 = vpop.f32.mrf.mxu0
      %v3781 = vadd.f32 0.0, %v3780
      %v3782 = vpop.f32.mrf.mxu0
      %v3783 = vadd.f32 0.0, %v3782
      %3784 = vmatmul.bf16.gmra.mxu0 %v3664
      %v3785 = vpop.f32.mrf.mxu0
      %v3786 = vadd.f32 0.0, %v3785
      %v3787 = vpop.f32.mrf.mxu0
      %v3788 = vadd.f32 0.0, %v3787
      %3789 = vmatmul.bf16.gmra.mxu0 %v3665
      %v3790 = vpop.f32.mrf.mxu0
      %v3791 = vadd.f32 0.0, %v3790
      %v3792 = vpop.f32.mrf.mxu0
      %v3793 = vadd.f32 0.0, %v3792
      %3794 = vmatmul.bf16.gmra.mxu0 %v3666
      %v3795 = vpop.f32.mrf.mxu0
      %v3796 = vadd.f32 0.0, %v3795
      %v3797 = vpop.f32.mrf.mxu0
      %v3798 = vadd.f32 0.0, %v3797
      %3799 = vmatmul.bf16.gmra.mxu0 %v3667
      %v3800 = vpop.f32.mrf.mxu0
      %v3801 = vadd.f32 0.0, %v3800
      %v3802 = vpop.f32.mrf.mxu0
      %v3803 = vadd.f32 0.0, %v3802
      %3804 = vmatmul.bf16.gmra.mxu0 %v3668
      %v3805 = vpop.f32.mrf.mxu0
      %v3806 = vadd.f32 0.0, %v3805
      %v3807 = vpop.f32.mrf.mxu0
      %v3808 = vadd.f32 0.0, %v3807
      %3809 = vmatmul.bf16.gmra.mxu0 %v3669
      %v3810 = vpop.f32.mrf.mxu0
      %v3811 = vadd.f32 0.0, %v3810
      %v3812 = vpop.f32.mrf.mxu0
      %v3813 = vadd.f32 0.0, %v3812
      %3814 = vmatmul.bf16.gmra.mxu0 %v3670
      %v3815 = vpop.f32.mrf.mxu0
      %v3816 = vadd.f32 0.0, %v3815
      %v3817 = vpop.f32.mrf.mxu0
      %v3818 = vadd.f32 0.0, %v3817
      %3819 = vmatmul.bf16.gmra.mxu0 %v3671
      %v3820 = vpop.f32.mrf.mxu0
      %v3821 = vadd.f32 0.0, %v3820
      %v3822 = vpop.f32.mrf.mxu0
      %v3823 = vadd.f32 0.0, %v3822
      %3824 = vdwg.mxu0
      %v3825 = vadd.f32 %v3510, %v3746
      %v3826 = vadd.f32 %v3511, %v3748
      %v3827 = vadd.f32 %v3512, %v3751
      %v3828 = vadd.f32 %v3513, %v3753
      %v3829 = vadd.f32 %v3514, %v3756
      %v3830 = vadd.f32 %v3515, %v3758
      %v3831 = vadd.f32 %v3516, %v3761
      %v3832 = vadd.f32 %v3517, %v3763
      %v3833 = vadd.f32 %v3518, %v3766
      %v3834 = vadd.f32 %v3519, %v3768
      %v3835 = vadd.f32 %v3520, %v3771
      %v3836 = vadd.f32 %v3521, %v3773
      %v3837 = vadd.f32 %v3522, %v3776
      %v3838 = vadd.f32 %v3523, %v3778
      %v3839 = vadd.f32 %v3524, %v3781
      %v3840 = vadd.f32 %v3525, %v3783
      %v3841 = vadd.f32 %v3526, %v3786
      %v3842 = vadd.f32 %v3527, %v3788
      %v3843 = vadd.f32 %v3528, %v3791
      %v3844 = vadd.f32 %v3529, %v3793
      %v3845 = vadd.f32 %v3530, %v3796
      %v3846 = vadd.f32 %v3531, %v3798
      %v3847 = vadd.f32 %v3532, %v3801
      %v3848 = vadd.f32 %v3533, %v3803
      %v3849 = vadd.f32 %v3534, %v3806
      %v3850 = vadd.f32 %v3535, %v3808
      %v3851 = vadd.f32 %v3536, %v3811
      %v3852 = vadd.f32 %v3537, %v3813
      %v3853 = vadd.f32 %v3538, %v3816
      %v3854 = vadd.f32 %v3539, %v3818
      %v3855 = vadd.f32 %v3540, %v3821
      %v3856 = vadd.f32 %v3541, %v3823
      %3857 = vst [vmem:[%s258] sm:$0xff] %v3825
      %3858 = vst [vmem:[%s258 + $0x8] sm:$0xff] %v3826
      %3859 = vst [vmem:[%s258 + $0x10] sm:$0xff] %v3827
      %3860 = vst [vmem:[%s258 + $0x18] sm:$0xff] %v3828
      %3861 = vst [vmem:[%s258 + $0x20] sm:$0xff] %v3829
      %3862 = vst [vmem:[%s258 + $0x28] sm:$0xff] %v3830
      %3863 = vst [vmem:[%s258 + $0x30] sm:$0xff] %v3831
      %3864 = vst [vmem:[%s258 + $0x38] sm:$0xff] %v3832
      %3865 = vst [vmem:[%s258 + $0x40] sm:$0xff] %v3833
      %3866 = vst [vmem:[%s258 + $0x48] sm:$0xff] %v3834
      %3867 = vst [vmem:[%s258 + $0x50] sm:$0xff] %v3835
      %3868 = vst [vmem:[%s258 + $0x58] sm:$0xff] %v3836
      %3869 = vst [vmem:[%s258 + $0x60] sm:$0xff] %v3837
      %3870 = vst [vmem:[%s258 + $0x68] sm:$0xff] %v3838
      %3871 = vst [vmem:[%s258 + $0x70] sm:$0xff] %v3839
      %3872 = vst [vmem:[%s258 + $0x78] sm:$0xff] %v3840
      %3873 = vst [vmem:[%s258 + $0x80] sm:$0xff] %v3841
      %3874 = vst [vmem:[%s258 + $0x88] sm:$0xff] %v3842
      %3875 = vst [vmem:[%s258 + $0x90] sm:$0xff] %v3843
      %3876 = vst [vmem:[%s258 + $0x98] sm:$0xff] %v3844
      %3877 = vst [vmem:[%s258 + $0xa0] sm:$0xff] %v3845
      %3878 = vst [vmem:[%s258 + $0xa8] sm:$0xff] %v3846
      %3879 = vst [vmem:[%s258 + $0xb0] sm:$0xff] %v3847
      %3880 = vst [vmem:[%s258 + $0xb8] sm:$0xff] %v3848
      %3881 = vst [vmem:[%s258 + $0xc0] sm:$0xff] %v3849
      %3882 = vst [vmem:[%s258 + $0xc8] sm:$0xff] %v3850
      %3883 = vst [vmem:[%s258 + $0xd0] sm:$0xff] %v3851
      %3884 = vst [vmem:[%s258 + $0xd8] sm:$0xff] %v3852
      %3885 = vst [vmem:[%s258 + $0xe0] sm:$0xff] %v3853
      %3886 = vst [vmem:[%s258 + $0xe8] sm:$0xff] %v3854
      %3887 = vst [vmem:[%s258 + $0xf0] sm:$0xff] %v3855
      %3888 = vst [vmem:[%s258 + $0xf8] sm:$0xff] %v3856
      %v3889 = vadd.f32 %v3825, %v3826
      %v3890 = vadd.f32 %v3889, %v3827
      %v3891 = vadd.f32 %v3890, %v3828
      %v3892 = vadd.f32 %v3891, %v3829
      %v3893 = vadd.f32 %v3892, %v3830
      %v3894 = vadd.f32 %v3893, %v3831
      %v3895 = vadd.f32 %v3894, %v3832
      %v3896 = vadd.f32 %v3895, %v3833
      %v3897 = vadd.f32 %v3896, %v3834
      %v3898 = vadd.f32 %v3897, %v3835
      %v3899 = vadd.f32 %v3898, %v3836
      %v3900 = vadd.f32 %v3899, %v3837
      %v3901 = vadd.f32 %v3900, %v3838
      %v3902 = vadd.f32 %v3901, %v3839
      %v3903 = vadd.f32 %v3902, %v3840
      %v3904 = vadd.f32 %v3903, %v3841
      %v3905 = vadd.f32 %v3904, %v3842
      %v3906 = vadd.f32 %v3905, %v3843
      %v3907 = vadd.f32 %v3906, %v3844
      %v3908 = vadd.f32 %v3907, %v3845
      %v3909 = vadd.f32 %v3908, %v3846
      %v3910 = vadd.f32 %v3909, %v3847
      %v3911 = vadd.f32 %v3910, %v3848
      %v3912 = vadd.f32 %v3911, %v3849
      %v3913 = vadd.f32 %v3912, %v3850
      %v3914 = vadd.f32 %v3913, %v3851
      %v3915 = vadd.f32 %v3914, %v3852
      %v3916 = vadd.f32 %v3915, %v3853
      %v3917 = vadd.f32 %v3916, %v3854
      %v3918 = vadd.f32 %v3917, %v3855
      %v3919 = vadd.f32 %v3918, %v3856
      %v3920 = vrot.slane %v3919, 4
      %v3921 = vadd.f32 %v3919, %v3920
      %v3922 = vrot.slane %v3921, 2
      %v3923 = vadd.f32 %v3921, %v3922
      %v3924 = vrot.slane %v3923, 1
      %v3925 = vadd.f32 %v3923, %v3924
      %3926 = vst [vmem:[%s262] sm:$0x1] %v3925
      %v3927 = vmul.f32 %v3825, %v3825
      %v3928 = vmul.f32 %v3826, %v3826
      %v3929 = vmul.f32 %v3827, %v3827
      %v3930 = vmul.f32 %v3828, %v3828
      %v3931 = vmul.f32 %v3829, %v3829
      %v3932 = vmul.f32 %v3830, %v3830
      %v3933 = vmul.f32 %v3831, %v3831
      %v3934 = vmul.f32 %v3832, %v3832
      %v3935 = vmul.f32 %v3833, %v3833
      %v3936 = vmul.f32 %v3834, %v3834
      %v3937 = vmul.f32 %v3835, %v3835
      %v3938 = vmul.f32 %v3836, %v3836
      %v3939 = vmul.f32 %v3837, %v3837
      %v3940 = vmul.f32 %v3838, %v3838
      %v3941 = vmul.f32 %v3839, %v3839
      %v3942 = vmul.f32 %v3840, %v3840
      %v3943 = vmul.f32 %v3841, %v3841
      %v3944 = vmul.f32 %v3842, %v3842
      %v3945 = vmul.f32 %v3843, %v3843
      %v3946 = vmul.f32 %v3844, %v3844
      %v3947 = vmul.f32 %v3845, %v3845
      %v3948 = vmul.f32 %v3846, %v3846
      %v3949 = vmul.f32 %v3847, %v3847
      %v3950 = vmul.f32 %v3848, %v3848
      %v3951 = vmul.f32 %v3849, %v3849
      %v3952 = vmul.f32 %v3850, %v3850
      %v3953 = vmul.f32 %v3851, %v3851
      %v3954 = vmul.f32 %v3852, %v3852
      %v3955 = vmul.f32 %v3853, %v3853
      %v3956 = vmul.f32 %v3854, %v3854
      %v3957 = vmul.f32 %v3855, %v3855
      %v3958 = vmul.f32 %v3856, %v3856
      %v3959 = vadd.f32 %v3927, %v3928
      %v3960 = vadd.f32 %v3959, %v3929
      %v3961 = vadd.f32 %v3960, %v3930
      %v3962 = vadd.f32 %v3961, %v3931
      %v3963 = vadd.f32 %v3962, %v3932
      %v3964 = vadd.f32 %v3963, %v3933
      %v3965 = vadd.f32 %v3964, %v3934
      %v3966 = vadd.f32 %v3965, %v3935
      %v3967 = vadd.f32 %v3966, %v3936
      %v3968 = vadd.f32 %v3967, %v3937
      %v3969 = vadd.f32 %v3968, %v3938
      %v3970 = vadd.f32 %v3969, %v3939
      %v3971 = vadd.f32 %v3970, %v3940
      %v3972 = vadd.f32 %v3971, %v3941
      %v3973 = vadd.f32 %v3972, %v3942
      %v3974 = vadd.f32 %v3973, %v3943
      %v3975 = vadd.f32 %v3974, %v3944
      %v3976 = vadd.f32 %v3975, %v3945
      %v3977 = vadd.f32 %v3976, %v3946
      %v3978 = vadd.f32 %v3977, %v3947
      %v3979 = vadd.f32 %v3978, %v3948
      %v3980 = vadd.f32 %v3979, %v3949
      %v3981 = vadd.f32 %v3980, %v3950
      %v3982 = vadd.f32 %v3981, %v3951
      %v3983 = vadd.f32 %v3982, %v3952
      %v3984 = vadd.f32 %v3983, %v3953
      %v3985 = vadd.f32 %v3984, %v3954
      %v3986 = vadd.f32 %v3985, %v3955
      %v3987 = vadd.f32 %v3986, %v3956
      %v3988 = vadd.f32 %v3987, %v3957
      %v3989 = vadd.f32 %v3988, %v3958
      %v3990 = vrot.slane %v3989, 4
      %v3991 = vadd.f32 %v3989, %v3990
      %v3992 = vrot.slane %v3991, 2
      %v3993 = vadd.f32 %v3991, %v3992
      %v3994 = vrot.slane %v3993, 1
      %v3995 = vadd.f32 %v3993, %v3994
      %3996 = vst [vmem:[%s262 + $0x1] sm:$0x1] %v3995
      %p3997 = scmp.lt.s32.totalorder %s18, 1
      %s3998 = scalar_select %p3997, %s18, 1
      %s3999 = smul.addr %s3998, 32
      %s4000 = smul.addr %s3999, 8
      %s4001 = scalar_lea.vmem %s5, %s4000
      %p4002 = scmp.lt.s32.totalorder %s18, 1
      %s4003 = scalar_select %p4002, %s18, 1
      %s4004 = smul.addr %s4003, 2
      %s4005 = scalar_lea.vmem %s6, %s4004
      // Predicated region
      $region41: #{bottleneck_forward.5} parent=39 // pred_check
        %p4006 = pneg %p146
      $region42: #{bottleneck_forward.5} parent=39 // pred_check_branch
        %4008 = sbr.rel (%p4006) target = $region44
      $region43: #{bottleneck_forward.5} parent=39 // pred_region
        _
      $region44: #{bottleneck_forward.5} parent=39 // pred_fallthru
        _
      // Predicated region
      $region45: #{bottleneck_forward.5} parent=39 // pred_check
        %p4009 = pneg %p172
      $region46: #{bottleneck_forward.5} parent=39 // pred_check_branch
        %4011 = sbr.rel (%p4009) target = $region48
      $region47: #{bottleneck_forward.5} parent=39 // pred_region
        _
      $region48: #{bottleneck_forward.5} parent=39 // pred_fallthru
        _
    $region40: #{bottleneck_forward.5} parent=5 // pred_fallthru
      _
    %p4012 = scmp.le.s32.totalorder 2, %s13
    // Predicated region
    $region49: #{bottleneck_forward.5} parent=5 // pred_check
      %p4013 = pneg %p4012
    $region50: #{bottleneck_forward.5} parent=5 // pred_check_branch
      %4015 = sbr.rel (%p4013) target = $region52
    $region51: #{bottleneck_forward.5} parent=5 // pred_region
      %s4016 = ssub.s32 %s13, 2
      // Predicated region
      $region53: #{bottleneck_forward.5} parent=51 // pred_check
        %p4017 = pneg %p152
      $region54: #{bottleneck_forward.5} parent=51 // pred_check_branch
        %4019 = sbr.rel (%p4017) target = $region56
      $region55: #{bottleneck_forward.5} parent=51 // pred_region
        %p4020 = scmp.lt.s32.totalorder %s19, 1
        %s4021 = scalar_select %p4020, %s19, 1
        %s4022 = smul.addr %s4021, 32
        %s4023 = smul.addr %s4022, 8
        %s4024 = scalar_lea.vmem %s5, %s4023
      $region56: #{bottleneck_forward.5} parent=51 // pred_fallthru
        _
      // Predicated region
      $region57: #{bottleneck_forward.5} parent=51 // pred_check
        %p4025 = pneg %p178
      $region58: #{bottleneck_forward.5} parent=51 // pred_check_branch
        %4027 = sbr.rel (%p4025) target = $region60
      $region59: #{bottleneck_forward.5} parent=51 // pred_region
        %p4028 = scmp.lt.s32.totalorder %s19, 1
        %s4029 = scalar_select %p4028, %s19, 1
        %s4030 = smul.addr %s4029, 2
        %s4031 = scalar_lea.vmem %s6, %s4030
      $region60: #{bottleneck_forward.5} parent=51 // pred_fallthru
        _
    $region52: #{bottleneck_forward.5} parent=5 // pred_fallthru
      _
  $region6: #{bottleneck_forward.5} parent=0 // loop_footer
    %s17 = sadd.s32 1, %s13
  $region7: #{bottleneck_forward.5} parent=0 // loop_footer_branch
    %12 = sbr.rel target = $region3
  $region8: #{bottleneck_forward.5} parent=0 // loop_exit
    _

</llo_original>
